<compile_context>
chip_gen: v5e
topology: v5e:2x2
jax: 0.10.0
libtpu: 0.0.40
codegen_flags: <defaults>
</compile_context>

<pallas_src>
import functools
import math

import jax
import jax.numpy as jnp
import numpy as np
from jax.experimental import pallas as pl
from jax.experimental.pallas import tpu as pltpu


def clip_layer_kernel(x_ref, mask_ref, ln1w_ref, ln1b_ref, wqkv_ref, bqkv_ref,
                      wo_ref, bo_ref, ln2w_ref, ln2b_ref,
                      w1_ref, b1_ref, w2_ref, b2_ref,
                      out_ref, attn_scr, *, n_head: int, eps: float = 1e-5):
    Bt, S, D = x_ref.shape
    dh = D // n_head
    M = Bt * S

    x = x_ref[...].reshape(M, D).astype(jnp.float32)
    resid = x

    def layer_norm(v, w_ref, b_ref):
        mu = jnp.mean(v, axis=-1, keepdims=True)
        vc = v - mu
        var = jnp.mean(vc * vc, axis=-1, keepdims=True)
        return vc * jax.lax.rsqrt(var + eps) * w_ref[0] + b_ref[0]

    # ---- LayerNorm 1 + fused QKV projection (single wide MXU matmul) ----
    h = layer_norm(x, ln1w_ref, ln1b_ref).astype(jnp.bfloat16)
    qkv = (jnp.dot(h, wqkv_ref[...], preferred_element_type=jnp.float32)
           + bqkv_ref[0]).astype(jnp.bfloat16)                        # (M, 3D)

    mask = mask_ref[...]                                              # (S, S) f32

    # ---- per-head attention; head outputs staged into bf16 VMEM scratch ----
    # Static offsets -> cheap lane slices; scratch writes keep each head's
    # (S,S) score/prob slabs short-lived.
    for hh in range(n_head):
        lo = hh * dh
        qh = qkv[:, lo:lo + dh].reshape(Bt, S, dh)              # scale pre-folded
        kh = qkv[:, D + lo:D + lo + dh].reshape(Bt, S, dh)
        vh = qkv[:, 2 * D + lo:2 * D + lo + dh].reshape(Bt, S, dh)

        s = jnp.einsum('bqd,bkd->bqk', qh, kh,
                       preferred_element_type=jnp.float32)            # (Bt, S, S)
        s = s + mask[None]                                            # causal bias
        s = s - jnp.max(s, axis=-1, keepdims=True)
        p = jnp.exp(s)
        p = p * pl.reciprocal(jnp.sum(p, axis=-1, keepdims=True), approx=True)

        ho = jnp.einsum('bqk,bkd->bqd', p.astype(jnp.bfloat16), vh,
                        preferred_element_type=jnp.float32)           # (Bt, S, dh)
        attn_scr[:, lo:lo + dh] = ho.reshape(M, dh).astype(attn_scr.dtype)

    # ---- single full-contraction out-projection ----
    attn = jnp.dot(attn_scr[...], wo_ref[...],
                   preferred_element_type=jnp.float32) + bo_ref[0]
    x = attn + resid
    resid = x

    # ---- LayerNorm 2 + chunked MLP with quick-GELU ----
    h = layer_norm(x, ln2w_ref, ln2b_ref).astype(jnp.bfloat16)
    n_chunks = w1_ref.shape[0]

    def mlp_chunk(c, acc):
        h1 = jnp.dot(h, w1_ref[c], preferred_element_type=jnp.float32) + b1_ref[c]
        h1 = h1 * jax.nn.sigmoid(h1 * 1.702)
        return acc + jnp.dot(h1.astype(jnp.bfloat16), w2_ref[c],
                             preferred_element_type=jnp.float32)

    if n_chunks == 1:
        mlp = mlp_chunk(0, jnp.zeros((M, D), jnp.float32))
    else:
        # fori_loop bounds liveness of the f32 hidden slab to one chunk.
        mlp = jax.lax.fori_loop(0, n_chunks, mlp_chunk,
                                jnp.zeros((M, D), jnp.float32))

    out_ref[...] = (mlp + b2_ref[0] + resid).reshape(Bt, S, D).astype(out_ref.dtype)


def _pick_batch_block(B, S):
    """Widen the batch block so M = bt*S >= 256 (MXU M-width), but keep >=2
    grid slices when B >= 2 so both v7x TensorCores get work."""
    bt = 1
    for cand in range(1, B + 1):
        if B % cand:
            continue
        if cand * S > 1024:          # keep activation slabs bounded
            break
        bt = cand
        if cand * S >= 256:
            break
    if B >= 2 and B // bt < 2:
        for cand in range(bt - 1, 0, -1):
            if B % cand == 0 and B // cand >= 2:
                bt = cand
                break
    return bt


def clip_layer(x, params, *, n_head: int):
    B, S, D = x.shape
    dh = D // n_head
    (ln1w, ln1b, wqkv, bqkv, wo, bo, ln2w, ln2b, w1, b1, w2, b2) = params

    wdt = jnp.bfloat16
    scale = 1.0 / math.sqrt(float(dh))

    # Fold the softmax 1/sqrt(dh) into the Q third of the fused QKV weights.
    col_scale = jnp.concatenate([jnp.full((D,), scale, jnp.float32),
                                 jnp.ones((2 * D,), jnp.float32)])
    wqkv_s = (wqkv * col_scale[None, :]).astype(wdt)
    bqkv_s = (bqkv * col_scale[None, :]).astype(jnp.float32)
    wo_b = wo.astype(wdt)

    # Chunk the MLP hidden dim: >=256 wide when possible, <=1024 to bound VMEM.
    hidden = 4 * D
    chunk = hidden
    for cand in (1024, 512, 256):
        if hidden % cand == 0:
            chunk = cand
            break
    n_chunks = hidden // chunk
    w1_c = w1.reshape(D, n_chunks, chunk).transpose(1, 0, 2).astype(wdt)
    b1_c = b1.reshape(n_chunks, 1, chunk).astype(jnp.float32)
    w2_c = w2.reshape(n_chunks, chunk, D).astype(wdt)

    # Precompute the causal additive bias once (constant input, not per-step).
    row = jnp.arange(S, dtype=jnp.int32)[:, None]
    col = jnp.arange(S, dtype=jnp.int32)[None, :]
    mask_bias = jnp.where(col > row, jnp.float32(-1e30), jnp.float32(0.0))

    bt = _pick_batch_block(B, S)
    M = bt * S

    weight_args = (ln1w, ln1b, wqkv_s, bqkv_s, wo_b, bo, ln2w, ln2b,
                   w1_c, b1_c, w2_c, b2)
    args = (x, mask_bias) + weight_args

    # ---- generation-aware VMEM ceiling ----
    try:
        vmem_cap = int(pltpu.get_tpu_info().vmem_capacity_bytes)
    except Exception:
        vmem_cap = 128 << 20
    vmem_ceiling = max(vmem_cap - (16 << 20), 16 << 20)

    def vmem_estimate(single_buffer_weights):
        wbytes = sum(int(a.size) * a.dtype.itemsize for a in weight_args)
        wbytes *= 1 if single_buffer_weights else 2
        mbytes = int(mask_bias.size) * 4
        io_bytes = 2 * 2 * M * D * x.dtype.itemsize          # x/out, double-buffered
        act_bytes = (
            5 * M * D * 4          # x, resid, LN out, attn, mlp accum (f32)
            + M * 3 * D * 4        # fused qkv (f32 accum)
            + M * 3 * D * 2        # qkv bf16 copy
            + 2 * M * D * 2        # bf16 h + attention staging scratch
            + 3 * bt * S * S * 4   # scores / probs (+ headroom)
            + 2 * M * chunk * 4    # one MLP hidden chunk (f32) + slack
        )
        return wbytes + mbytes + io_bytes + act_bytes + (8 << 20)

    x_spec = pl.BlockSpec((bt, S, D), lambda b: (b, 0, 0))
    out_spec = pl.BlockSpec((bt, S, D), lambda b: (b, 0, 0))
    kernel = functools.partial(clip_layer_kernel, n_head=n_head)

    def _run(single_buffer_weights):
        def const_spec(a):
            nd = a.ndim
            idx = lambda b, _nd=nd: (0,) * _nd
            if single_buffer_weights:
                # constant index map -> block is DMA'd once; one buffer suffices
                return pl.BlockSpec(a.shape, idx, pipeline_mode=pl.Buffered(1))
            return pl.BlockSpec(a.shape, idx)

        in_specs = [x_spec] + [const_spec(a) for a in args[1:]]
        vmem_limit = int(min(max(vmem_estimate(single_buffer_weights), 32 << 20),
                             vmem_ceiling))

        return pl.pallas_call(
            kernel,
            out_shape=jax.ShapeDtypeStruct((B, S, D), x.dtype),
            grid_spec=pltpu.PrefetchScalarGridSpec(
                num_scalar_prefetch=0,
                grid=(B // bt,),
                in_specs=in_specs,
                out_specs=out_spec,
                scratch_shapes=[pltpu.VMEM((M, D), jnp.bfloat16)],
            ),
            compiler_params=pltpu.CompilerParams(
                dimension_semantics=("parallel",),
                vmem_limit_bytes=vmem_limit,
            ),
        )(*args)

    try:
        return _run(True)
    except Exception:
        # Fallback: default (double) buffering if Buffered(1) is unsupported.
        return _run(False)


def clip_layer_ref(x, params, *, n_head: int, eps: float = 1e-5):
    """Pure-JAX f32 reference mirroring the PyTorch module."""
    (ln1w, ln1b, wqkv, bqkv, wo, bo, ln2w, ln2b, w1, b1, w2, b2) = params
    B, S, D = x.shape
    dh = D // n_head

    def ln(v, w, b):
        mu = jnp.mean(v, axis=-1, keepdims=True)
        var = jnp.mean((v - mu) ** 2, axis=-1, keepdims=True)
        return (v - mu) / jnp.sqrt(var + eps) * w[0] + b[0]

    y = x
    h = ln(x, ln1w, ln1b)
    qkv = h @ wqkv + bqkv[0]
    q, k, v = jnp.split(qkv, 3, axis=-1)
    q = q.reshape(B, S, n_head, dh).transpose(0, 2, 1, 3)
    k = k.reshape(B, S, n_head, dh).transpose(0, 2, 1, 3)
    v = v.reshape(B, S, n_head, dh).transpose(0, 2, 1, 3)
    w = jnp.einsum('bhqd,bhkd->bhqk', q, k) / math.sqrt(dh)
    mask = jnp.triu(jnp.ones((S, S), dtype=bool), 1)
    w = jnp.where(mask[None, None], -jnp.inf, w)
    w = jax.nn.softmax(w, axis=-1)
    o = jnp.einsum('bhqk,bhkd->bhqd', w, v).transpose(0, 2, 1, 3).reshape(B, S, D)
    o = o @ wo + bo[0]
    x = o + y
    y = x
    h = ln(x, ln2w, ln2b)
    h = h @ w1 + b1[0]
    h = h * jax.nn.sigmoid(h * 1.702)
    h = h @ w2 + b2[0]
    return h + y


def init_params(key, n_embed):
    D = n_embed
    ks = jax.random.split(key, 8)
    scale = 0.02
    ln1w = jnp.ones((1, D), jnp.float32)
    ln1b = jnp.zeros((1, D), jnp.float32)
    wqkv = scale * jax.random.normal(ks[0], (D, 3 * D), jnp.float32)
    bqkv = scale * jax.random.normal(ks[1], (1, 3 * D), jnp.float32)
    wo = scale * jax.random.normal(ks[2], (D, D), jnp.float32)
    bo = scale * jax.random.normal(ks[3], (1, D), jnp.float32)
    ln2w = jnp.ones((1, D), jnp.float32)
    ln2b = jnp.zeros((1, D), jnp.float32)
    w1 = scale * jax.random.normal(ks[4], (D, 4 * D), jnp.float32)
    b1 = scale * jax.random.normal(ks[5], (1, 4 * D), jnp.float32)
    w2 = scale * jax.random.normal(ks[6], (4 * D, D), jnp.float32)
    b2 = scale * jax.random.normal(ks[7], (1, D), jnp.float32)
    return (ln1w, ln1b, wqkv, bqkv, wo, bo, ln2w, ln2b, w1, b1, w2, b2)


if __name__ == "__main__":
    B, S, n_head, n_embed = 2, 8, 4, 32

    key = jax.random.PRNGKey(0)
    kx, kp = jax.random.split(key)
    x = jax.random.normal(kx, (B, S, n_embed), jnp.float32)
    params = init_params(kp, n_embed)

    out = clip_layer(x, params, n_head=n_head)
    out = jax.block_until_ready(out)

    ref = clip_layer_ref(x, params, n_head=n_head)
    # bf16 MXU operands with f32 accumulation -> slightly looser tolerance vs f32 ref
    np.testing.assert_allclose(np.asarray(out), np.asarray(ref), rtol=2e-2, atol=2e-2)

    print("KERNEL_OK")
</pallas_src>

<mosaic_0001>
module attributes {stable_mosaic.version = 11 : i64} {
  func.func @clip_layer_kernel(%arg0: i32, %arg1: memref<1x8x32xf32, #tpu.memory_space<vmem>>, %arg2: memref<8x8xf32, #tpu.memory_space<vmem>>, %arg3: memref<1x32xf32, #tpu.memory_space<vmem>>, %arg4: memref<1x32xf32, #tpu.memory_space<vmem>>, %arg5: memref<32x96xbf16, #tpu.memory_space<vmem>>, %arg6: memref<1x96xf32, #tpu.memory_space<vmem>>, %arg7: memref<32x32xbf16, #tpu.memory_space<vmem>>, %arg8: memref<1x32xf32, #tpu.memory_space<vmem>>, %arg9: memref<1x32xf32, #tpu.memory_space<vmem>>, %arg10: memref<1x32xf32, #tpu.memory_space<vmem>>, %arg11: memref<1x32x128xbf16, #tpu.memory_space<vmem>>, %arg12: memref<1x1x128xf32, #tpu.memory_space<vmem>>, %arg13: memref<1x128x32xbf16, #tpu.memory_space<vmem>>, %arg14: memref<1x32xf32, #tpu.memory_space<vmem>>, %arg15: memref<1x8x32xf32, #tpu.memory_space<vmem>>, %arg16: memref<8x32xbf16, #tpu.memory_space<vmem>>) attributes {dimension_semantics = [#tpu.dimension_semantics<parallel>], iteration_bounds = array<i64: 2>, scalar_prefetch = 0 : i64, scratch_operands = 1 : i64, tpu.core_type = #tpu.core_type<tc>, window_params = [{transform_indices = @transform_0, window_bounds = array<i64: 1, 8, 32>}, {pipeline_mode = #tpu.pipeline_mode<synchronous>, transform_indices = @transform_1, window_bounds = array<i64: 8, 8>}, {pipeline_mode = #tpu.pipeline_mode<synchronous>, transform_indices = @transform_2, window_bounds = array<i64: 1, 32>}, {pipeline_mode = #tpu.pipeline_mode<synchronous>, transform_indices = @transform_3, window_bounds = array<i64: 1, 32>}, {pipeline_mode = #tpu.pipeline_mode<synchronous>, transform_indices = @transform_4, window_bounds = array<i64: 32, 96>}, {pipeline_mode = #tpu.pipeline_mode<synchronous>, transform_indices = @transform_5, window_bounds = array<i64: 1, 96>}, {pipeline_mode = #tpu.pipeline_mode<synchronous>, transform_indices = @transform_6, window_bounds = array<i64: 32, 32>}, {pipeline_mode = #tpu.pipeline_mode<synchronous>, transform_indices = @transform_7, window_bounds = array<i64: 1, 32>}, {pipeline_mode = #tpu.pipeline_mode<synchronous>, transform_indices = @transform_8, window_bounds = array<i64: 1, 32>}, {pipeline_mode = #tpu.pipeline_mode<synchronous>, transform_indices = @transform_9, window_bounds = array<i64: 1, 32>}, {pipeline_mode = #tpu.pipeline_mode<synchronous>, transform_indices = @transform_10, window_bounds = array<i64: 1, 32, 128>}, {pipeline_mode = #tpu.pipeline_mode<synchronous>, transform_indices = @transform_11, window_bounds = array<i64: 1, 1, 128>}, {pipeline_mode = #tpu.pipeline_mode<synchronous>, transform_indices = @transform_12, window_bounds = array<i64: 1, 128, 32>}, {pipeline_mode = #tpu.pipeline_mode<synchronous>, transform_indices = @transform_13, window_bounds = array<i64: 1, 32>}, {transform_indices = @transform_14, window_bounds = array<i64: 1, 8, 32>}]} {
    %c0 = arith.constant 0 : index
    %c0_0 = arith.constant 0 : index
    %c0_1 = arith.constant 0 : index
    %0 = vector.load %arg1[%c0, %c0_0, %c0_1] : memref<1x8x32xf32, #tpu.memory_space<vmem>>, vector<1x8x32xf32>
    %1 = vector.shape_cast %0 : vector<1x8x32xf32> to vector<8x32xf32>
    %cst = arith.constant dense<0.000000e+00> : vector<8xf32>
    %2 = vector.multi_reduction <add>, %1, %cst [1] : vector<8x32xf32> to vector<8xf32>
    %3 = vector.shape_cast %2 : vector<8xf32> to vector<8x1xf32>
    %cst_2 = arith.constant 3.200000e+01 : f32
    %4 = vector.broadcast %cst_2 : f32 to vector<8x1xf32>
    %5 = arith.divf %3, %4 : vector<8x1xf32>
    %6 = vector.broadcast %5 : vector<8x1xf32> to vector<8x32xf32>
    %7 = arith.subf %1, %6 : vector<8x32xf32>
    %8 = arith.mulf %7, %7 : vector<8x32xf32>
    %cst_3 = arith.constant dense<0.000000e+00> : vector<8xf32>
    %9 = vector.multi_reduction <add>, %8, %cst_3 [1] : vector<8x32xf32> to vector<8xf32>
    %10 = vector.shape_cast %9 : vector<8xf32> to vector<8x1xf32>
    %cst_4 = arith.constant 3.200000e+01 : f32
    %11 = vector.broadcast %cst_4 : f32 to vector<8x1xf32>
    %12 = arith.divf %10, %11 : vector<8x1xf32>
    %cst_5 = arith.constant 9.99999974E-6 : f32
    %13 = vector.broadcast %cst_5 : f32 to vector<8x1xf32>
    %14 = arith.addf %12, %13 : vector<8x1xf32>
    %15 = math.rsqrt %14 : vector<8x1xf32>
    %16 = vector.broadcast %15 : vector<8x1xf32> to vector<8x32xf32>
    %17 = arith.mulf %7, %16 : vector<8x32xf32>
    %c0_6 = arith.constant 0 : index
    %c0_7 = arith.constant 0 : index
    %18 = vector.load %arg3[%c0_6, %c0_7] : memref<1x32xf32, #tpu.memory_space<vmem>>, vector<1x32xf32>
    %19 = vector.shape_cast %18 : vector<1x32xf32> to vector<32xf32>
    %20 = vector.shape_cast %19 : vector<32xf32> to vector<1x32xf32>
    %21 = vector.broadcast %20 : vector<1x32xf32> to vector<8x32xf32>
    %22 = arith.mulf %17, %21 : vector<8x32xf32>
    %c0_8 = arith.constant 0 : index
    %c0_9 = arith.constant 0 : index
    %23 = vector.load %arg4[%c0_8, %c0_9] : memref<1x32xf32, #tpu.memory_space<vmem>>, vector<1x32xf32>
    %24 = vector.shape_cast %23 : vector<1x32xf32> to vector<32xf32>
    %25 = vector.shape_cast %24 : vector<32xf32> to vector<1x32xf32>
    %26 = vector.broadcast %25 : vector<1x32xf32> to vector<8x32xf32>
    %27 = arith.addf %22, %26 : vector<8x32xf32>
    %28 = arith.truncf %27 : vector<8x32xf32> to vector<8x32xbf16>
    %c0_10 = arith.constant 0 : index
    %c0_11 = arith.constant 0 : index
    %29 = vector.load %arg5[%c0_10, %c0_11] : memref<32x96xbf16, #tpu.memory_space<vmem>>, vector<32x96xbf16>
    %cst_12 = arith.constant dense<0.000000e+00> : vector<8x96xf32>
    %30 = tpu.matmul %28, %29, %cst_12 {dimension_numbers = #tpu.dot_dimension_numbers<[1], [0], [0], [1], [0, 0, 1, 1], [], []>} : vector<8x32xbf16>, vector<32x96xbf16>, vector<8x96xf32> -> vector<8x96xf32>
    %c0_13 = arith.constant 0 : index
    %c0_14 = arith.constant 0 : index
    %31 = vector.load %arg6[%c0_13, %c0_14] : memref<1x96xf32, #tpu.memory_space<vmem>>, vector<1x96xf32>
    %32 = vector.shape_cast %31 : vector<1x96xf32> to vector<96xf32>
    %33 = vector.shape_cast %32 : vector<96xf32> to vector<1x96xf32>
    %34 = vector.broadcast %33 : vector<1x96xf32> to vector<8x96xf32>
    %35 = arith.addf %30, %34 : vector<8x96xf32>
    %36 = arith.truncf %35 : vector<8x96xf32> to vector<8x96xbf16>
    %c0_15 = arith.constant 0 : index
    %c0_16 = arith.constant 0 : index
    %37 = vector.load %arg2[%c0_15, %c0_16] : memref<8x8xf32, #tpu.memory_space<vmem>>, vector<8x8xf32>
    %38 = vector.extract_strided_slice %36 {offsets = [0, 0], sizes = [8, 8], strides = [1, 1]} : vector<8x96xbf16> to vector<8x8xbf16>
    %39 = vector.shape_cast %38 : vector<8x8xbf16> to vector<1x8x8xbf16>
    %40 = vector.extract_strided_slice %36 {offsets = [0, 32], sizes = [8, 8], strides = [1, 1]} : vector<8x96xbf16> to vector<8x8xbf16>
    %41 = vector.shape_cast %40 : vector<8x8xbf16> to vector<1x8x8xbf16>
    %42 = vector.extract_strided_slice %36 {offsets = [0, 64], sizes = [8, 8], strides = [1, 1]} : vector<8x96xbf16> to vector<8x8xbf16>
    %43 = vector.shape_cast %42 : vector<8x8xbf16> to vector<1x8x8xbf16>
    "tpu.trace_start"() <{level = 10 : i32, message = "bqd,bkd->bqk"}> : () -> ()
    %cst_17 = arith.constant dense<0.000000e+00> : vector<1x8x8xf32>
    %44 = tpu.matmul %39, %41, %cst_17 {dimension_numbers = #tpu.dot_dimension_numbers<[2], [2], [1], [1], [0, 0, 0, 1, 1, 1], [0], [0]>} : vector<1x8x8xbf16>, vector<1x8x8xbf16>, vector<1x8x8xf32> -> vector<1x8x8xf32>
    "tpu.trace_stop"() : () -> ()
    %45 = vector.shape_cast %37 : vector<8x8xf32> to vector<1x8x8xf32>
    %46 = arith.addf %44, %45 : vector<1x8x8xf32>
    %cst_18 = arith.constant dense<0xFF800000> : vector<1x8xf32>
    %47 = vector.multi_reduction <maximumf>, %46, %cst_18 [2] : vector<1x8x8xf32> to vector<1x8xf32>
    %48 = vector.shape_cast %47 : vector<1x8xf32> to vector<1x8x1xf32>
    %49 = vector.broadcast %48 : vector<1x8x1xf32> to vector<1x8x8xf32>
    %50 = arith.subf %46, %49 : vector<1x8x8xf32>
    %51 = math.exp %50 : vector<1x8x8xf32>
    %cst_19 = arith.constant dense<0.000000e+00> : vector<1x8xf32>
    %52 = vector.multi_reduction <add>, %51, %cst_19 [2] : vector<1x8x8xf32> to vector<1x8xf32>
    %53 = vector.shape_cast %52 : vector<1x8xf32> to vector<1x8x1xf32>
    %54 = tpu.reciprocal %53 {approx = true} : vector<1x8x1xf32> -> vector<1x8x1xf32>
    %55 = vector.broadcast %54 : vector<1x8x1xf32> to vector<1x8x8xf32>
    %56 = arith.mulf %51, %55 : vector<1x8x8xf32>
    %57 = arith.truncf %56 : vector<1x8x8xf32> to vector<1x8x8xbf16>
    "tpu.trace_start"() <{level = 10 : i32, message = "bqk,bkd->bqd"}> : () -> ()
    %cst_20 = arith.constant dense<0.000000e+00> : vector<1x8x8xf32>
    %58 = tpu.matmul %57, %43, %cst_20 {dimension_numbers = #tpu.dot_dimension_numbers<[2], [1], [1], [2], [0, 0, 0, 1, 1, 2], [0], [0]>} : vector<1x8x8xbf16>, vector<1x8x8xbf16>, vector<1x8x8xf32> -> vector<1x8x8xf32>
    "tpu.trace_stop"() : () -> ()
    %59 = vector.shape_cast %58 : vector<1x8x8xf32> to vector<8x8xf32>
    %60 = arith.truncf %59 : vector<8x8xf32> to vector<8x8xbf16>
    %c0_21 = arith.constant 0 : index
    %c0_22 = arith.constant 0 : index
    %61 = vector.load %arg16[%c0_21, %c0_22] : memref<8x32xbf16, #tpu.memory_space<vmem>>, vector<8x8xbf16>
    tpu.vector_store %arg16[%c0_21, %c0_22], %60 {strides = array<i32>} : memref<8x32xbf16, #tpu.memory_space<vmem>>, vector<8x8xbf16>,
    %62 = vector.extract_strided_slice %36 {offsets = [0, 8], sizes = [8, 8], strides = [1, 1]} : vector<8x96xbf16> to vector<8x8xbf16>
    %63 = vector.shape_cast %62 : vector<8x8xbf16> to vector<1x8x8xbf16>
    %64 = vector.extract_strided_slice %36 {offsets = [0, 40], sizes = [8, 8], strides = [1, 1]} : vector<8x96xbf16> to vector<8x8xbf16>
    %65 = vector.shape_cast %64 : vector<8x8xbf16> to vector<1x8x8xbf16>
    %66 = vector.extract_strided_slice %36 {offsets = [0, 72], sizes = [8, 8], strides = [1, 1]} : vector<8x96xbf16> to vector<8x8xbf16>
    %67 = vector.shape_cast %66 : vector<8x8xbf16> to vector<1x8x8xbf16>
    "tpu.trace_start"() <{level = 10 : i32, message = "bqd,bkd->bqk"}> : () -> ()
    %cst_23 = arith.constant dense<0.000000e+00> : vector<1x8x8xf32>
    %68 = tpu.matmul %63, %65, %cst_23 {dimension_numbers = #tpu.dot_dimension_numbers<[2], [2], [1], [1], [0, 0, 0, 1, 1, 1], [0], [0]>} : vector<1x8x8xbf16>, vector<1x8x8xbf16>, vector<1x8x8xf32> -> vector<1x8x8xf32>
    "tpu.trace_stop"() : () -> ()
    %69 = vector.shape_cast %37 : vector<8x8xf32> to vector<1x8x8xf32>
    %70 = arith.addf %68, %69 : vector<1x8x8xf32>
    %cst_24 = arith.constant dense<0xFF800000> : vector<1x8xf32>
    %71 = vector.multi_reduction <maximumf>, %70, %cst_24 [2] : vector<1x8x8xf32> to vector<1x8xf32>
    %72 = vector.shape_cast %71 : vector<1x8xf32> to vector<1x8x1xf32>
    %73 = vector.broadcast %72 : vector<1x8x1xf32> to vector<1x8x8xf32>
    %74 = arith.subf %70, %73 : vector<1x8x8xf32>
    %75 = math.exp %74 : vector<1x8x8xf32>
    %cst_25 = arith.constant dense<0.000000e+00> : vector<1x8xf32>
    %76 = vector.multi_reduction <add>, %75, %cst_25 [2] : vector<1x8x8xf32> to vector<1x8xf32>
    %77 = vector.shape_cast %76 : vector<1x8xf32> to vector<1x8x1xf32>
    %78 = tpu.reciprocal %77 {approx = true} : vector<1x8x1xf32> -> vector<1x8x1xf32>
    %79 = vector.broadcast %78 : vector<1x8x1xf32> to vector<1x8x8xf32>
    %80 = arith.mulf %75, %79 : vector<1x8x8xf32>
    %81 = arith.truncf %80 : vector<1x8x8xf32> to vector<1x8x8xbf16>
    "tpu.trace_start"() <{level = 10 : i32, message = "bqk,bkd->bqd"}> : () -> ()
    %cst_26 = arith.constant dense<0.000000e+00> : vector<1x8x8xf32>
    %82 = tpu.matmul %81, %67, %cst_26 {dimension_numbers = #tpu.dot_dimension_numbers<[2], [1], [1], [2], [0, 0, 0, 1, 1, 2], [0], [0]>} : vector<1x8x8xbf16>, vector<1x8x8xbf16>, vector<1x8x8xf32> -> vector<1x8x8xf32>
    "tpu.trace_stop"() : () -> ()
    %83 = vector.shape_cast %82 : vector<1x8x8xf32> to vector<8x8xf32>
    %84 = arith.truncf %83 : vector<8x8xf32> to vector<8x8xbf16>
    %c0_27 = arith.constant 0 : index
    %c8 = arith.constant 8 : index
    %85 = vector.load %arg16[%c0_27, %c8] : memref<8x32xbf16, #tpu.memory_space<vmem>>, vector<8x8xbf16>
    tpu.vector_store %arg16[%c0_27, %c8], %84 {strides = array<i32>} : memref<8x32xbf16, #tpu.memory_space<vmem>>, vector<8x8xbf16>,
    %86 = vector.extract_strided_slice %36 {offsets = [0, 16], sizes = [8, 8], strides = [1, 1]} : vector<8x96xbf16> to vector<8x8xbf16>
    %87 = vector.shape_cast %86 : vector<8x8xbf16> to vector<1x8x8xbf16>
    %88 = vector.extract_strided_slice %36 {offsets = [0, 48], sizes = [8, 8], strides = [1, 1]} : vector<8x96xbf16> to vector<8x8xbf16>
    %89 = vector.shape_cast %88 : vector<8x8xbf16> to vector<1x8x8xbf16>
    %90 = vector.extract_strided_slice %36 {offsets = [0, 80], sizes = [8, 8], strides = [1, 1]} : vector<8x96xbf16> to vector<8x8xbf16>
    %91 = vector.shape_cast %90 : vector<8x8xbf16> to vector<1x8x8xbf16>
    "tpu.trace_start"() <{level = 10 : i32, message = "bqd,bkd->bqk"}> : () -> ()
    %cst_28 = arith.constant dense<0.000000e+00> : vector<1x8x8xf32>
    %92 = tpu.matmul %87, %89, %cst_28 {dimension_numbers = #tpu.dot_dimension_numbers<[2], [2], [1], [1], [0, 0, 0, 1, 1, 1], [0], [0]>} : vector<1x8x8xbf16>, vector<1x8x8xbf16>, vector<1x8x8xf32> -> vector<1x8x8xf32>
    "tpu.trace_stop"() : () -> ()
    %93 = vector.shape_cast %37 : vector<8x8xf32> to vector<1x8x8xf32>
    %94 = arith.addf %92, %93 : vector<1x8x8xf32>
    %cst_29 = arith.constant dense<0xFF800000> : vector<1x8xf32>
    %95 = vector.multi_reduction <maximumf>, %94, %cst_29 [2] : vector<1x8x8xf32> to vector<1x8xf32>
    %96 = vector.shape_cast %95 : vector<1x8xf32> to vector<1x8x1xf32>
    %97 = vector.broadcast %96 : vector<1x8x1xf32> to vector<1x8x8xf32>
    %98 = arith.subf %94, %97 : vector<1x8x8xf32>
    %99 = math.exp %98 : vector<1x8x8xf32>
    %cst_30 = arith.constant dense<0.000000e+00> : vector<1x8xf32>
    %100 = vector.multi_reduction <add>, %99, %cst_30 [2] : vector<1x8x8xf32> to vector<1x8xf32>
    %101 = vector.shape_cast %100 : vector<1x8xf32> to vector<1x8x1xf32>
    %102 = tpu.reciprocal %101 {approx = true} : vector<1x8x1xf32> -> vector<1x8x1xf32>
    %103 = vector.broadcast %102 : vector<1x8x1xf32> to vector<1x8x8xf32>
    %104 = arith.mulf %99, %103 : vector<1x8x8xf32>
    %105 = arith.truncf %104 : vector<1x8x8xf32> to vector<1x8x8xbf16>
    "tpu.trace_start"() <{level = 10 : i32, message = "bqk,bkd->bqd"}> : () -> ()
    %cst_31 = arith.constant dense<0.000000e+00> : vector<1x8x8xf32>
    %106 = tpu.matmul %105, %91, %cst_31 {dimension_numbers = #tpu.dot_dimension_numbers<[2], [1], [1], [2], [0, 0, 0, 1, 1, 2], [0], [0]>} : vector<1x8x8xbf16>, vector<1x8x8xbf16>, vector<1x8x8xf32> -> vector<1x8x8xf32>
    "tpu.trace_stop"() : () -> ()
    %107 = vector.shape_cast %106 : vector<1x8x8xf32> to vector<8x8xf32>
    %108 = arith.truncf %107 : vector<8x8xf32> to vector<8x8xbf16>
    %c0_32 = arith.constant 0 : index
    %c16 = arith.constant 16 : index
    %109 = vector.load %arg16[%c0_32, %c16] : memref<8x32xbf16, #tpu.memory_space<vmem>>, vector<8x8xbf16>
    tpu.vector_store %arg16[%c0_32, %c16], %108 {strides = array<i32>} : memref<8x32xbf16, #tpu.memory_space<vmem>>, vector<8x8xbf16>,
    %110 = vector.extract_strided_slice %36 {offsets = [0, 24], sizes = [8, 8], strides = [1, 1]} : vector<8x96xbf16> to vector<8x8xbf16>
    %111 = vector.shape_cast %110 : vector<8x8xbf16> to vector<1x8x8xbf16>
    %112 = vector.extract_strided_slice %36 {offsets = [0, 56], sizes = [8, 8], strides = [1, 1]} : vector<8x96xbf16> to vector<8x8xbf16>
    %113 = vector.shape_cast %112 : vector<8x8xbf16> to vector<1x8x8xbf16>
    %114 = vector.extract_strided_slice %36 {offsets = [0, 88], sizes = [8, 8], strides = [1, 1]} : vector<8x96xbf16> to vector<8x8xbf16>
    %115 = vector.shape_cast %114 : vector<8x8xbf16> to vector<1x8x8xbf16>
    "tpu.trace_start"() <{level = 10 : i32, message = "bqd,bkd->bqk"}> : () -> ()
    %cst_33 = arith.constant dense<0.000000e+00> : vector<1x8x8xf32>
    %116 = tpu.matmul %111, %113, %cst_33 {dimension_numbers = #tpu.dot_dimension_numbers<[2], [2], [1], [1], [0, 0, 0, 1, 1, 1], [0], [0]>} : vector<1x8x8xbf16>, vector<1x8x8xbf16>, vector<1x8x8xf32> -> vector<1x8x8xf32>
    "tpu.trace_stop"() : () -> ()
    %117 = vector.shape_cast %37 : vector<8x8xf32> to vector<1x8x8xf32>
    %118 = arith.addf %116, %117 : vector<1x8x8xf32>
    %cst_34 = arith.constant dense<0xFF800000> : vector<1x8xf32>
    %119 = vector.multi_reduction <maximumf>, %118, %cst_34 [2] : vector<1x8x8xf32> to vector<1x8xf32>
    %120 = vector.shape_cast %119 : vector<1x8xf32> to vector<1x8x1xf32>
    %121 = vector.broadcast %120 : vector<1x8x1xf32> to vector<1x8x8xf32>
    %122 = arith.subf %118, %121 : vector<1x8x8xf32>
    %123 = math.exp %122 : vector<1x8x8xf32>
    %cst_35 = arith.constant dense<0.000000e+00> : vector<1x8xf32>
    %124 = vector.multi_reduction <add>, %123, %cst_35 [2] : vector<1x8x8xf32> to vector<1x8xf32>
    %125 = vector.shape_cast %124 : vector<1x8xf32> to vector<1x8x1xf32>
    %126 = tpu.reciprocal %125 {approx = true} : vector<1x8x1xf32> -> vector<1x8x1xf32>
    %127 = vector.broadcast %126 : vector<1x8x1xf32> to vector<1x8x8xf32>
    %128 = arith.mulf %123, %127 : vector<1x8x8xf32>
    %129 = arith.truncf %128 : vector<1x8x8xf32> to vector<1x8x8xbf16>
    "tpu.trace_start"() <{level = 10 : i32, message = "bqk,bkd->bqd"}> : () -> ()
    %cst_36 = arith.constant dense<0.000000e+00> : vector<1x8x8xf32>
    %130 = tpu.matmul %129, %115, %cst_36 {dimension_numbers = #tpu.dot_dimension_numbers<[2], [1], [1], [2], [0, 0, 0, 1, 1, 2], [0], [0]>} : vector<1x8x8xbf16>, vector<1x8x8xbf16>, vector<1x8x8xf32> -> vector<1x8x8xf32>
    "tpu.trace_stop"() : () -> ()
    %131 = vector.shape_cast %130 : vector<1x8x8xf32> to vector<8x8xf32>
    %132 = arith.truncf %131 : vector<8x8xf32> to vector<8x8xbf16>
    %c0_37 = arith.constant 0 : index
    %c24 = arith.constant 24 : index
    %133 = vector.load %arg16[%c0_37, %c24] : memref<8x32xbf16, #tpu.memory_space<vmem>>, vector<8x8xbf16>
    tpu.vector_store %arg16[%c0_37, %c24], %132 {strides = array<i32>} : memref<8x32xbf16, #tpu.memory_space<vmem>>, vector<8x8xbf16>,
    %c0_38 = arith.constant 0 : index
    %c0_39 = arith.constant 0 : index
    %134 = vector.load %arg16[%c0_38, %c0_39] : memref<8x32xbf16, #tpu.memory_space<vmem>>, vector<8x32xbf16>
    %c0_40 = arith.constant 0 : index
    %c0_41 = arith.constant 0 : index
    %135 = vector.load %arg7[%c0_40, %c0_41] : memref<32x32xbf16, #tpu.memory_space<vmem>>, vector<32x32xbf16>
    %cst_42 = arith.constant dense<0.000000e+00> : vector<8x32xf32>
    %136 = tpu.matmul %134, %135, %cst_42 {dimension_numbers = #tpu.dot_dimension_numbers<[1], [0], [0], [1], [0, 0, 1, 1], [], []>} : vector<8x32xbf16>, vector<32x32xbf16>, vector<8x32xf32> -> vector<8x32xf32>
    %c0_43 = arith.constant 0 : index
    %c0_44 = arith.constant 0 : index
    %137 = vector.load %arg8[%c0_43, %c0_44] : memref<1x32xf32, #tpu.memory_space<vmem>>, vector<1x32xf32>
    %138 = vector.shape_cast %137 : vector<1x32xf32> to vector<32xf32>
    %139 = vector.shape_cast %138 : vector<32xf32> to vector<1x32xf32>
    %140 = vector.broadcast %139 : vector<1x32xf32> to vector<8x32xf32>
    %141 = arith.addf %136, %140 : vector<8x32xf32>
    %142 = arith.addf %141, %1 : vector<8x32xf32>
    %cst_45 = arith.constant dense<0.000000e+00> : vector<8xf32>
    %143 = vector.multi_reduction <add>, %142, %cst_45 [1] : vector<8x32xf32> to vector<8xf32>
    %144 = vector.shape_cast %143 : vector<8xf32> to vector<8x1xf32>
    %cst_46 = arith.constant 3.200000e+01 : f32
    %145 = vector.broadcast %cst_46 : f32 to vector<8x1xf32>
    %146 = arith.divf %144, %145 : vector<8x1xf32>
    %147 = vector.broadcast %146 : vector<8x1xf32> to vector<8x32xf32>
    %148 = arith.subf %142, %147 : vector<8x32xf32>
    %149 = arith.mulf %148, %148 : vector<8x32xf32>
    %cst_47 = arith.constant dense<0.000000e+00> : vector<8xf32>
    %150 = vector.multi_reduction <add>, %149, %cst_47 [1] : vector<8x32xf32> to vector<8xf32>
    %151 = vector.shape_cast %150 : vector<8xf32> to vector<8x1xf32>
    %cst_48 = arith.constant 3.200000e+01 : f32
    %152 = vector.broadcast %cst_48 : f32 to vector<8x1xf32>
    %153 = arith.divf %151, %152 : vector<8x1xf32>
    %cst_49 = arith.constant 9.99999974E-6 : f32
    %154 = vector.broadcast %cst_49 : f32 to vector<8x1xf32>
    %155 = arith.addf %153, %154 : vector<8x1xf32>
    %156 = math.rsqrt %155 : vector<8x1xf32>
    %157 = vector.broadcast %156 : vector<8x1xf32> to vector<8x32xf32>
    %158 = arith.mulf %148, %157 : vector<8x32xf32>
    %c0_50 = arith.constant 0 : index
    %c0_51 = arith.constant 0 : index
    %159 = vector.load %arg9[%c0_50, %c0_51] : memref<1x32xf32, #tpu.memory_space<vmem>>, vector<1x32xf32>
    %160 = vector.shape_cast %159 : vector<1x32xf32> to vector<32xf32>
    %161 = vector.shape_cast %160 : vector<32xf32> to vector<1x32xf32>
    %162 = vector.broadcast %161 : vector<1x32xf32> to vector<8x32xf32>
    %163 = arith.mulf %158, %162 : vector<8x32xf32>
    %c0_52 = arith.constant 0 : index
    %c0_53 = arith.constant 0 : index
    %164 = vector.load %arg10[%c0_52, %c0_53] : memref<1x32xf32, #tpu.memory_space<vmem>>, vector<1x32xf32>
    %165 = vector.shape_cast %164 : vector<1x32xf32> to vector<32xf32>
    %166 = vector.shape_cast %165 : vector<32xf32> to vector<1x32xf32>
    %167 = vector.broadcast %166 : vector<1x32xf32> to vector<8x32xf32>
    %168 = arith.addf %163, %167 : vector<8x32xf32>
    %169 = arith.truncf %168 : vector<8x32xf32> to vector<8x32xbf16>
    %cst_54 = arith.constant 0.000000e+00 : f32
    %170 = vector.broadcast %cst_54 : f32 to vector<8x32xf32>
    %c0_55 = arith.constant 0 : index
    %c0_56 = arith.constant 0 : index
    %c0_57 = arith.constant 0 : index
    %171 = vector.load %arg11[%c0_55, %c0_56, %c0_57] : memref<1x32x128xbf16, #tpu.memory_space<vmem>>, vector<1x32x128xbf16>
    %172 = vector.shape_cast %171 : vector<1x32x128xbf16> to vector<32x128xbf16>
    %cst_58 = arith.constant dense<0.000000e+00> : vector<8x128xf32>
    %173 = tpu.matmul %169, %172, %cst_58 {dimension_numbers = #tpu.dot_dimension_numbers<[1], [0], [0], [1], [0, 0, 1, 1], [], []>} : vector<8x32xbf16>, vector<32x128xbf16>, vector<8x128xf32> -> vector<8x128xf32>
    %c0_59 = arith.constant 0 : index
    %c0_60 = arith.constant 0 : index
    %c0_61 = arith.constant 0 : index
    %174 = vector.load %arg12[%c0_59, %c0_60, %c0_61] : memref<1x1x128xf32, #tpu.memory_space<vmem>>, vector<1x1x128xf32>
    %175 = vector.shape_cast %174 : vector<1x1x128xf32> to vector<1x128xf32>
    %176 = vector.broadcast %175 : vector<1x128xf32> to vector<8x128xf32>
    %177 = arith.addf %173, %176 : vector<8x128xf32>
    %cst_62 = arith.constant 1.702000e+00 : f32
    %178 = vector.broadcast %cst_62 : f32 to vector<8x128xf32>
    %179 = arith.mulf %177, %178 : vector<8x128xf32>
    %180 = arith.negf %179 : vector<8x128xf32>
    %181 = math.exp %180 : vector<8x128xf32>
    %cst_63 = arith.constant 1.000000e+00 : f32
    %182 = vector.broadcast %cst_63 : f32 to vector<8x128xf32>
    %183 = arith.addf %182, %181 : vector<8x128xf32>
    %184 = arith.divf %182, %183 : vector<8x128xf32>
    %185 = arith.mulf %177, %184 : vector<8x128xf32>
    %186 = arith.truncf %185 : vector<8x128xf32> to vector<8x128xbf16>
    %c0_64 = arith.constant 0 : index
    %c0_65 = arith.constant 0 : index
    %c0_66 = arith.constant 0 : index
    %187 = vector.load %arg13[%c0_64, %c0_65, %c0_66] : memref<1x128x32xbf16, #tpu.memory_space<vmem>>, vector<1x128x32xbf16>
    %188 = vector.shape_cast %187 : vector<1x128x32xbf16> to vector<128x32xbf16>
    %cst_67 = arith.constant dense<0.000000e+00> : vector<8x32xf32>
    %189 = tpu.matmul %186, %188, %cst_67 {dimension_numbers = #tpu.dot_dimension_numbers<[1], [0], [0], [1], [0, 0, 1, 1], [], []>} : vector<8x128xbf16>, vector<128x32xbf16>, vector<8x32xf32> -> vector<8x32xf32>
    %190 = arith.addf %170, %189 : vector<8x32xf32>
    %c0_68 = arith.constant 0 : index
    %c0_69 = arith.constant 0 : index
    %191 = vector.load %arg14[%c0_68, %c0_69] : memref<1x32xf32, #tpu.memory_space<vmem>>, vector<1x32xf32>
    %192 = vector.shape_cast %191 : vector<1x32xf32> to vector<32xf32>
    %193 = vector.shape_cast %192 : vector<32xf32> to vector<1x32xf32>
    %194 = vector.broadcast %193 : vector<1x32xf32> to vector<8x32xf32>
    %195 = arith.addf %190, %194 : vector<8x32xf32>
    %196 = arith.addf %195, %142 : vector<8x32xf32>
    %197 = vector.shape_cast %196 : vector<8x32xf32> to vector<1x8x32xf32>
    %c0_70 = arith.constant 0 : index
    %c0_71 = arith.constant 0 : index
    %c0_72 = arith.constant 0 : index
    %198 = vector.load %arg15[%c0_70, %c0_71, %c0_72] : memref<1x8x32xf32, #tpu.memory_space<vmem>>, vector<1x8x32xf32>
    tpu.vector_store %arg15[%c0_70, %c0_71, %c0_72], %197 {strides = array<i32>} : memref<1x8x32xf32, #tpu.memory_space<vmem>>, vector<1x8x32xf32>,
    return
  }
  func.func @transform_0(%arg0: i32) -> (i32, i32, i32) {
    %c0_i32 = arith.constant 0 : i32
    %c0_i32_0 = arith.constant 0 : i32
    %c0_i32_1 = arith.constant 0 : i32
    return %arg0, %c0_i32, %c0_i32_0 : i32, i32, i32
  }
  func.func @transform_1(%arg0: i32) -> (i32, i32) {
    %c0_i32 = arith.constant 0 : i32
    %c0_i32_0 = arith.constant 0 : i32
    %c0_i32_1 = arith.constant 0 : i32
    return %c0_i32, %c0_i32_0 : i32, i32
  }
  func.func @transform_2(%arg0: i32) -> (i32, i32) {
    %c0_i32 = arith.constant 0 : i32
    %c0_i32_0 = arith.constant 0 : i32
    %c0_i32_1 = arith.constant 0 : i32
    return %c0_i32, %c0_i32_0 : i32, i32
  }
  func.func @transform_3(%arg0: i32) -> (i32, i32) {
    %c0_i32 = arith.constant 0 : i32
    %c0_i32_0 = arith.constant 0 : i32
    %c0_i32_1 = arith.constant 0 : i32
    return %c0_i32, %c0_i32_0 : i32, i32
  }
  func.func @transform_4(%arg0: i32) -> (i32, i32) {
    %c0_i32 = arith.constant 0 : i32
    %c0_i32_0 = arith.constant 0 : i32
    %c0_i32_1 = arith.constant 0 : i32
    return %c0_i32, %c0_i32_0 : i32, i32
  }
  func.func @transform_5(%arg0: i32) -> (i32, i32) {
    %c0_i32 = arith.constant 0 : i32
    %c0_i32_0 = arith.constant 0 : i32
    %c0_i32_1 = arith.constant 0 : i32
    return %c0_i32, %c0_i32_0 : i32, i32
  }
  func.func @transform_6(%arg0: i32) -> (i32, i32) {
    %c0_i32 = arith.constant 0 : i32
    %c0_i32_0 = arith.constant 0 : i32
    %c0_i32_1 = arith.constant 0 : i32
    return %c0_i32, %c0_i32_0 : i32, i32
  }
  func.func @transform_7(%arg0: i32) -> (i32, i32) {
    %c0_i32 = arith.constant 0 : i32
    %c0_i32_0 = arith.constant 0 : i32
    %c0_i32_1 = arith.constant 0 : i32
    return %c0_i32, %c0_i32_0 : i32, i32
  }
  func.func @transform_8(%arg0: i32) -> (i32, i32) {
    %c0_i32 = arith.constant 0 : i32
    %c0_i32_0 = arith.constant 0 : i32
    %c0_i32_1 = arith.constant 0 : i32
    return %c0_i32, %c0_i32_0 : i32, i32
  }
  func.func @transform_9(%arg0: i32) -> (i32, i32) {
    %c0_i32 = arith.constant 0 : i32
    %c0_i32_0 = arith.constant 0 : i32
    %c0_i32_1 = arith.constant 0 : i32
    return %c0_i32, %c0_i32_0 : i32, i32
  }
  func.func @transform_10(%arg0: i32) -> (i32, i32, i32) {
    %c0_i32 = arith.constant 0 : i32
    %c0_i32_0 = arith.constant 0 : i32
    %c0_i32_1 = arith.constant 0 : i32
    %c0_i32_2 = arith.constant 0 : i32
    return %c0_i32, %c0_i32_0, %c0_i32_1 : i32, i32, i32
  }
  func.func @transform_11(%arg0: i32) -> (i32, i32, i32) {
    %c0_i32 = arith.constant 0 : i32
    %c0_i32_0 = arith.constant 0 : i32
    %c0_i32_1 = arith.constant 0 : i32
    %c0_i32_2 = arith.constant 0 : i32
    return %c0_i32, %c0_i32_0, %c0_i32_1 : i32, i32, i32
  }
  func.func @transform_12(%arg0: i32) -> (i32, i32, i32) {
    %c0_i32 = arith.constant 0 : i32
    %c0_i32_0 = arith.constant 0 : i32
    %c0_i32_1 = arith.constant 0 : i32
    %c0_i32_2 = arith.constant 0 : i32
    return %c0_i32, %c0_i32_0, %c0_i32_1 : i32, i32, i32
  }
  func.func @transform_13(%arg0: i32) -> (i32, i32) {
    %c0_i32 = arith.constant 0 : i32
    %c0_i32_0 = arith.constant 0 : i32
    %c0_i32_1 = arith.constant 0 : i32
    return %c0_i32, %c0_i32_0 : i32, i32
  }
  func.func @transform_14(%arg0: i32) -> (i32, i32, i32) {
    %c0_i32 = arith.constant 0 : i32
    %c0_i32_0 = arith.constant 0 : i32
    %c0_i32_1 = arith.constant 0 : i32
    return %arg0, %c0_i32, %c0_i32_0 : i32, i32, i32
  }
}

module attributes {stable_mosaic.version = 11 : i64} {
  func.func @clip_layer_kernel(%arg0: i32, %arg1: memref<1x8x32xf32, #tpu.memory_space<vmem>>, %arg2: memref<8x8xf32, #tpu.memory_space<vmem>>, %arg3: memref<1x32xf32, #tpu.memory_space<vmem>>, %arg4: memref<1x32xf32, #tpu.memory_space<vmem>>, %arg5: memref<32x96xbf16, #tpu.memory_space<vmem>>, %arg6: memref<1x96xf32, #tpu.memory_space<vmem>>, %arg7: memref<32x32xbf16, #tpu.memory_space<vmem>>, %arg8: memref<1x32xf32, #tpu.memory_space<vmem>>, %arg9: memref<1x32xf32, #tpu.memory_space<vmem>>, %arg10: memref<1x32xf32, #tpu.memory_space<vmem>>, %arg11: memref<1x32x128xbf16, #tpu.memory_space<vmem>>, %arg12: memref<1x1x128xf32, #tpu.memory_space<vmem>>, %arg13: memref<1x128x32xbf16, #tpu.memory_space<vmem>>, %arg14: memref<1x32xf32, #tpu.memory_space<vmem>>, %arg15: memref<1x8x32xf32, #tpu.memory_space<vmem>>, %arg16: memref<8x32xbf16, #tpu.memory_space<vmem>>) attributes {dimension_semantics = [#tpu.dimension_semantics<parallel>], iteration_bounds = array<i64: 2>, scalar_prefetch = 0 : i64, scratch_operands = 1 : i64, tpu.core_type = #tpu.core_type<tc>, window_params = [{transform_indices = @transform_0, window_bounds = array<i64: 1, 8, 32>}, {pipeline_mode = #tpu.pipeline_mode<synchronous>, transform_indices = @transform_1, window_bounds = array<i64: 8, 8>}, {pipeline_mode = #tpu.pipeline_mode<synchronous>, transform_indices = @transform_2, window_bounds = array<i64: 1, 32>}, {pipeline_mode = #tpu.pipeline_mode<synchronous>, transform_indices = @transform_3, window_bounds = array<i64: 1, 32>}, {pipeline_mode = #tpu.pipeline_mode<synchronous>, transform_indices = @transform_4, window_bounds = array<i64: 32, 96>}, {pipeline_mode = #tpu.pipeline_mode<synchronous>, transform_indices = @transform_5, window_bounds = array<i64: 1, 96>}, {pipeline_mode = #tpu.pipeline_mode<synchronous>, transform_indices = @transform_6, window_bounds = array<i64: 32, 32>}, {pipeline_mode = #tpu.pipeline_mode<synchronous>, transform_indices = @transform_7, window_bounds = array<i64: 1, 32>}, {pipeline_mode = #tpu.pipeline_mode<synchronous>, transform_indices = @transform_8, window_bounds = array<i64: 1, 32>}, {pipeline_mode = #tpu.pipeline_mode<synchronous>, transform_indices = @transform_9, window_bounds = array<i64: 1, 32>}, {pipeline_mode = #tpu.pipeline_mode<synchronous>, transform_indices = @transform_10, window_bounds = array<i64: 1, 32, 128>}, {pipeline_mode = #tpu.pipeline_mode<synchronous>, transform_indices = @transform_11, window_bounds = array<i64: 1, 1, 128>}, {pipeline_mode = #tpu.pipeline_mode<synchronous>, transform_indices = @transform_12, window_bounds = array<i64: 1, 128, 32>}, {pipeline_mode = #tpu.pipeline_mode<synchronous>, transform_indices = @transform_13, window_bounds = array<i64: 1, 32>}, {transform_indices = @transform_14, window_bounds = array<i64: 1, 8, 32>}]} {
    %c0 = arith.constant 0 : index
    %c0_0 = arith.constant 0 : index
    %c0_1 = arith.constant 0 : index
    %0 = vector.load %arg1[%c0, %c0_0, %c0_1] : memref<1x8x32xf32, #tpu.memory_space<vmem>>, vector<1x8x32xf32>
    %1 = vector.shape_cast %0 : vector<1x8x32xf32> to vector<8x32xf32>
    %cst = arith.constant dense<0.000000e+00> : vector<8xf32>
    %2 = vector.multi_reduction <add>, %1, %cst [1] : vector<8x32xf32> to vector<8xf32>
    %3 = vector.shape_cast %2 : vector<8xf32> to vector<8x1xf32>
    %cst_2 = arith.constant 3.200000e+01 : f32
    %4 = vector.broadcast %cst_2 : f32 to vector<8x1xf32>
    %5 = arith.divf %3, %4 : vector<8x1xf32>
    %6 = vector.broadcast %5 : vector<8x1xf32> to vector<8x32xf32>
    %7 = arith.subf %1, %6 : vector<8x32xf32>
    %8 = arith.mulf %7, %7 : vector<8x32xf32>
    %cst_3 = arith.constant dense<0.000000e+00> : vector<8xf32>
    %9 = vector.multi_reduction <add>, %8, %cst_3 [1] : vector<8x32xf32> to vector<8xf32>
    %10 = vector.shape_cast %9 : vector<8xf32> to vector<8x1xf32>
    %cst_4 = arith.constant 3.200000e+01 : f32
    %11 = vector.broadcast %cst_4 : f32 to vector<8x1xf32>
    %12 = arith.divf %10, %11 : vector<8x1xf32>
    %cst_5 = arith.constant 9.99999974E-6 : f32
    %13 = vector.broadcast %cst_5 : f32 to vector<8x1xf32>
    %14 = arith.addf %12, %13 : vector<8x1xf32>
    %15 = math.rsqrt %14 : vector<8x1xf32>
    %16 = vector.broadcast %15 : vector<8x1xf32> to vector<8x32xf32>
    %17 = arith.mulf %7, %16 : vector<8x32xf32>
    %c0_6 = arith.constant 0 : index
    %c0_7 = arith.constant 0 : index
    %18 = vector.load %arg3[%c0_6, %c0_7] : memref<1x32xf32, #tpu.memory_space<vmem>>, vector<1x32xf32>
    %19 = vector.shape_cast %18 : vector<1x32xf32> to vector<32xf32>
    %20 = vector.shape_cast %19 : vector<32xf32> to vector<1x32xf32>
    %21 = vector.broadcast %20 : vector<1x32xf32> to vector<8x32xf32>
    %22 = arith.mulf %17, %21 : vector<8x32xf32>
    %c0_8 = arith.constant 0 : index
    %c0_9 = arith.constant 0 : index
    %23 = vector.load %arg4[%c0_8, %c0_9] : memref<1x32xf32, #tpu.memory_space<vmem>>, vector<1x32xf32>
    %24 = vector.shape_cast %23 : vector<1x32xf32> to vector<32xf32>
    %25 = vector.shape_cast %24 : vector<32xf32> to vector<1x32xf32>
    %26 = vector.broadcast %25 : vector<1x32xf32> to vector<8x32xf32>
    %27 = arith.addf %22, %26 : vector<8x32xf32>
    %28 = arith.truncf %27 : vector<8x32xf32> to vector<8x32xbf16>
    %c0_10 = arith.constant 0 : index
    %c0_11 = arith.constant 0 : index
    %29 = vector.load %arg5[%c0_10, %c0_11] : memref<32x96xbf16, #tpu.memory_space<vmem>>, vector<32x96xbf16>
    %cst_12 = arith.constant dense<0.000000e+00> : vector<8x96xf32>
    %30 = tpu.matmul %28, %29, %cst_12 {dimension_numbers = #tpu.dot_dimension_numbers<[1], [0], [0], [1], [0, 0, 1, 1], [], []>} : vector<8x32xbf16>, vector<32x96xbf16>, vector<8x96xf32> -> vector<8x96xf32>
    %c0_13 = arith.constant 0 : index
    %c0_14 = arith.constant 0 : index
    %31 = vector.load %arg6[%c0_13, %c0_14] : memref<1x96xf32, #tpu.memory_space<vmem>>, vector<1x96xf32>
    %32 = vector.shape_cast %31 : vector<1x96xf32> to vector<96xf32>
    %33 = vector.shape_cast %32 : vector<96xf32> to vector<1x96xf32>
    %34 = vector.broadcast %33 : vector<1x96xf32> to vector<8x96xf32>
    %35 = arith.addf %30, %34 : vector<8x96xf32>
    %36 = arith.truncf %35 : vector<8x96xf32> to vector<8x96xbf16>
    %c0_15 = arith.constant 0 : index
    %c0_16 = arith.constant 0 : index
    %37 = vector.load %arg2[%c0_15, %c0_16] : memref<8x8xf32, #tpu.memory_space<vmem>>, vector<8x8xf32>
    %38 = vector.extract_strided_slice %36 {offsets = [0, 0], sizes = [8, 8], strides = [1, 1]} : vector<8x96xbf16> to vector<8x8xbf16>
    %39 = vector.shape_cast %38 : vector<8x8xbf16> to vector<1x8x8xbf16>
    %40 = vector.extract_strided_slice %36 {offsets = [0, 32], sizes = [8, 8], strides = [1, 1]} : vector<8x96xbf16> to vector<8x8xbf16>
    %41 = vector.shape_cast %40 : vector<8x8xbf16> to vector<1x8x8xbf16>
    %42 = vector.extract_strided_slice %36 {offsets = [0, 64], sizes = [8, 8], strides = [1, 1]} : vector<8x96xbf16> to vector<8x8xbf16>
    %43 = vector.shape_cast %42 : vector<8x8xbf16> to vector<1x8x8xbf16>
    "tpu.trace_start"() <{level = 10 : i32, message = "bqd,bkd->bqk"}> : () -> ()
    %cst_17 = arith.constant dense<0.000000e+00> : vector<1x8x8xf32>
    %44 = tpu.matmul %39, %41, %cst_17 {dimension_numbers = #tpu.dot_dimension_numbers<[2], [2], [1], [1], [0, 0, 0, 1, 1, 1], [0], [0]>} : vector<1x8x8xbf16>, vector<1x8x8xbf16>, vector<1x8x8xf32> -> vector<1x8x8xf32>
    "tpu.trace_stop"() : () -> ()
    %45 = vector.shape_cast %37 : vector<8x8xf32> to vector<1x8x8xf32>
    %46 = arith.addf %44, %45 : vector<1x8x8xf32>
    %cst_18 = arith.constant dense<0xFF800000> : vector<1x8xf32>
    %47 = vector.multi_reduction <maximumf>, %46, %cst_18 [2] : vector<1x8x8xf32> to vector<1x8xf32>
    %48 = vector.shape_cast %47 : vector<1x8xf32> to vector<1x8x1xf32>
    %49 = vector.broadcast %48 : vector<1x8x1xf32> to vector<1x8x8xf32>
    %50 = arith.subf %46, %49 : vector<1x8x8xf32>
    %51 = math.exp %50 : vector<1x8x8xf32>
    %cst_19 = arith.constant dense<0.000000e+00> : vector<1x8xf32>
    %52 = vector.multi_reduction <add>, %51, %cst_19 [2] : vector<1x8x8xf32> to vector<1x8xf32>
    %53 = vector.shape_cast %52 : vector<1x8xf32> to vector<1x8x1xf32>
    %54 = tpu.reciprocal %53 {approx = true} : vector<1x8x1xf32> -> vector<1x8x1xf32>
    %55 = vector.broadcast %54 : vector<1x8x1xf32> to vector<1x8x8xf32>
    %56 = arith.mulf %51, %55 : vector<1x8x8xf32>
    %57 = arith.truncf %56 : vector<1x8x8xf32> to vector<1x8x8xbf16>
    "tpu.trace_start"() <{level = 10 : i32, message = "bqk,bkd->bqd"}> : () -> ()
    %cst_20 = arith.constant dense<0.000000e+00> : vector<1x8x8xf32>
    %58 = tpu.matmul %57, %43, %cst_20 {dimension_numbers = #tpu.dot_dimension_numbers<[2], [1], [1], [2], [0, 0, 0, 1, 1, 2], [0], [0]>} : vector<1x8x8xbf16>, vector<1x8x8xbf16>, vector<1x8x8xf32> -> vector<1x8x8xf32>
    "tpu.trace_stop"() : () -> ()
    %59 = vector.shape_cast %58 : vector<1x8x8xf32> to vector<8x8xf32>
    %60 = arith.truncf %59 : vector<8x8xf32> to vector<8x8xbf16>
    %c0_21 = arith.constant 0 : index
    %c0_22 = arith.constant 0 : index
    %61 = vector.load %arg16[%c0_21, %c0_22] : memref<8x32xbf16, #tpu.memory_space<vmem>>, vector<8x8xbf16>
    tpu.vector_store %arg16[%c0_21, %c0_22], %60 {strides = array<i32>} : memref<8x32xbf16, #tpu.memory_space<vmem>>, vector<8x8xbf16>,
    %62 = vector.extract_strided_slice %36 {offsets = [0, 8], sizes = [8, 8], strides = [1, 1]} : vector<8x96xbf16> to vector<8x8xbf16>
    %63 = vector.shape_cast %62 : vector<8x8xbf16> to vector<1x8x8xbf16>
    %64 = vector.extract_strided_slice %36 {offsets = [0, 40], sizes = [8, 8], strides = [1, 1]} : vector<8x96xbf16> to vector<8x8xbf16>
    %65 = vector.shape_cast %64 : vector<8x8xbf16> to vector<1x8x8xbf16>
    %66 = vector.extract_strided_slice %36 {offsets = [0, 72], sizes = [8, 8], strides = [1, 1]} : vector<8x96xbf16> to vector<8x8xbf16>
    %67 = vector.shape_cast %66 : vector<8x8xbf16> to vector<1x8x8xbf16>
    "tpu.trace_start"() <{level = 10 : i32, message = "bqd,bkd->bqk"}> : () -> ()
    %cst_23 = arith.constant dense<0.000000e+00> : vector<1x8x8xf32>
    %68 = tpu.matmul %63, %65, %cst_23 {dimension_numbers = #tpu.dot_dimension_numbers<[2], [2], [1], [1], [0, 0, 0, 1, 1, 1], [0], [0]>} : vector<1x8x8xbf16>, vector<1x8x8xbf16>, vector<1x8x8xf32> -> vector<1x8x8xf32>
    "tpu.trace_stop"() : () -> ()
    %69 = vector.shape_cast %37 : vector<8x8xf32> to vector<1x8x8xf32>
    %70 = arith.addf %68, %69 : vector<1x8x8xf32>
    %cst_24 = arith.constant dense<0xFF800000> : vector<1x8xf32>
    %71 = vector.multi_reduction <maximumf>, %70, %cst_24 [2] : vector<1x8x8xf32> to vector<1x8xf32>
    %72 = vector.shape_cast %71 : vector<1x8xf32> to vector<1x8x1xf32>
    %73 = vector.broadcast %72 : vector<1x8x1xf32> to vector<1x8x8xf32>
    %74 = arith.subf %70, %73 : vector<1x8x8xf32>
    %75 = math.exp %74 : vector<1x8x8xf32>
    %cst_25 = arith.constant dense<0.000000e+00> : vector<1x8xf32>
    %76 = vector.multi_reduction <add>, %75, %cst_25 [2] : vector<1x8x8xf32> to vector<1x8xf32>
    %77 = vector.shape_cast %76 : vector<1x8xf32> to vector<1x8x1xf32>
    %78 = tpu.reciprocal %77 {approx = true} : vector<1x8x1xf32> -> vector<1x8x1xf32>
    %79 = vector.broadcast %78 : vector<1x8x1xf32> to vector<1x8x8xf32>
    %80 = arith.mulf %75, %79 : vector<1x8x8xf32>
    %81 = arith.truncf %80 : vector<1x8x8xf32> to vector<1x8x8xbf16>
    "tpu.trace_start"() <{level = 10 : i32, message = "bqk,bkd->bqd"}> : () -> ()
    %cst_26 = arith.constant dense<0.000000e+00> : vector<1x8x8xf32>
    %82 = tpu.matmul %81, %67, %cst_26 {dimension_numbers = #tpu.dot_dimension_numbers<[2], [1], [1], [2], [0, 0, 0, 1, 1, 2], [0], [0]>} : vector<1x8x8xbf16>, vector<1x8x8xbf16>, vector<1x8x8xf32> -> vector<1x8x8xf32>
    "tpu.trace_stop"() : () -> ()
    %83 = vector.shape_cast %82 : vector<1x8x8xf32> to vector<8x8xf32>
    %84 = arith.truncf %83 : vector<8x8xf32> to vector<8x8xbf16>
    %c0_27 = arith.constant 0 : index
    %c8 = arith.constant 8 : index
    %85 = vector.load %arg16[%c0_27, %c8] : memref<8x32xbf16, #tpu.memory_space<vmem>>, vector<8x8xbf16>
    tpu.vector_store %arg16[%c0_27, %c8], %84 {strides = array<i32>} : memref<8x32xbf16, #tpu.memory_space<vmem>>, vector<8x8xbf16>,
    %86 = vector.extract_strided_slice %36 {offsets = [0, 16], sizes = [8, 8], strides = [1, 1]} : vector<8x96xbf16> to vector<8x8xbf16>
    %87 = vector.shape_cast %86 : vector<8x8xbf16> to vector<1x8x8xbf16>
    %88 = vector.extract_strided_slice %36 {offsets = [0, 48], sizes = [8, 8], strides = [1, 1]} : vector<8x96xbf16> to vector<8x8xbf16>
    %89 = vector.shape_cast %88 : vector<8x8xbf16> to vector<1x8x8xbf16>
    %90 = vector.extract_strided_slice %36 {offsets = [0, 80], sizes = [8, 8], strides = [1, 1]} : vector<8x96xbf16> to vector<8x8xbf16>
    %91 = vector.shape_cast %90 : vector<8x8xbf16> to vector<1x8x8xbf16>
    "tpu.trace_start"() <{level = 10 : i32, message = "bqd,bkd->bqk"}> : () -> ()
    %cst_28 = arith.constant dense<0.000000e+00> : vector<1x8x8xf32>
    %92 = tpu.matmul %87, %89, %cst_28 {dimension_numbers = #tpu.dot_dimension_numbers<[2], [2], [1], [1], [0, 0, 0, 1, 1, 1], [0], [0]>} : vector<1x8x8xbf16>, vector<1x8x8xbf16>, vector<1x8x8xf32> -> vector<1x8x8xf32>
    "tpu.trace_stop"() : () -> ()
    %93 = vector.shape_cast %37 : vector<8x8xf32> to vector<1x8x8xf32>
    %94 = arith.addf %92, %93 : vector<1x8x8xf32>
    %cst_29 = arith.constant dense<0xFF800000> : vector<1x8xf32>
    %95 = vector.multi_reduction <maximumf>, %94, %cst_29 [2] : vector<1x8x8xf32> to vector<1x8xf32>
    %96 = vector.shape_cast %95 : vector<1x8xf32> to vector<1x8x1xf32>
    %97 = vector.broadcast %96 : vector<1x8x1xf32> to vector<1x8x8xf32>
    %98 = arith.subf %94, %97 : vector<1x8x8xf32>
    %99 = math.exp %98 : vector<1x8x8xf32>
    %cst_30 = arith.constant dense<0.000000e+00> : vector<1x8xf32>
    %100 = vector.multi_reduction <add>, %99, %cst_30 [2] : vector<1x8x8xf32> to vector<1x8xf32>
    %101 = vector.shape_cast %100 : vector<1x8xf32> to vector<1x8x1xf32>
    %102 = tpu.reciprocal %101 {approx = true} : vector<1x8x1xf32> -> vector<1x8x1xf32>
    %103 = vector.broadcast %102 : vector<1x8x1xf32> to vector<1x8x8xf32>
    %104 = arith.mulf %99, %103 : vector<1x8x8xf32>
    %105 = arith.truncf %104 : vector<1x8x8xf32> to vector<1x8x8xbf16>
    "tpu.trace_start"() <{level = 10 : i32, message = "bqk,bkd->bqd"}> : () -> ()
    %cst_31 = arith.constant dense<0.000000e+00> : vector<1x8x8xf32>
    %106 = tpu.matmul %105, %91, %cst_31 {dimension_numbers = #tpu.dot_dimension_numbers<[2], [1], [1], [2], [0, 0, 0, 1, 1, 2], [0], [0]>} : vector<1x8x8xbf16>, vector<1x8x8xbf16>, vector<1x8x8xf32> -> vector<1x8x8xf32>
    "tpu.trace_stop"() : () -> ()
    %107 = vector.shape_cast %106 : vector<1x8x8xf32> to vector<8x8xf32>
    %108 = arith.truncf %107 : vector<8x8xf32> to vector<8x8xbf16>
    %c0_32 = arith.constant 0 : index
    %c16 = arith.constant 16 : index
    %109 = vector.load %arg16[%c0_32, %c16] : memref<8x32xbf16, #tpu.memory_space<vmem>>, vector<8x8xbf16>
    tpu.vector_store %arg16[%c0_32, %c16], %108 {strides = array<i32>} : memref<8x32xbf16, #tpu.memory_space<vmem>>, vector<8x8xbf16>,
    %110 = vector.extract_strided_slice %36 {offsets = [0, 24], sizes = [8, 8], strides = [1, 1]} : vector<8x96xbf16> to vector<8x8xbf16>
    %111 = vector.shape_cast %110 : vector<8x8xbf16> to vector<1x8x8xbf16>
    %112 = vector.extract_strided_slice %36 {offsets = [0, 56], sizes = [8, 8], strides = [1, 1]} : vector<8x96xbf16> to vector<8x8xbf16>
    %113 = vector.shape_cast %112 : vector<8x8xbf16> to vector<1x8x8xbf16>
    %114 = vector.extract_strided_slice %36 {offsets = [0, 88], sizes = [8, 8], strides = [1, 1]} : vector<8x96xbf16> to vector<8x8xbf16>
    %115 = vector.shape_cast %114 : vector<8x8xbf16> to vector<1x8x8xbf16>
    "tpu.trace_start"() <{level = 10 : i32, message = "bqd,bkd->bqk"}> : () -> ()
    %cst_33 = arith.constant dense<0.000000e+00> : vector<1x8x8xf32>
    %116 = tpu.matmul %111, %113, %cst_33 {dimension_numbers = #tpu.dot_dimension_numbers<[2], [2], [1], [1], [0, 0, 0, 1, 1, 1], [0], [0]>} : vector<1x8x8xbf16>, vector<1x8x8xbf16>, vector<1x8x8xf32> -> vector<1x8x8xf32>
    "tpu.trace_stop"() : () -> ()
    %117 = vector.shape_cast %37 : vector<8x8xf32> to vector<1x8x8xf32>
    %118 = arith.addf %116, %117 : vector<1x8x8xf32>
    %cst_34 = arith.constant dense<0xFF800000> : vector<1x8xf32>
    %119 = vector.multi_reduction <maximumf>, %118, %cst_34 [2] : vector<1x8x8xf32> to vector<1x8xf32>
    %120 = vector.shape_cast %119 : vector<1x8xf32> to vector<1x8x1xf32>
    %121 = vector.broadcast %120 : vector<1x8x1xf32> to vector<1x8x8xf32>
    %122 = arith.subf %118, %121 : vector<1x8x8xf32>
    %123 = math.exp %122 : vector<1x8x8xf32>
    %cst_35 = arith.constant dense<0.000000e+00> : vector<1x8xf32>
    %124 = vector.multi_reduction <add>, %123, %cst_35 [2] : vector<1x8x8xf32> to vector<1x8xf32>
    %125 = vector.shape_cast %124 : vector<1x8xf32> to vector<1x8x1xf32>
    %126 = tpu.reciprocal %125 {approx = true} : vector<1x8x1xf32> -> vector<1x8x1xf32>
    %127 = vector.broadcast %126 : vector<1x8x1xf32> to vector<1x8x8xf32>
    %128 = arith.mulf %123, %127 : vector<1x8x8xf32>
    %129 = arith.truncf %128 : vector<1x8x8xf32> to vector<1x8x8xbf16>
    "tpu.trace_start"() <{level = 10 : i32, message = "bqk,bkd->bqd"}> : () -> ()
    %cst_36 = arith.constant dense<0.000000e+00> : vector<1x8x8xf32>
    %130 = tpu.matmul %129, %115, %cst_36 {dimension_numbers = #tpu.dot_dimension_numbers<[2], [1], [1], [2], [0, 0, 0, 1, 1, 2], [0], [0]>} : vector<1x8x8xbf16>, vector<1x8x8xbf16>, vector<1x8x8xf32> -> vector<1x8x8xf32>
    "tpu.trace_stop"() : () -> ()
    %131 = vector.shape_cast %130 : vector<1x8x8xf32> to vector<8x8xf32>
    %132 = arith.truncf %131 : vector<8x8xf32> to vector<8x8xbf16>
    %c0_37 = arith.constant 0 : index
    %c24 = arith.constant 24 : index
    %133 = vector.load %arg16[%c0_37, %c24] : memref<8x32xbf16, #tpu.memory_space<vmem>>, vector<8x8xbf16>
    tpu.vector_store %arg16[%c0_37, %c24], %132 {strides = array<i32>} : memref<8x32xbf16, #tpu.memory_space<vmem>>, vector<8x8xbf16>,
    %c0_38 = arith.constant 0 : index
    %c0_39 = arith.constant 0 : index
    %134 = vector.load %arg16[%c0_38, %c0_39] : memref<8x32xbf16, #tpu.memory_space<vmem>>, vector<8x32xbf16>
    %c0_40 = arith.constant 0 : index
    %c0_41 = arith.constant 0 : index
    %135 = vector.load %arg7[%c0_40, %c0_41] : memref<32x32xbf16, #tpu.memory_space<vmem>>, vector<32x32xbf16>
    %cst_42 = arith.constant dense<0.000000e+00> : vector<8x32xf32>
    %136 = tpu.matmul %134, %135, %cst_42 {dimension_numbers = #tpu.dot_dimension_numbers<[1], [0], [0], [1], [0, 0, 1, 1], [], []>} : vector<8x32xbf16>, vector<32x32xbf16>, vector<8x32xf32> -> vector<8x32xf32>
    %c0_43 = arith.constant 0 : index
    %c0_44 = arith.constant 0 : index
    %137 = vector.load %arg8[%c0_43, %c0_44] : memref<1x32xf32, #tpu.memory_space<vmem>>, vector<1x32xf32>
    %138 = vector.shape_cast %137 : vector<1x32xf32> to vector<32xf32>
    %139 = vector.shape_cast %138 : vector<32xf32> to vector<1x32xf32>
    %140 = vector.broadcast %139 : vector<1x32xf32> to vector<8x32xf32>
    %141 = arith.addf %136, %140 : vector<8x32xf32>
    %142 = arith.addf %141, %1 : vector<8x32xf32>
    %cst_45 = arith.constant dense<0.000000e+00> : vector<8xf32>
    %143 = vector.multi_reduction <add>, %142, %cst_45 [1] : vector<8x32xf32> to vector<8xf32>
    %144 = vector.shape_cast %143 : vector<8xf32> to vector<8x1xf32>
    %cst_46 = arith.constant 3.200000e+01 : f32
    %145 = vector.broadcast %cst_46 : f32 to vector<8x1xf32>
    %146 = arith.divf %144, %145 : vector<8x1xf32>
    %147 = vector.broadcast %146 : vector<8x1xf32> to vector<8x32xf32>
    %148 = arith.subf %142, %147 : vector<8x32xf32>
    %149 = arith.mulf %148, %148 : vector<8x32xf32>
    %cst_47 = arith.constant dense<0.000000e+00> : vector<8xf32>
    %150 = vector.multi_reduction <add>, %149, %cst_47 [1] : vector<8x32xf32> to vector<8xf32>
    %151 = vector.shape_cast %150 : vector<8xf32> to vector<8x1xf32>
    %cst_48 = arith.constant 3.200000e+01 : f32
    %152 = vector.broadcast %cst_48 : f32 to vector<8x1xf32>
    %153 = arith.divf %151, %152 : vector<8x1xf32>
    %cst_49 = arith.constant 9.99999974E-6 : f32
    %154 = vector.broadcast %cst_49 : f32 to vector<8x1xf32>
    %155 = arith.addf %153, %154 : vector<8x1xf32>
    %156 = math.rsqrt %155 : vector<8x1xf32>
    %157 = vector.broadcast %156 : vector<8x1xf32> to vector<8x32xf32>
    %158 = arith.mulf %148, %157 : vector<8x32xf32>
    %c0_50 = arith.constant 0 : index
    %c0_51 = arith.constant 0 : index
    %159 = vector.load %arg9[%c0_50, %c0_51] : memref<1x32xf32, #tpu.memory_space<vmem>>, vector<1x32xf32>
    %160 = vector.shape_cast %159 : vector<1x32xf32> to vector<32xf32>
    %161 = vector.shape_cast %160 : vector<32xf32> to vector<1x32xf32>
    %162 = vector.broadcast %161 : vector<1x32xf32> to vector<8x32xf32>
    %163 = arith.mulf %158, %162 : vector<8x32xf32>
    %c0_52 = arith.constant 0 : index
    %c0_53 = arith.constant 0 : index
    %164 = vector.load %arg10[%c0_52, %c0_53] : memref<1x32xf32, #tpu.memory_space<vmem>>, vector<1x32xf32>
    %165 = vector.shape_cast %164 : vector<1x32xf32> to vector<32xf32>
    %166 = vector.shape_cast %165 : vector<32xf32> to vector<1x32xf32>
    %167 = vector.broadcast %166 : vector<1x32xf32> to vector<8x32xf32>
    %168 = arith.addf %163, %167 : vector<8x32xf32>
    %169 = arith.truncf %168 : vector<8x32xf32> to vector<8x32xbf16>
    %cst_54 = arith.constant 0.000000e+00 : f32
    %170 = vector.broadcast %cst_54 : f32 to vector<8x32xf32>
    %c0_55 = arith.constant 0 : index
    %c0_56 = arith.constant 0 : index
    %c0_57 = arith.constant 0 : index
    %171 = vector.load %arg11[%c0_55, %c0_56, %c0_57] : memref<1x32x128xbf16, #tpu.memory_space<vmem>>, vector<1x32x128xbf16>
    %172 = vector.shape_cast %171 : vector<1x32x128xbf16> to vector<32x128xbf16>
    %cst_58 = arith.constant dense<0.000000e+00> : vector<8x128xf32>
    %173 = tpu.matmul %169, %172, %cst_58 {dimension_numbers = #tpu.dot_dimension_numbers<[1], [0], [0], [1], [0, 0, 1, 1], [], []>} : vector<8x32xbf16>, vector<32x128xbf16>, vector<8x128xf32> -> vector<8x128xf32>
    %c0_59 = arith.constant 0 : index
    %c0_60 = arith.constant 0 : index
    %c0_61 = arith.constant 0 : index
    %174 = vector.load %arg12[%c0_59, %c0_60, %c0_61] : memref<1x1x128xf32, #tpu.memory_space<vmem>>, vector<1x1x128xf32>
    %175 = vector.shape_cast %174 : vector<1x1x128xf32> to vector<1x128xf32>
    %176 = vector.broadcast %175 : vector<1x128xf32> to vector<8x128xf32>
    %177 = arith.addf %173, %176 : vector<8x128xf32>
    %cst_62 = arith.constant 1.702000e+00 : f32
    %178 = vector.broadcast %cst_62 : f32 to vector<8x128xf32>
    %179 = arith.mulf %177, %178 : vector<8x128xf32>
    %180 = arith.negf %179 : vector<8x128xf32>
    %181 = math.exp %180 : vector<8x128xf32>
    %cst_63 = arith.constant 1.000000e+00 : f32
    %182 = vector.broadcast %cst_63 : f32 to vector<8x128xf32>
    %183 = arith.addf %182, %181 : vector<8x128xf32>
    %184 = arith.divf %182, %183 : vector<8x128xf32>
    %185 = arith.mulf %177, %184 : vector<8x128xf32>
    %186 = arith.truncf %185 : vector<8x128xf32> to vector<8x128xbf16>
    %c0_64 = arith.constant 0 : index
    %c0_65 = arith.constant 0 : index
    %c0_66 = arith.constant 0 : index
    %187 = vector.load %arg13[%c0_64, %c0_65, %c0_66] : memref<1x128x32xbf16, #tpu.memory_space<vmem>>, vector<1x128x32xbf16>
    %188 = vector.shape_cast %187 : vector<1x128x32xbf16> to vector<128x32xbf16>
    %cst_67 = arith.constant dense<0.000000e+00> : vector<8x32xf32>
    %189 = tpu.matmul %186, %188, %cst_67 {dimension_numbers = #tpu.dot_dimension_numbers<[1], [0], [0], [1], [0, 0, 1, 1], [], []>} : vector<8x128xbf16>, vector<128x32xbf16>, vector<8x32xf32> -> vector<8x32xf32>
    %190 = arith.addf %170, %189 : vector<8x32xf32>
    %c0_68 = arith.constant 0 : index
    %c0_69 = arith.constant 0 : index
    %191 = vector.load %arg14[%c0_68, %c0_69] : memref<1x32xf32, #tpu.memory_space<vmem>>, vector<1x32xf32>
    %192 = vector.shape_cast %191 : vector<1x32xf32> to vector<32xf32>
    %193 = vector.shape_cast %192 : vector<32xf32> to vector<1x32xf32>
    %194 = vector.broadcast %193 : vector<1x32xf32> to vector<8x32xf32>
    %195 = arith.addf %190, %194 : vector<8x32xf32>
    %196 = arith.addf %195, %142 : vector<8x32xf32>
    %197 = vector.shape_cast %196 : vector<8x32xf32> to vector<1x8x32xf32>
    %c0_70 = arith.constant 0 : index
    %c0_71 = arith.constant 0 : index
    %c0_72 = arith.constant 0 : index
    %198 = vector.load %arg15[%c0_70, %c0_71, %c0_72] : memref<1x8x32xf32, #tpu.memory_space<vmem>>, vector<1x8x32xf32>
    tpu.vector_store %arg15[%c0_70, %c0_71, %c0_72], %197 {strides = array<i32>} : memref<1x8x32xf32, #tpu.memory_space<vmem>>, vector<1x8x32xf32>,
    return
  }
  func.func @transform_0(%arg0: i32) -> (i32, i32, i32) {
    %c0_i32 = arith.constant 0 : i32
    %c0_i32_0 = arith.constant 0 : i32
    %c0_i32_1 = arith.constant 0 : i32
    return %arg0, %c0_i32, %c0_i32_0 : i32, i32, i32
  }
  func.func @transform_1(%arg0: i32) -> (i32, i32) {
    %c0_i32 = arith.constant 0 : i32
    %c0_i32_0 = arith.constant 0 : i32
    %c0_i32_1 = arith.constant 0 : i32
    return %c0_i32, %c0_i32_0 : i32, i32
  }
  func.func @transform_2(%arg0: i32) -> (i32, i32) {
    %c0_i32 = arith.constant 0 : i32
    %c0_i32_0 = arith.constant 0 : i32
    %c0_i32_1 = arith.constant 0 : i32
    return %c0_i32, %c0_i32_0 : i32, i32
  }
  func.func @transform_3(%arg0: i32) -> (i32, i32) {
    %c0_i32 = arith.constant 0 : i32
    %c0_i32_0 = arith.constant 0 : i32
    %c0_i32_1 = arith.constant 0 : i32
    return %c0_i32, %c0_i32_0 : i32, i32
  }
  func.func @transform_4(%arg0: i32) -> (i32, i32) {
    %c0_i32 = arith.constant 0 : i32
    %c0_i32_0 = arith.constant 0 : i32
    %c0_i32_1 = arith.constant 0 : i32
    return %c0_i32, %c0_i32_0 : i32, i32
  }
  func.func @transform_5(%arg0: i32) -> (i32, i32) {
    %c0_i32 = arith.constant 0 : i32
    %c0_i32_0 = arith.constant 0 : i32
    %c0_i32_1 = arith.constant 0 : i32
    return %c0_i32, %c0_i32_0 : i32, i32
  }
  func.func @transform_6(%arg0: i32) -> (i32, i32) {
    %c0_i32 = arith.constant 0 : i32
    %c0_i32_0 = arith.constant 0 : i32
    %c0_i32_1 = arith.constant 0 : i32
    return %c0_i32, %c0_i32_0 : i32, i32
  }
  func.func @transform_7(%arg0: i32) -> (i32, i32) {
    %c0_i32 = arith.constant 0 : i32
    %c0_i32_0 = arith.constant 0 : i32
    %c0_i32_1 = arith.constant 0 : i32
    return %c0_i32, %c0_i32_0 : i32, i32
  }
  func.func @transform_8(%arg0: i32) -> (i32, i32) {
    %c0_i32 = arith.constant 0 : i32
    %c0_i32_0 = arith.constant 0 : i32
    %c0_i32_1 = arith.constant 0 : i32
    return %c0_i32, %c0_i32_0 : i32, i32
  }
  func.func @transform_9(%arg0: i32) -> (i32, i32) {
    %c0_i32 = arith.constant 0 : i32
    %c0_i32_0 = arith.constant 0 : i32
    %c0_i32_1 = arith.constant 0 : i32
    return %c0_i32, %c0_i32_0 : i32, i32
  }
  func.func @transform_10(%arg0: i32) -> (i32, i32, i32) {
    %c0_i32 = arith.constant 0 : i32
    %c0_i32_0 = arith.constant 0 : i32
    %c0_i32_1 = arith.constant 0 : i32
    %c0_i32_2 = arith.constant 0 : i32
    return %c0_i32, %c0_i32_0, %c0_i32_1 : i32, i32, i32
  }
  func.func @transform_11(%arg0: i32) -> (i32, i32, i32) {
    %c0_i32 = arith.constant 0 : i32
    %c0_i32_0 = arith.constant 0 : i32
    %c0_i32_1 = arith.constant 0 : i32
    %c0_i32_2 = arith.constant 0 : i32
    return %c0_i32, %c0_i32_0, %c0_i32_1 : i32, i32, i32
  }
  func.func @transform_12(%arg0: i32) -> (i32, i32, i32) {
    %c0_i32 = arith.constant 0 : i32
    %c0_i32_0 = arith.constant 0 : i32
    %c0_i32_1 = arith.constant 0 : i32
    %c0_i32_2 = arith.constant 0 : i32
    return %c0_i32, %c0_i32_0, %c0_i32_1 : i32, i32, i32
  }
  func.func @transform_13(%arg0: i32) -> (i32, i32) {
    %c0_i32 = arith.constant 0 : i32
    %c0_i32_0 = arith.constant 0 : i32
    %c0_i32_1 = arith.constant 0 : i32
    return %c0_i32, %c0_i32_0 : i32, i32
  }
  func.func @transform_14(%arg0: i32) -> (i32, i32, i32) {
    %c0_i32 = arith.constant 0 : i32
    %c0_i32_0 = arith.constant 0 : i32
    %c0_i32_1 = arith.constant 0 : i32
    return %arg0, %c0_i32, %c0_i32_0 : i32, i32, i32
  }
}

</mosaic_0001>

<llo_original>
// kernel: tpu_custom_call.1
$region0: #{tpu_custom_call.1}
  #allocation0 [shape = 'u32[]', space=smem, size = 0x4, offset = 0x4, fixed_abs, tag = 'smem constant byte address 0x4 - core index']
  #allocation1 [shape = 'u32[72,128]{1,0:T(1,128)}', space=vmem, size = 0x9000, scoped, tag = 'internal scratch']
  #allocation2 [shape = 'bf16[8,32]{1,0:T(8,128)(2,1)}', space=vmem, size = 0x800, scoped, tag = 'scratch operand']
  %s0 = inlined_call_operand.vmem [shape: f32[2,8,32], index: 0, kind: input, shape index: {}]
  %s1 = inlined_call_operand.vmem [shape: f32[8,8], index: 1, kind: input, shape index: {}]
  %s2 = inlined_call_operand.vmem [shape: f32[1,32], index: 2, kind: input, shape index: {}]
  %s3 = inlined_call_operand.vmem [shape: f32[1,32], index: 3, kind: input, shape index: {}]
  %s4 = inlined_call_operand.vmem [shape: bf16[32,96], index: 4, kind: input, shape index: {}]
  %s5 = inlined_call_operand.vmem [shape: f32[1,96], index: 5, kind: input, shape index: {}]
  %s6 = inlined_call_operand.vmem [shape: bf16[32,32], index: 6, kind: input, shape index: {}]
  %s7 = inlined_call_operand.vmem [shape: f32[1,32], index: 7, kind: input, shape index: {}]
  %s8 = inlined_call_operand.vmem [shape: f32[1,32], index: 8, kind: input, shape index: {}]
  %s9 = inlined_call_operand.vmem [shape: f32[1,32], index: 9, kind: input, shape index: {}]
  %s10 = inlined_call_operand.vmem [shape: bf16[1,32,128], index: 10, kind: input, shape index: {}]
  %s11 = inlined_call_operand.vmem [shape: f32[1,1,128], index: 11, kind: input, shape index: {}]
  %s12 = inlined_call_operand.vmem [shape: bf16[1,128,32], index: 12, kind: input, shape index: {}]
  %s13 = inlined_call_operand.vmem [shape: f32[1,32], index: 13, kind: input, shape index: {}]
  %s14 = inlined_call_operand.hbm [shape: f32[2,8,32], index: 14, kind: output, shape index: {}]
  %s15 = sld [smem:[#allocation0]]
  $region89: #{tpu_custom_call.1} parent=0
    _
  %s17 = ssub.s32 1, %s15
  %s18 = scalar_select 0, %s17, %s15
  $region1: #{tpu_custom_call.1} parent=0
    #allocation3 [shape = 'u8[8192]{0}', space=vmem, size = 0x2000, scoped, tag = 'output window, operand 0']
    #allocation4 [shape = 's32[2]{0}', space=sflag, size = 0x8, scoped, tag = 'scoped memory for tpu_custom_call.1']
    %19 = vsyncpa [#allocation4], 0
    %s20 = scalar_lea.sflag [#allocation4], 1
    %21 = vsyncpa %s20, 0
    loop: start=0, step=1, limit=4
    $region2: #{tpu_custom_call.1} parent=1 // loop_pre_header
      _
    $region3: #{tpu_custom_call.1} parent=1 // loop_header
      %s23 = sphi 0, %s27
      %p24 = scmp.ge.s32.totalorder %s23, 4
      %s33 = sphi 0, %s35
      %s36 = sphi 0, %s33
      %s37 = sphi 0, %s36
      %s53 = sphi 0, %s37
      %s57 = sphi 0, %s57
      %s59 = sphi 0, %s57
      %s60 = sphi 0, %s59
      %s74 = sphi 0, %s60
      %s78 = sphi 0, %s78
      %s80 = sphi 0, %s78
      %s81 = sphi 0, %s80
      %s95 = sphi 0, %s81
      %s99 = sphi 0, %s99
      %s101 = sphi 0, %s99
      %s102 = sphi 0, %s101
      %s116 = sphi 0, %s102
      %s120 = sphi 0, %s120
      %s122 = sphi 0, %s120
      %s123 = sphi 0, %s122
      %s137 = sphi 0, %s123
      %s141 = sphi 0, %s141
      %s143 = sphi 0, %s141
      %s144 = sphi 0, %s143
      %s158 = sphi 0, %s144
      %s162 = sphi 0, %s162
      %s164 = sphi 0, %s162
      %s165 = sphi 0, %s164
      %s179 = sphi 0, %s165
      %s183 = sphi 0, %s183
      %s185 = sphi 0, %s183
      %s186 = sphi 0, %s185
      %s200 = sphi 0, %s186
      %s204 = sphi 0, %s204
      %s206 = sphi 0, %s204
      %s207 = sphi 0, %s206
      %s221 = sphi 0, %s207
      %s225 = sphi 0, %s225
      %s227 = sphi 0, %s225
      %s228 = sphi 0, %s227
      %s242 = sphi 0, %s228
      %s246 = sphi 0, %s246
      %s248 = sphi 0, %s246
      %s249 = sphi 0, %s248
      %s263 = sphi 0, %s249
      %s267 = sphi 0, %s267
      %s269 = sphi 0, %s267
      %s270 = sphi 0, %s269
      %s284 = sphi 0, %s270
      %s288 = sphi 0, %s288
      %s290 = sphi 0, %s288
      %s291 = sphi 0, %s290
      %s305 = sphi 0, %s291
      %s309 = sphi 0, %s309
      %s311 = sphi 0, %s309
      %s312 = sphi 0, %s311
      %s326 = sphi 0, %s312
      %s332 = sphi 0, %s334
      %s335 = sphi 0, %s332
      %s336 = sphi 0, %s335
      %s352 = sphi 0, %s336
    $region4: #{tpu_custom_call.1} parent=1 // loop_header_branch
      %26 = sbr.rel (%p24) target = $region8
    $region5: #{tpu_custom_call.1} parent=1 // loop_body
      %s28 = ssub.s32 %s23, 1
      %s29 = ssub.s32 %s23, 2
      %s30 = sadd.s32 %s23, 1
      %s31 = ssub.s32 %s23, %s30
      %p32 = scmp.eq.s32.totalorder %s31, 0
      %s34 = sadd.s32 %s33, 1
      %s35 = scalar_select %p32, %s33, %s34
      %p38 = pneg %p32
      %p39 = scmp.eq.s32.totalorder %s23, 1
      %p40 = por %p38, %p39
      %p41 = scmp.ne.s32.totalorder %s33, %s36
      %p42 = scmp.eq.s32.totalorder %s23, 0
      %p43 = por %p41, %p42
      %p44 = scmp.ne.s32.totalorder %s33, %s36
      %p45 = scmp.eq.s32.totalorder %s28, 1
      %p46 = por %p44, %p45
      %p47 = scmp.ne.s32.totalorder %s36, %s37
      %p48 = scmp.eq.s32.totalorder %s28, 0
      %p49 = por %p47, %p48
      %p50 = scmp.ne.s32.totalorder %s36, %s37
      %p51 = scmp.eq.s32.totalorder %s29, 1
      %p52 = por %p50, %p51
      %p54 = scmp.ne.s32.totalorder %s37, %s53
      %p55 = scmp.eq.s32.totalorder %s29, 0
      %p56 = por %p54, %p55
      %s58 = sadd.s32 %s57, 1
      %p61 = scmp.eq.s32.totalorder %s23, 1
      %p62 = scmp.ne.s32.totalorder %s57, %s59
      %p63 = scmp.eq.s32.totalorder %s23, 0
      %p64 = por %p62, %p63
      %p65 = scmp.ne.s32.totalorder %s57, %s59
      %p66 = scmp.eq.s32.totalorder %s28, 1
      %p67 = por %p65, %p66
      %p68 = scmp.ne.s32.totalorder %s59, %s60
      %p69 = scmp.eq.s32.totalorder %s28, 0
      %p70 = por %p68, %p69
      %p71 = scmp.ne.s32.totalorder %s59, %s60
      %p72 = scmp.eq.s32.totalorder %s29, 1
      %p73 = por %p71, %p72
      %p75 = scmp.ne.s32.totalorder %s60, %s74
      %p76 = scmp.eq.s32.totalorder %s29, 0
      %p77 = por %p75, %p76
      %s79 = sadd.s32 %s78, 1
      %p82 = scmp.eq.s32.totalorder %s23, 1
      %p83 = scmp.ne.s32.totalorder %s78, %s80
      %p84 = scmp.eq.s32.totalorder %s23, 0
      %p85 = por %p83, %p84
      %p86 = scmp.ne.s32.totalorder %s78, %s80
      %p87 = scmp.eq.s32.totalorder %s28, 1
      %p88 = por %p86, %p87
      %p89 = scmp.ne.s32.totalorder %s80, %s81
      %p90 = scmp.eq.s32.totalorder %s28, 0
      %p91 = por %p89, %p90
      %p92 = scmp.ne.s32.totalorder %s80, %s81
      %p93 = scmp.eq.s32.totalorder %s29, 1
      %p94 = por %p92, %p93
      %p96 = scmp.ne.s32.totalorder %s81, %s95
      %p97 = scmp.eq.s32.totalorder %s29, 0
      %p98 = por %p96, %p97
      %s100 = sadd.s32 %s99, 1
      %p103 = scmp.eq.s32.totalorder %s23, 1
      %p104 = scmp.ne.s32.totalorder %s99, %s101
      %p105 = scmp.eq.s32.totalorder %s23, 0
      %p106 = por %p104, %p105
      %p107 = scmp.ne.s32.totalorder %s99, %s101
      %p108 = scmp.eq.s32.totalorder %s28, 1
      %p109 = por %p107, %p108
      %p110 = scmp.ne.s32.totalorder %s101, %s102
      %p111 = scmp.eq.s32.totalorder %s28, 0
      %p112 = por %p110, %p111
      %p113 = scmp.ne.s32.totalorder %s101, %s102
      %p114 = scmp.eq.s32.totalorder %s29, 1
      %p115 = por %p113, %p114
      %p117 = scmp.ne.s32.totalorder %s102, %s116
      %p118 = scmp.eq.s32.totalorder %s29, 0
      %p119 = por %p117, %p118
      %s121 = sadd.s32 %s120, 1
      %p124 = scmp.eq.s32.totalorder %s23, 1
      %p125 = scmp.ne.s32.totalorder %s120, %s122
      %p126 = scmp.eq.s32.totalorder %s23, 0
      %p127 = por %p125, %p126
      %p128 = scmp.ne.s32.totalorder %s120, %s122
      %p129 = scmp.eq.s32.totalorder %s28, 1
      %p130 = por %p128, %p129
      %p131 = scmp.ne.s32.totalorder %s122, %s123
      %p132 = scmp.eq.s32.totalorder %s28, 0
      %p133 = por %p131, %p132
      %p134 = scmp.ne.s32.totalorder %s122, %s123
      %p135 = scmp.eq.s32.totalorder %s29, 1
      %p136 = por %p134, %p135
      %p138 = scmp.ne.s32.totalorder %s123, %s137
      %p139 = scmp.eq.s32.totalorder %s29, 0
      %p140 = por %p138, %p139
      %s142 = sadd.s32 %s141, 1
      %p145 = scmp.eq.s32.totalorder %s23, 1
      %p146 = scmp.ne.s32.totalorder %s141, %s143
      %p147 = scmp.eq.s32.totalorder %s23, 0
      %p148 = por %p146, %p147
      %p149 = scmp.ne.s32.totalorder %s141, %s143
      %p150 = scmp.eq.s32.totalorder %s28, 1
      %p151 = por %p149, %p150
      %p152 = scmp.ne.s32.totalorder %s143, %s144
      %p153 = scmp.eq.s32.totalorder %s28, 0
      %p154 = por %p152, %p153
      %p155 = scmp.ne.s32.totalorder %s143, %s144
      %p156 = scmp.eq.s32.totalorder %s29, 1
      %p157 = por %p155, %p156
      %p159 = scmp.ne.s32.totalorder %s144, %s158
      %p160 = scmp.eq.s32.totalorder %s29, 0
      %p161 = por %p159, %p160
      %s163 = sadd.s32 %s162, 1
      %p166 = scmp.eq.s32.totalorder %s23, 1
      %p167 = scmp.ne.s32.totalorder %s162, %s164
      %p168 = scmp.eq.s32.totalorder %s23, 0
      %p169 = por %p167, %p168
      %p170 = scmp.ne.s32.totalorder %s162, %s164
      %p171 = scmp.eq.s32.totalorder %s28, 1
      %p172 = por %p170, %p171
      %p173 = scmp.ne.s32.totalorder %s164, %s165
      %p174 = scmp.eq.s32.totalorder %s28, 0
      %p175 = por %p173, %p174
      %p176 = scmp.ne.s32.totalorder %s164, %s165
      %p177 = scmp.eq.s32.totalorder %s29, 1
      %p178 = por %p176, %p177
      %p180 = scmp.ne.s32.totalorder %s165, %s179
      %p181 = scmp.eq.s32.totalorder %s29, 0
      %p182 = por %p180, %p181
      %s184 = sadd.s32 %s183, 1
      %p187 = scmp.eq.s32.totalorder %s23, 1
      %p188 = scmp.ne.s32.totalorder %s183, %s185
      %p189 = scmp.eq.s32.totalorder %s23, 0
      %p190 = por %p188, %p189
      %p191 = scmp.ne.s32.totalorder %s183, %s185
      %p192 = scmp.eq.s32.totalorder %s28, 1
      %p193 = por %p191, %p192
      %p194 = scmp.ne.s32.totalorder %s185, %s186
      %p195 = scmp.eq.s32.totalorder %s28, 0
      %p196 = por %p194, %p195
      %p197 = scmp.ne.s32.totalorder %s185, %s186
      %p198 = scmp.eq.s32.totalorder %s29, 1
      %p199 = por %p197, %p198
      %p201 = scmp.ne.s32.totalorder %s186, %s200
      %p202 = scmp.eq.s32.totalorder %s29, 0
      %p203 = por %p201, %p202
      %s205 = sadd.s32 %s204, 1
      %p208 = scmp.eq.s32.totalorder %s23, 1
      %p209 = scmp.ne.s32.totalorder %s204, %s206
      %p210 = scmp.eq.s32.totalorder %s23, 0
      %p211 = por %p209, %p210
      %p212 = scmp.ne.s32.totalorder %s204, %s206
      %p213 = scmp.eq.s32.totalorder %s28, 1
      %p214 = por %p212, %p213
      %p215 = scmp.ne.s32.totalorder %s206, %s207
      %p216 = scmp.eq.s32.totalorder %s28, 0
      %p217 = por %p215, %p216
      %p218 = scmp.ne.s32.totalorder %s206, %s207
      %p219 = scmp.eq.s32.totalorder %s29, 1
      %p220 = por %p218, %p219
      %p222 = scmp.ne.s32.totalorder %s207, %s221
      %p223 = scmp.eq.s32.totalorder %s29, 0
      %p224 = por %p222, %p223
      %s226 = sadd.s32 %s225, 1
      %p229 = scmp.eq.s32.totalorder %s23, 1
      %p230 = scmp.ne.s32.totalorder %s225, %s227
      %p231 = scmp.eq.s32.totalorder %s23, 0
      %p232 = por %p230, %p231
      %p233 = scmp.ne.s32.totalorder %s225, %s227
      %p234 = scmp.eq.s32.totalorder %s28, 1
      %p235 = por %p233, %p234
      %p236 = scmp.ne.s32.totalorder %s227, %s228
      %p237 = scmp.eq.s32.totalorder %s28, 0
      %p238 = por %p236, %p237
      %p239 = scmp.ne.s32.totalorder %s227, %s228
      %p240 = scmp.eq.s32.totalorder %s29, 1
      %p241 = por %p239, %p240
      %p243 = scmp.ne.s32.totalorder %s228, %s242
      %p244 = scmp.eq.s32.totalorder %s29, 0
      %p245 = por %p243, %p244
      %s247 = sadd.s32 %s246, 1
      %p250 = scmp.eq.s32.totalorder %s23, 1
      %p251 = scmp.ne.s32.totalorder %s246, %s248
      %p252 = scmp.eq.s32.totalorder %s23, 0
      %p253 = por %p251, %p252
      %p254 = scmp.ne.s32.totalorder %s246, %s248
      %p255 = scmp.eq.s32.totalorder %s28, 1
      %p256 = por %p254, %p255
      %p257 = scmp.ne.s32.totalorder %s248, %s249
      %p258 = scmp.eq.s32.totalorder %s28, 0
      %p259 = por %p257, %p258
      %p260 = scmp.ne.s32.totalorder %s248, %s249
      %p261 = scmp.eq.s32.totalorder %s29, 1
      %p262 = por %p260, %p261
      %p264 = scmp.ne.s32.totalorder %s249, %s263
      %p265 = scmp.eq.s32.totalorder %s29, 0
      %p266 = por %p264, %p265
      %s268 = sadd.s32 %s267, 1
      %p271 = scmp.eq.s32.totalorder %s23, 1
      %p272 = scmp.ne.s32.totalorder %s267, %s269
      %p273 = scmp.eq.s32.totalorder %s23, 0
      %p274 = por %p272, %p273
      %p275 = scmp.ne.s32.totalorder %s267, %s269
      %p276 = scmp.eq.s32.totalorder %s28, 1
      %p277 = por %p275, %p276
      %p278 = scmp.ne.s32.totalorder %s269, %s270
      %p279 = scmp.eq.s32.totalorder %s28, 0
      %p280 = por %p278, %p279
      %p281 = scmp.ne.s32.totalorder %s269, %s270
      %p282 = scmp.eq.s32.totalorder %s29, 1
      %p283 = por %p281, %p282
      %p285 = scmp.ne.s32.totalorder %s270, %s284
      %p286 = scmp.eq.s32.totalorder %s29, 0
      %p287 = por %p285, %p286
      %s289 = sadd.s32 %s288, 1
      %p292 = scmp.eq.s32.totalorder %s23, 1
      %p293 = scmp.ne.s32.totalorder %s288, %s290
      %p294 = scmp.eq.s32.totalorder %s23, 0
      %p295 = por %p293, %p294
      %p296 = scmp.ne.s32.totalorder %s288, %s290
      %p297 = scmp.eq.s32.totalorder %s28, 1
      %p298 = por %p296, %p297
      %p299 = scmp.ne.s32.totalorder %s290, %s291
      %p300 = scmp.eq.s32.totalorder %s28, 0
      %p301 = por %p299, %p300
      %p302 = scmp.ne.s32.totalorder %s290, %s291
      %p303 = scmp.eq.s32.totalorder %s29, 1
      %p304 = por %p302, %p303
      %p306 = scmp.ne.s32.totalorder %s291, %s305
      %p307 = scmp.eq.s32.totalorder %s29, 0
      %p308 = por %p306, %p307
      %s310 = sadd.s32 %s309, 1
      %p313 = scmp.eq.s32.totalorder %s23, 1
      %p314 = scmp.ne.s32.totalorder %s309, %s311
      %p315 = scmp.eq.s32.totalorder %s23, 0
      %p316 = por %p314, %p315
      %p317 = scmp.ne.s32.totalorder %s309, %s311
      %p318 = scmp.eq.s32.totalorder %s28, 1
      %p319 = por %p317, %p318
      %p320 = scmp.ne.s32.totalorder %s311, %s312
      %p321 = scmp.eq.s32.totalorder %s28, 0
      %p322 = por %p320, %p321
      %p323 = scmp.ne.s32.totalorder %s311, %s312
      %p324 = scmp.eq.s32.totalorder %s29, 1
      %p325 = por %p323, %p324
      %p327 = scmp.ne.s32.totalorder %s312, %s326
      %p328 = scmp.eq.s32.totalorder %s29, 0
      %p329 = por %p327, %p328
      %s330 = ssub.s32 %s23, %s30
      %p331 = scmp.eq.s32.totalorder %s330, 0
      %s333 = sadd.s32 %s332, 1
      %s334 = scalar_select %p331, %s332, %s333
      %p337 = pneg %p331
      %p338 = scmp.eq.s32.totalorder %s23, 1
      %p339 = por %p337, %p338
      %p340 = scmp.ne.s32.totalorder %s332, %s335
      %p341 = scmp.eq.s32.totalorder %s23, 0
      %p342 = por %p340, %p341
      %p343 = scmp.ne.s32.totalorder %s332, %s335
      %p344 = scmp.eq.s32.totalorder %s28, 1
      %p345 = por %p343, %p344
      %p346 = scmp.ne.s32.totalorder %s335, %s336
      %p347 = scmp.eq.s32.totalorder %s28, 0
      %p348 = por %p346, %p347
      %p349 = scmp.ne.s32.totalorder %s335, %s336
      %p350 = scmp.eq.s32.totalorder %s29, 1
      %p351 = por %p349, %p350
      %p353 = scmp.ne.s32.totalorder %s336, %s352
      %p354 = scmp.eq.s32.totalorder %s29, 0
      %p355 = por %p353, %p354
      %p356 = scmp.le.s32.totalorder 1, %s23
      %p357 = scmp.lt.s32.totalorder %s23, 3
      %p358 = pnand %p356, %p357
      %p359 = pneg %p358
      // Predicated region
      $region9: #{tpu_custom_call.1} parent=5 // pred_check
        _
      $region10: #{tpu_custom_call.1} parent=5 // pred_check_branch
        %361 = sbr.rel (%p358) target = $region12
      $region11: #{tpu_custom_call.1} parent=5 // pred_region
        %s362 = ssub.s32 %s23, 1
        // Predicated region
        $region13: #{tpu_custom_call.1} parent=11 // pred_check
          %p363 = pneg %p70
        $region14: #{tpu_custom_call.1} parent=11 // pred_check_branch
          %365 = sbr.rel (%p363) target = $region16
        $region15: #{tpu_custom_call.1} parent=11 // pred_region
          _
        $region16: #{tpu_custom_call.1} parent=11 // pred_fallthru
          _
        // Predicated region
        $region17: #{tpu_custom_call.1} parent=11 // pred_check
          %p366 = pneg %p91
        $region18: #{tpu_custom_call.1} parent=11 // pred_check_branch
          %368 = sbr.rel (%p366) target = $region20
        $region19: #{tpu_custom_call.1} parent=11 // pred_region
          _
        $region20: #{tpu_custom_call.1} parent=11 // pred_fallthru
          _
        // Predicated region
        $region21: #{tpu_custom_call.1} parent=11 // pred_check
          %p369 = pneg %p112
        $region22: #{tpu_custom_call.1} parent=11 // pred_check_branch
          %371 = sbr.rel (%p369) target = $region24
        $region23: #{tpu_custom_call.1} parent=11 // pred_region
          _
        $region24: #{tpu_custom_call.1} parent=11 // pred_fallthru
          _
        // Predicated region
        $region25: #{tpu_custom_call.1} parent=11 // pred_check
          %p372 = pneg %p133
        $region26: #{tpu_custom_call.1} parent=11 // pred_check_branch
          %374 = sbr.rel (%p372) target = $region28
        $region27: #{tpu_custom_call.1} parent=11 // pred_region
          _
        $region28: #{tpu_custom_call.1} parent=11 // pred_fallthru
          _
        // Predicated region
        $region29: #{tpu_custom_call.1} parent=11 // pred_check
          %p375 = pneg %p154
        $region30: #{tpu_custom_call.1} parent=11 // pred_check_branch
          %377 = sbr.rel (%p375) target = $region32
        $region31: #{tpu_custom_call.1} parent=11 // pred_region
          _
        $region32: #{tpu_custom_call.1} parent=11 // pred_fallthru
          _
        // Predicated region
        $region33: #{tpu_custom_call.1} parent=11 // pred_check
          %p378 = pneg %p175
        $region34: #{tpu_custom_call.1} parent=11 // pred_check_branch
          %380 = sbr.rel (%p378) target = $region36
        $region35: #{tpu_custom_call.1} parent=11 // pred_region
          _
        $region36: #{tpu_custom_call.1} parent=11 // pred_fallthru
          _
        // Predicated region
        $region37: #{tpu_custom_call.1} parent=11 // pred_check
          %p381 = pneg %p196
        $region38: #{tpu_custom_call.1} parent=11 // pred_check_branch
          %383 = sbr.rel (%p381) target = $region40
        $region39: #{tpu_custom_call.1} parent=11 // pred_region
          _
        $region40: #{tpu_custom_call.1} parent=11 // pred_fallthru
          _
        // Predicated region
        $region41: #{tpu_custom_call.1} parent=11 // pred_check
          %p384 = pneg %p217
        $region42: #{tpu_custom_call.1} parent=11 // pred_check_branch
          %386 = sbr.rel (%p384) target = $region44
        $region43: #{tpu_custom_call.1} parent=11 // pred_region
          _
        $region44: #{tpu_custom_call.1} parent=11 // pred_fallthru
          _
        // Predicated region
        $region45: #{tpu_custom_call.1} parent=11 // pred_check
          %p387 = pneg %p238
        $region46: #{tpu_custom_call.1} parent=11 // pred_check_branch
          %389 = sbr.rel (%p387) target = $region48
        $region47: #{tpu_custom_call.1} parent=11 // pred_region
          _
        $region48: #{tpu_custom_call.1} parent=11 // pred_fallthru
          _
        // Predicated region
        $region49: #{tpu_custom_call.1} parent=11 // pred_check
          %p390 = pneg %p259
        $region50: #{tpu_custom_call.1} parent=11 // pred_check_branch
          %392 = sbr.rel (%p390) target = $region52
        $region51: #{tpu_custom_call.1} parent=11 // pred_region
          _
        $region52: #{tpu_custom_call.1} parent=11 // pred_fallthru
          _
        // Predicated region
        $region53: #{tpu_custom_call.1} parent=11 // pred_check
          %p393 = pneg %p280
        $region54: #{tpu_custom_call.1} parent=11 // pred_check_branch
          %395 = sbr.rel (%p393) target = $region56
        $region55: #{tpu_custom_call.1} parent=11 // pred_region
          _
        $region56: #{tpu_custom_call.1} parent=11 // pred_fallthru
          _
        // Predicated region
        $region57: #{tpu_custom_call.1} parent=11 // pred_check
          %p396 = pneg %p301
        $region58: #{tpu_custom_call.1} parent=11 // pred_check_branch
          %398 = sbr.rel (%p396) target = $region60
        $region59: #{tpu_custom_call.1} parent=11 // pred_region
          _
        $region60: #{tpu_custom_call.1} parent=11 // pred_fallthru
          _
        // Predicated region
        $region61: #{tpu_custom_call.1} parent=11 // pred_check
          %p399 = pneg %p322
        $region62: #{tpu_custom_call.1} parent=11 // pred_check_branch
          %401 = sbr.rel (%p399) target = $region64
        $region63: #{tpu_custom_call.1} parent=11 // pred_region
          _
        $region64: #{tpu_custom_call.1} parent=11 // pred_fallthru
          _
      $region12: #{tpu_custom_call.1} parent=5 // pred_fallthru
        _
      %p402 = scmp.lt.s32.totalorder %s23, 2
      // Predicated region
      $region65: #{tpu_custom_call.1} parent=5 // pred_check
        %p403 = pneg %p402
      $region66: #{tpu_custom_call.1} parent=5 // pred_check_branch
        %405 = sbr.rel (%p403) target = $region68
      $region67: #{tpu_custom_call.1} parent=5 // pred_region
        // Predicated region
        $region69: #{tpu_custom_call.1} parent=67 // pred_check
          %p406 = pneg %p43
        $region70: #{tpu_custom_call.1} parent=67 // pred_check_branch
          %408 = sbr.rel (%p406) target = $region72
        $region71: #{tpu_custom_call.1} parent=67 // pred_region
          %p409 = scmp.lt.s32.totalorder %s23, 1
          %s410 = scalar_select %p409, %s23, 1
          %s411 = smul.addr %s410, 8
          %s412 = scalar_lea.vmem %s0, %s411
        $region72: #{tpu_custom_call.1} parent=67 // pred_fallthru
          _
      $region68: #{tpu_custom_call.1} parent=5 // pred_fallthru
        _
      %p413 = scmp.le.s32.totalorder 1, %s23
      %p414 = scmp.lt.s32.totalorder %s23, 3
      %p415 = pnand %p413, %p414
      %p416 = pneg %p415
      // Predicated region
      $region73: #{tpu_custom_call.1} parent=5 // pred_check
        _
      $region74: #{tpu_custom_call.1} parent=5 // pred_check_branch
        %418 = sbr.rel (%p415) target = $region76
      $region75: #{tpu_custom_call.1} parent=5 // pred_region
        %s419 = ssub.s32 %s23, 1
        %p420 = scmp.lt.s32.totalorder %s28, 1
        %s421 = scalar_select %p420, %s28, 1
        %s422 = smul.addr %s421, 8
        %s423 = scalar_lea.vmem %s0, %s422
        %p424 = pneg %p49
        %p425 = pneg %p46
        %p426 = pneg %p70
        %p427 = pneg %p67
        %p428 = pneg %p91
        %p429 = pneg %p88
        %p430 = pneg %p112
        %p431 = pneg %p109
        %p432 = pneg %p133
        %p433 = pneg %p130
        %p434 = pneg %p154
        %p435 = pneg %p151
        %p436 = pneg %p175
        %p437 = pneg %p172
        %p438 = pneg %p196
        %p439 = pneg %p193
        %p440 = pneg %p217
        %p441 = pneg %p214
        %p442 = pneg %p238
        %p443 = pneg %p235
        %p444 = pneg %p259
        %p445 = pneg %p256
        %p446 = pneg %p280
        %p447 = pneg %p277
        %p448 = pneg %p301
        %p449 = pneg %p298
        %p450 = pneg %p322
        %p451 = pneg %p319
        %p452 = pneg %p348
        %p453 = pneg %p345
        %s454 = sand.u32 %s335, 1
        %s455 = scalar_lea.sflag [#allocation4], %s454
        %s456 = sand.u32 %s335, 1
        %s457 = smul.addr %s456, 8
        %s458 = scalar_lea.vmem [#allocation3], %s457
        %p459 = scmp.lt.s32.totalorder %s28, 1
        %s460 = scalar_select %p459, %s28, 1
        %s461 = smul.addr %s460, 8
        %s462 = scalar_lea.vmem %s0, %s461
        %v464 = vld [vmem:[%s462] sm:$0xff]
        %vm465 = vcmask 261120
        %v466 = vsel %vm465, %v464, 0.0
        %467 = vadd.xlane.f32.xlu0 %v466
        %v468 = vpop.xlane.xlu0 %467
        %v469 = vrcp.pop 32.0
        %v470 = vmul.f32 32.0, %v469
        %v471 = vsub.f32 1.0, %v470
        %v472 = vmul.f32 %v469, %v471
        %v473 = vadd.f32 %v469, %v472
        %vm474 = vweird.f32 %v469
        %v475 = vsel %vm474, %v469, %v473
        %v476 = vmul.f32 %v468, %v475
        %v477 = vsub.f32 %v464, %v476
        %v478 = vmul.f32 %v477, %v477
        %v479 = vsel %vm465, %v478, 0.0
        %480 = vadd.xlane.f32.xlu0 %v479
        %v481 = vpop.xlane.xlu0 %480
        %v482 = vmul.f32 %v481, %v475
        %v483 = vadd.f32 %v482, 1e-05
        %v484 = vrsqrt.pop %v483
        %v485 = vmul.f32 %v484, %v483
        %v486 = vmul.f32 %v485, %v484
        %v487 = vmul.f32 0.5, %v486
        %v488 = vsub.f32 1.5, %v487
        %v489 = vmul.f32 %v484, %v488
        %vm490 = vweird.f32 %v483
        %vm491 = vweird.f32 %v484
        %vm492 = vmor %vm490, %vm491
        %v493 = vsel %vm492, %v484, %v489
        %v494 = vmul.f32 %v477, %v493
        %v495 = vld [vmem:[%s2] sm:$0x1]
        %v497 = vperm.slane %v495, 0
        %v499 = vmul.f32 %v494, %v497
        %v500 = vld [vmem:[%s3] sm:$0x1]
        %v502 = vperm.slane %v500, 0
        %v504 = vadd.f32 %v499, %v502
        %v505 = vpack.c.bf16 %v504, %v504
        %v506 = vld [vmem:[%s4] sm:$0xf]
        %v507 = vld [vmem:[%s4 + $0x4] sm:$0xf]
        %v508 = vld [vmem:[%s4 + $0x8] sm:$0xf]
        %v509 = vld [vmem:[%s4 + $0xc] sm:$0xf]
        %v510 = vld [vmem:[%s5] sm:$0x1]
        %v512 = vperm.slane %v510, 0
        %v518 = vunpack.c.l.b16 %v506
        %v519 = vunpack.c.l.b16 %v507
        %v520 = vunpack.c.l.b16 %v508
        %v521 = vunpack.c.l.b16 %v509
        %v522 = vpack.c.b16 %v519, %v518
        %v523 = vpack.c.b16 %v521, %v520
        %v527 = vsel %vm465, %v505, 0
        %529 = vmatpush.bf16.msra.mxu0 0
        %530 = vmatpush.bf16.msra.mxu0 0
        %531 = vmatpush.bf16.msra.mxu0 0
        %532 = vmatpush.bf16.msra.mxu0 0
        %533 = vmatpush.bf16.msra.mxu0 0
        %534 = vmatpush.bf16.msra.mxu0 0
        %535 = vmatpush.bf16.msra.mxu0 %v523
        %536 = vmatpush.bf16.msra.mxu0 %v522
        %537 = vmatmul.bf16.gmra.mxu0 %v527
        %v538 = vpop.f32.mrf.mxu0
        %v539 = vadd.f32 %v512, %v538
        %v540 = vpop.f32.mrf.mxu0
        %541 = vdwg.mxu0
        %v542 = vpack.c.bf16 %v539, %v539
        %v543 = vld [vmem:[%s1] sm:$0xff]
        %v545 = vunpack.c.l.b16 %v542
        %v546 = vpack.c.b16 %v545, %v545
        %547 = vrot.lane.b32.xlu0 %v546, 96
        %v548 = vpop.permute.xlu0 %547
        %vm549 = vcmask 64512
        %v551 = vsel %vm549, %v542, 0
        %v554 = vsel %vm549, %v548, 0
        %556 = vmatpush.bf16.xpose.msra.mxu0 0
        %557 = vmatpush.bf16.xpose.msra.mxu0 0
        %558 = vmatpush.bf16.xpose.msra.mxu0 0
        %559 = vmatpush.bf16.xpose.msra.mxu0 0
        %560 = vmatpush.bf16.xpose.msra.mxu0 0
        %561 = vmatpush.bf16.xpose.msra.mxu0 0
        %562 = vmatpush.bf16.xpose.msra.mxu0 0
        %563 = vmatpush.bf16.xpose.msra.mxu0 %v554
        %564 = vmatmul.bf16.gmra.mxu0 %v551
        %v565 = vpop.f32.mrf.mxu0
        %v566 = vadd.f32 %v543, %v565
        %v567 = vpop.f32.mrf.mxu0
        %568 = vdwg.mxu0
        %v569 = vsel %vm549, %v566, -inf
        %570 = vmax.xlane.f32.xlu0 %v569
        %v571 = vpop.xlane.xlu0 %570
        %v572 = vsub.f32 %v566, %v571
        %v573 = vmul.f32 %v572, 1.442695
        %v574 = vpow.pop %v573
        %v575 = vsel %vm549, %v574, 0.0
        %576 = vadd.xlane.f32.xlu0 %v575
        %v577 = vpop.xlane.xlu0 %576
        %v578 = vrcp.pop %v577
        %v579 = vmul.f32 %v574, %v578
        %v580 = vpack.c.bf16 %v579, %v579
        %581 = vrot.lane.b32.xlu0 %v546, 64
        %v582 = vpop.permute.xlu0 %581
        %v584 = vsel %vm549, %v580, 0
        %vm586 = vcmask 1043456
        %v588 = vsel %vm586, %v582, 0
        %590 = vmatpush.bf16.msra.mxu0 0
        %591 = vmatpush.bf16.msra.mxu0 0
        %592 = vmatpush.bf16.msra.mxu0 0
        %593 = vmatpush.bf16.msra.mxu0 0
        %594 = vmatpush.bf16.msra.mxu0 0
        %595 = vmatpush.bf16.msra.mxu0 0
        %596 = vmatpush.bf16.msra.mxu0 0
        %597 = vmatpush.bf16.msra.mxu0 %v588
        %598 = vmatmul.bf16.gmra.mxu0 %v584
        %v599 = vpop.f32.mrf.mxu0
        %v600 = vadd.f32 0.0, %v599
        %v601 = vpop.f32.mrf.mxu0
        %602 = vdwg.mxu0
        %v603 = vpack.c.bf16 %v600, %v600
        %vm604 = vcmask 60416
        %605 = vst.msk [vmem:[#allocation2] sm:$0xf] %vm604, %v603
        %606 = vrot.lane.b32.xlu0 %v546, 120
        %v607 = vpop.permute.xlu0 %606
        %608 = vrot.lane.b32.xlu0 %v546, 88
        %v609 = vpop.permute.xlu0 %608
        %v611 = vsel %vm549, %v607, 0
        %v614 = vsel %vm549, %v609, 0
        %616 = vmatpush.bf16.xpose.msra.mxu0 0
        %617 = vmatpush.bf16.xpose.msra.mxu0 0
        %618 = vmatpush.bf16.xpose.msra.mxu0 0
        %619 = vmatpush.bf16.xpose.msra.mxu0 0
        %620 = vmatpush.bf16.xpose.msra.mxu0 0
        %621 = vmatpush.bf16.xpose.msra.mxu0 0
        %622 = vmatpush.bf16.xpose.msra.mxu0 0
        %623 = vmatpush.bf16.xpose.msra.mxu0 %v614
        %624 = vmatmul.bf16.gmra.mxu0 %v611
        %v625 = vpop.f32.mrf.mxu0
        %v626 = vadd.f32 %v543, %v625
        %v627 = vpop.f32.mrf.mxu0
        %628 = vdwg.mxu0
        %v629 = vsel %vm549, %v626, -inf
        %630 = vmax.xlane.f32.xlu0 %v629
        %v631 = vpop.xlane.xlu0 %630
        %v632 = vsub.f32 %v626, %v631
        %v633 = vmul.f32 %v632, 1.442695
        %v634 = vpow.pop %v633
        %v635 = vsel %vm549, %v634, 0.0
        %636 = vadd.xlane.f32.xlu0 %v635
        %v637 = vpop.xlane.xlu0 %636
        %v638 = vrcp.pop %v637
        %v639 = vmul.f32 %v634, %v638
        %v640 = vpack.c.bf16 %v639, %v639
        %641 = vrot.lane.b32.xlu0 %v546, 56
        %v642 = vpop.permute.xlu0 %641
        %v644 = vsel %vm549, %v640, 0
        %v647 = vsel %vm586, %v642, 0
        %649 = vmatpush.bf16.msra.mxu0 0
        %650 = vmatpush.bf16.msra.mxu0 0
        %651 = vmatpush.bf16.msra.mxu0 0
        %652 = vmatpush.bf16.msra.mxu0 0
        %653 = vmatpush.bf16.msra.mxu0 0
        %654 = vmatpush.bf16.msra.mxu0 0
        %655 = vmatpush.bf16.msra.mxu0 0
        %656 = vmatpush.bf16.msra.mxu0 %v647
        %657 = vmatmul.bf16.gmra.mxu0 %v644
        %v658 = vpop.f32.mrf.mxu0
        %v659 = vadd.f32 0.0, %v658
        %v660 = vpop.f32.mrf.mxu0
        %661 = vdwg.mxu0
        %v662 = vpack.c.bf16 %v659, %v659
        %664 = vrot.lane.b32.xlu0 %v662, 8
        %v665 = vpop.permute.xlu0 %664
        %vm667 = vcmask 126016
        %668 = vst.msk [vmem:[#allocation2] sm:$0xf] %vm667, %v665
        %669 = vrot.lane.b32.xlu0 %v546, 112
        %v670 = vpop.permute.xlu0 %669
        %671 = vrot.lane.b32.xlu0 %v546, 80
        %v672 = vpop.permute.xlu0 %671
        %v674 = vsel %vm549, %v670, 0
        %v677 = vsel %vm549, %v672, 0
        %679 = vmatpush.bf16.xpose.msra.mxu0 0
        %680 = vmatpush.bf16.xpose.msra.mxu0 0
        %681 = vmatpush.bf16.xpose.msra.mxu0 0
        %682 = vmatpush.bf16.xpose.msra.mxu0 0
        %683 = vmatpush.bf16.xpose.msra.mxu0 0
        %684 = vmatpush.bf16.xpose.msra.mxu0 0
        %685 = vmatpush.bf16.xpose.msra.mxu0 0
        %686 = vmatpush.bf16.xpose.msra.mxu0 %v677
        %687 = vmatmul.bf16.gmra.mxu0 %v674
        %v688 = vpop.f32.mrf.mxu0
        %v689 = vadd.f32 %v543, %v688
        %v690 = vpop.f32.mrf.mxu0
        %691 = vdwg.mxu0
        %v692 = vsel %vm549, %v689, -inf
        %693 = vmax.xlane.f32.xlu0 %v692
        %v694 = vpop.xlane.xlu0 %693
        %v695 = vsub.f32 %v689, %v694
        %v696 = vmul.f32 %v695, 1.442695
        %v697 = vpow.pop %v696
        %v698 = vsel %vm549, %v697, 0.0
        %699 = vadd.xlane.f32.xlu0 %v698
        %v700 = vpop.xlane.xlu0 %699
        %v701 = vrcp.pop %v700
        %v702 = vmul.f32 %v697, %v701
        %v703 = vpack.c.bf16 %v702, %v702
        %704 = vrot.lane.b32.xlu0 %v546, 48
        %v705 = vpop.permute.xlu0 %704
        %v707 = vsel %vm549, %v703, 0
        %v710 = vsel %vm586, %v705, 0
        %712 = vmatpush.bf16.msra.mxu0 0
        %713 = vmatpush.bf16.msra.mxu0 0
        %714 = vmatpush.bf16.msra.mxu0 0
        %715 = vmatpush.bf16.msra.mxu0 0
        %716 = vmatpush.bf16.msra.mxu0 0
        %717 = vmatpush.bf16.msra.mxu0 0
        %718 = vmatpush.bf16.msra.mxu0 0
        %719 = vmatpush.bf16.msra.mxu0 %v710
        %720 = vmatmul.bf16.gmra.mxu0 %v707
        %v721 = vpop.f32.mrf.mxu0
        %v722 = vadd.f32 0.0, %v721
        %v723 = vpop.f32.mrf.mxu0
        %724 = vdwg.mxu0
        %v725 = vpack.c.bf16 %v722, %v722
        %727 = vrot.lane.b32.xlu0 %v725, 16
        %v728 = vpop.permute.xlu0 %727
        %vm730 = vcmask 191616
        %731 = vst.msk [vmem:[#allocation2] sm:$0xf] %vm730, %v728
        %732 = vrot.lane.b32.xlu0 %v546, 104
        %v733 = vpop.permute.xlu0 %732
        %734 = vrot.lane.b32.xlu0 %v546, 72
        %v735 = vpop.permute.xlu0 %734
        %v737 = vsel %vm549, %v733, 0
        %v740 = vsel %vm549, %v735, 0
        %742 = vmatpush.bf16.xpose.msra.mxu0 0
        %743 = vmatpush.bf16.xpose.msra.mxu0 0
        %744 = vmatpush.bf16.xpose.msra.mxu0 0
        %745 = vmatpush.bf16.xpose.msra.mxu0 0
        %746 = vmatpush.bf16.xpose.msra.mxu0 0
        %747 = vmatpush.bf16.xpose.msra.mxu0 0
        %748 = vmatpush.bf16.xpose.msra.mxu0 0
        %749 = vmatpush.bf16.xpose.msra.mxu0 %v740
        %750 = vmatmul.bf16.gmra.mxu0 %v737
        %v751 = vpop.f32.mrf.mxu0
        %v752 = vadd.f32 %v543, %v751
        %v753 = vpop.f32.mrf.mxu0
        %754 = vdwg.mxu0
        %v755 = vsel %vm549, %v752, -inf
        %756 = vmax.xlane.f32.xlu0 %v755
        %v757 = vpop.xlane.xlu0 %756
        %v758 = vsub.f32 %v752, %v757
        %v759 = vmul.f32 %v758, 1.442695
        %v760 = vpow.pop %v759
        %v761 = vsel %vm549, %v760, 0.0
        %762 = vadd.xlane.f32.xlu0 %v761
        %v763 = vpop.xlane.xlu0 %762
        %v764 = vrcp.pop %v763
        %v765 = vmul.f32 %v760, %v764
        %v766 = vpack.c.bf16 %v765, %v765
        %767 = vrot.lane.b32.xlu0 %v546, 40
        %v768 = vpop.permute.xlu0 %767
        %v770 = vsel %vm549, %v766, 0
        %v773 = vsel %vm586, %v768, 0
        %775 = vmatpush.bf16.msra.mxu0 0
        %776 = vmatpush.bf16.msra.mxu0 0
        %777 = vmatpush.bf16.msra.mxu0 0
        %778 = vmatpush.bf16.msra.mxu0 0
        %779 = vmatpush.bf16.msra.mxu0 0
        %780 = vmatpush.bf16.msra.mxu0 0
        %781 = vmatpush.bf16.msra.mxu0 0
        %782 = vmatpush.bf16.msra.mxu0 %v773
        %783 = vmatmul.bf16.gmra.mxu0 %v770
        %v784 = vpop.f32.mrf.mxu0
        %v785 = vadd.f32 0.0, %v784
        %v786 = vpop.f32.mrf.mxu0
        %787 = vdwg.mxu0
        %v788 = vpack.c.bf16 %v785, %v785
        %790 = vrot.lane.b32.xlu0 %v788, 24
        %v791 = vpop.permute.xlu0 %790
        %vm793 = vcmask 257216
        %794 = vst.msk [vmem:[#allocation2] sm:$0xf] %vm793, %v791
        %v795 = vld [vmem:[#allocation2] sm:$0xf]
        %v796 = vld [vmem:[%s6] sm:$0xf]
        %v797 = vld [vmem:[%s6 + $0x4] sm:$0xf]
        %v798 = vld [vmem:[%s6 + $0x8] sm:$0xf]
        %v799 = vld [vmem:[%s6 + $0xc] sm:$0xf]
        %v800 = vld [vmem:[%s7] sm:$0x1]
        %v802 = vperm.slane %v800, 0
        %v808 = vunpack.c.l.b16 %v796
        %v809 = vunpack.c.l.b16 %v797
        %v810 = vunpack.c.l.b16 %v798
        %v811 = vunpack.c.l.b16 %v799
        %v812 = vpack.c.b16 %v809, %v808
        %v813 = vpack.c.b16 %v811, %v810
        %v817 = vsel %vm465, %v795, 0
        %819 = vmatpush.bf16.msra.mxu0 0
        %820 = vmatpush.bf16.msra.mxu0 0
        %821 = vmatpush.bf16.msra.mxu0 0
        %822 = vmatpush.bf16.msra.mxu0 0
        %823 = vmatpush.bf16.msra.mxu0 0
        %824 = vmatpush.bf16.msra.mxu0 0
        %825 = vmatpush.bf16.msra.mxu0 %v813
        %826 = vmatpush.bf16.msra.mxu0 %v812
        %827 = vmatmul.bf16.gmra.mxu0 %v817
        %v828 = vpop.f32.mrf.mxu0
        %v829 = vadd.f32 %v802, %v828
        %v830 = vpop.f32.mrf.mxu0
        %831 = vdwg.mxu0
        %v832 = vadd.f32 %v829, %v464
        %v833 = vsel %vm465, %v832, 0.0
        %834 = vadd.xlane.f32.xlu0 %v833
        %v835 = vpop.xlane.xlu0 %834
        %v836 = vmul.f32 %v835, %v475
        %v837 = vsub.f32 %v832, %v836
        %v838 = vmul.f32 %v837, %v837
        %v839 = vsel %vm465, %v838, 0.0
        %840 = vadd.xlane.f32.xlu0 %v839
        %v841 = vpop.xlane.xlu0 %840
        %v842 = vmul.f32 %v841, %v475
        %v843 = vadd.f32 %v842, 1e-05
        %v844 = vrsqrt.pop %v843
        %v845 = vmul.f32 %v844, %v843
        %v846 = vmul.f32 %v845, %v844
        %v847 = vmul.f32 0.5, %v846
        %v848 = vsub.f32 1.5, %v847
        %v849 = vmul.f32 %v844, %v848
        %vm850 = vweird.f32 %v843
        %vm851 = vweird.f32 %v844
        %vm852 = vmor %vm850, %vm851
        %v853 = vsel %vm852, %v844, %v849
        %v854 = vmul.f32 %v837, %v853
        %v855 = vld [vmem:[%s8] sm:$0x1]
        %v857 = vperm.slane %v855, 0
        %v859 = vmul.f32 %v854, %v857
        %v860 = vld [vmem:[%s9] sm:$0x1]
        %v862 = vperm.slane %v860, 0
        %v864 = vadd.f32 %v859, %v862
        %v865 = vpack.c.bf16 %v864, %v864
        %v866 = vld [vmem:[%s10] sm:$0xf]
        %v867 = vld [vmem:[%s10 + $0x4] sm:$0xf]
        %v868 = vld [vmem:[%s10 + $0x8] sm:$0xf]
        %v869 = vld [vmem:[%s10 + $0xc] sm:$0xf]
        %v870 = vld [vmem:[%s11] sm:$0x1]
        %v872 = vperm.slane %v870, 0
        %v878 = vunpack.c.l.b16 %v866
        %v879 = vunpack.c.l.b16 %v867
        %v880 = vunpack.c.l.b16 %v868
        %v881 = vunpack.c.l.b16 %v869
        %v882 = vpack.c.b16 %v879, %v878
        %v883 = vpack.c.b16 %v881, %v880
        %v887 = vsel %vm465, %v865, 0
        %889 = vmatpush.bf16.msra.mxu0 0
        %890 = vmatpush.bf16.msra.mxu0 0
        %891 = vmatpush.bf16.msra.mxu0 0
        %892 = vmatpush.bf16.msra.mxu0 0
        %893 = vmatpush.bf16.msra.mxu0 0
        %894 = vmatpush.bf16.msra.mxu0 0
        %895 = vmatpush.bf16.msra.mxu0 %v883
        %896 = vmatpush.bf16.msra.mxu0 %v882
        %897 = vmatmul.bf16.gmra.mxu0 %v887
        %v898 = vpop.f32.mrf.mxu0
        %v899 = vadd.f32 %v872, %v898
        %v900 = vpop.f32.mrf.mxu0
        %901 = vdwg.mxu0
        %v902 = vmul.f32 %v899, 1.702
        %v903 = vxor.u32 %v902, 2147483648
        %v904 = vmul.f32 %v903, 1.442695
        %v905 = vpow.pop %v904
        %v906 = vadd.f32 %v905, 1.0
        %v907 = vrcp.pop %v906
        %v908 = vmul.f32 %v906, %v907
        %v909 = vsub.f32 1.0, %v908
        %v910 = vmul.f32 %v907, %v909
        %v911 = vadd.f32 %v907, %v910
        %vm912 = vweird.f32 %v906
        %vm913 = vweird.f32 %v907
        %vm914 = vmor %vm912, %vm913
        %v915 = vsel %vm914, %v907, %v911
        %v916 = vand.u32 2147483647, %v906
        %vm917 = vcmp.eq.f32.partialorder %v916, 8.507059e+37
        %v918 = vand.u32 %v906, 2147483648
        %v919 = vor.u32 1.1754944e-38, %v918
        %v920 = vsel %vm917, %v919, %v915
        %v921 = vmul.f32 1.0, %v920
        %v922 = vmul.f32 %v899, %v921
        %v923 = vpack.c.bf16 %v922, %v922
        %v924 = vld [vmem:[%s12] sm:$0xf]
        %v925 = vld [vmem:[%s12 + $0x4] sm:$0xf]
        %v926 = vld [vmem:[%s12 + $0x8] sm:$0xf]
        %v927 = vld [vmem:[%s12 + $0xc] sm:$0xf]
        %v928 = vld [vmem:[%s12 + $0x10] sm:$0xf]
        %v929 = vld [vmem:[%s12 + $0x14] sm:$0xf]
        %v930 = vld [vmem:[%s12 + $0x18] sm:$0xf]
        %v931 = vld [vmem:[%s12 + $0x1c] sm:$0xf]
        %v932 = vld [vmem:[%s12 + $0x20] sm:$0xf]
        %v933 = vld [vmem:[%s12 + $0x24] sm:$0xf]
        %v934 = vld [vmem:[%s12 + $0x28] sm:$0xf]
        %v935 = vld [vmem:[%s12 + $0x2c] sm:$0xf]
        %v936 = vld [vmem:[%s12 + $0x30] sm:$0xf]
        %v937 = vld [vmem:[%s12 + $0x34] sm:$0xf]
        %v938 = vld [vmem:[%s12 + $0x38] sm:$0xf]
        %v939 = vld [vmem:[%s12 + $0x3c] sm:$0xf]
        %v940 = vld [vmem:[%s13] sm:$0x1]
        %v942 = vperm.slane %v940, 0
        %v960 = vunpack.c.l.b16 %v924
        %v961 = vunpack.c.l.b16 %v925
        %v962 = vunpack.c.l.b16 %v926
        %v963 = vunpack.c.l.b16 %v927
        %v964 = vunpack.c.l.b16 %v928
        %v965 = vunpack.c.l.b16 %v929
        %v966 = vunpack.c.l.b16 %v930
        %v967 = vunpack.c.l.b16 %v931
        %v968 = vunpack.c.l.b16 %v932
        %v969 = vunpack.c.l.b16 %v933
        %v970 = vunpack.c.l.b16 %v934
        %v971 = vunpack.c.l.b16 %v935
        %v972 = vunpack.c.l.b16 %v936
        %v973 = vunpack.c.l.b16 %v937
        %v974 = vunpack.c.l.b16 %v938
        %v975 = vunpack.c.l.b16 %v939
        %v976 = vpack.c.b16 %v961, %v960
        %v977 = vpack.c.b16 %v963, %v962
        %v978 = vpack.c.b16 %v965, %v964
        %v979 = vpack.c.b16 %v967, %v966
        %v980 = vpack.c.b16 %v969, %v968
        %v981 = vpack.c.b16 %v971, %v970
        %v982 = vpack.c.b16 %v973, %v972
        %v983 = vpack.c.b16 %v975, %v974
        %992 = vmatpush.bf16.msra.mxu0 %v983
        %993 = vmatpush.bf16.msra.mxu0 %v982
        %994 = vmatpush.bf16.msra.mxu0 %v981
        %995 = vmatpush.bf16.msra.mxu0 %v980
        %996 = vmatpush.bf16.msra.mxu0 %v979
        %997 = vmatpush.bf16.msra.mxu0 %v978
        %998 = vmatpush.bf16.msra.mxu0 %v977
        %999 = vmatpush.bf16.msra.mxu0 %v976
        %1000 = vmatmul.bf16.gmra.mxu0 %v923
        %v1001 = vpop.f32.mrf.mxu0
        %v1002 = vadd.f32 %v942, %v1001
        %v1003 = vpop.f32.mrf.mxu0
        %1004 = vdwg.mxu0
        %v1005 = vadd.f32 %v1002, %v832
        %1006 = vst.msk [vmem:[%s458] sm:$0xff] %vm465, %v1005
        %s1007 = sand.u32 %s335, 1
        %s1008 = scalar_lea.sflag [#allocation4], %s1007
        %s1009 = sand.u32 %s335, 1
        %s1010 = smul.addr %s1009, 8
        %s1011 = scalar_lea.vmem [#allocation3], %s1010
        // Predicated region
        $region77: #{tpu_custom_call.1} parent=75 // pred_check
          %p1012 = pneg %p345
        $region78: #{tpu_custom_call.1} parent=75 // pred_check_branch
          %1014 = sbr.rel (%p1012) target = $region80
        $region79: #{tpu_custom_call.1} parent=75 // pred_region
          %1016 = vsyncadd %s1008, 0
          %s1017 = smul.addr %s28, 8
          %s1018 = scalar_lea.hbm %s14, %s1017
          %s1020 = sshll.u32 %s1011, 4
          %s1021 = int_to_ptr.vmem [resolvable:$true] %s1020
          %s1022 = sshll.u32 %s1018, 4
          %s1023 = int_to_ptr.hbm [resolvable:$true] %s1022
          %1025 = dma.vmem_to_hbm [thread:$0]  %s1021, 128, %s1023, %s1008
        $region80: #{tpu_custom_call.1} parent=75 // pred_fallthru
          _
      $region76: #{tpu_custom_call.1} parent=5 // pred_fallthru
        _
      %p1026 = scmp.le.s32.totalorder 2, %s23
      // Predicated region
      $region81: #{tpu_custom_call.1} parent=5 // pred_check
        %p1027 = pneg %p1026
      $region82: #{tpu_custom_call.1} parent=5 // pred_check_branch
        %1029 = sbr.rel (%p1027) target = $region84
      $region83: #{tpu_custom_call.1} parent=5 // pred_region
        %s1030 = ssub.s32 %s23, 2
        // Predicated region
        $region85: #{tpu_custom_call.1} parent=83 // pred_check
          %p1031 = pneg %p351
        $region86: #{tpu_custom_call.1} parent=83 // pred_check_branch
          %1033 = sbr.rel (%p1031) target = $region88
        $region87: #{tpu_custom_call.1} parent=83 // pred_region
          %s1034 = sand.u32 %s336, 1
          %s1035 = scalar_lea.sflag [#allocation4], %s1034
          %s1036 = sand.u32 %s336, 1
          %s1037 = smul.addr %s1036, 8
          %s1038 = scalar_lea.vmem [#allocation3], %s1037
          %1040 = dma.done %s1035, 128
        $region88: #{tpu_custom_call.1} parent=83 // pred_fallthru
          _
      $region84: #{tpu_custom_call.1} parent=5 // pred_fallthru
        _
    $region6: #{tpu_custom_call.1} parent=1 // loop_footer
      %s27 = sadd.s32 1, %s23
    $region7: #{tpu_custom_call.1} parent=1 // loop_footer_branch
      %22 = sbr.rel target = $region3
    $region8: #{tpu_custom_call.1} parent=1 // loop_exit
      _
    %1041 = vsyncpa [#allocation4], 1
    %s1042 = scalar_lea.sflag [#allocation4], 1
    %1043 = vsyncpa %s1042, 1

// kernel: tpu_custom_call.1
$region0: #{tpu_custom_call.1}
  #allocation0 [shape = 'u32[]', space=smem, size = 0x4, offset = 0x4, fixed_abs, tag = 'smem constant byte address 0x4 - core index']
  #allocation1 [shape = 'u32[72,128]{1,0:T(1,128)}', space=vmem, size = 0x9000, scoped, tag = 'internal scratch']
  #allocation2 [shape = 'bf16[8,32]{1,0:T(8,128)(2,1)}', space=vmem, size = 0x800, scoped, tag = 'scratch operand']
  %s0 = inlined_call_operand.vmem [shape: f32[2,8,32], index: 0, kind: input, shape index: {}]
  %s1 = inlined_call_operand.vmem [shape: f32[8,8], index: 1, kind: input, shape index: {}]
  %s2 = inlined_call_operand.vmem [shape: f32[1,32], index: 2, kind: input, shape index: {}]
  %s3 = inlined_call_operand.vmem [shape: f32[1,32], index: 3, kind: input, shape index: {}]
  %s4 = inlined_call_operand.vmem [shape: bf16[32,96], index: 4, kind: input, shape index: {}]
  %s5 = inlined_call_operand.vmem [shape: f32[1,96], index: 5, kind: input, shape index: {}]
  %s6 = inlined_call_operand.vmem [shape: bf16[32,32], index: 6, kind: input, shape index: {}]
  %s7 = inlined_call_operand.vmem [shape: f32[1,32], index: 7, kind: input, shape index: {}]
  %s8 = inlined_call_operand.vmem [shape: f32[1,32], index: 8, kind: input, shape index: {}]
  %s9 = inlined_call_operand.vmem [shape: f32[1,32], index: 9, kind: input, shape index: {}]
  %s10 = inlined_call_operand.vmem [shape: bf16[1,32,128], index: 10, kind: input, shape index: {}]
  %s11 = inlined_call_operand.vmem [shape: f32[1,1,128], index: 11, kind: input, shape index: {}]
  %s12 = inlined_call_operand.vmem [shape: bf16[1,128,32], index: 12, kind: input, shape index: {}]
  %s13 = inlined_call_operand.vmem [shape: f32[1,32], index: 13, kind: input, shape index: {}]
  %s14 = inlined_call_operand.hbm [shape: f32[2,8,32], index: 14, kind: output, shape index: {}]
  %s15 = sld [smem:[#allocation0]]
  $region89: #{tpu_custom_call.1} parent=0
    _
  %s17 = ssub.s32 1, %s15
  %s18 = scalar_select 0, %s17, %s15
  $region1: #{tpu_custom_call.1} parent=0
    #allocation3 [shape = 'u8[8192]{0}', space=vmem, size = 0x2000, scoped, tag = 'output window, operand 0']
    #allocation4 [shape = 's32[2]{0}', space=sflag, size = 0x8, scoped, tag = 'scoped memory for tpu_custom_call.1']
    %19 = vsyncpa [#allocation4], 0
    %s20 = scalar_lea.sflag [#allocation4], 1
    %21 = vsyncpa %s20, 0
    loop: start=0, step=1, limit=4
    $region2: #{tpu_custom_call.1} parent=1 // loop_pre_header
      _
    $region3: #{tpu_custom_call.1} parent=1 // loop_header
      %s23 = sphi 0, %s27
      %p24 = scmp.ge.s32.totalorder %s23, 4
      %s33 = sphi 0, %s35
      %s36 = sphi 0, %s33
      %s37 = sphi 0, %s36
      %s53 = sphi 0, %s37
      %s57 = sphi 0, %s57
      %s59 = sphi 0, %s57
      %s60 = sphi 0, %s59
      %s74 = sphi 0, %s60
      %s78 = sphi 0, %s78
      %s80 = sphi 0, %s78
      %s81 = sphi 0, %s80
      %s95 = sphi 0, %s81
      %s99 = sphi 0, %s99
      %s101 = sphi 0, %s99
      %s102 = sphi 0, %s101
      %s116 = sphi 0, %s102
      %s120 = sphi 0, %s120
      %s122 = sphi 0, %s120
      %s123 = sphi 0, %s122
      %s137 = sphi 0, %s123
      %s141 = sphi 0, %s141
      %s143 = sphi 0, %s141
      %s144 = sphi 0, %s143
      %s158 = sphi 0, %s144
      %s162 = sphi 0, %s162
      %s164 = sphi 0, %s162
      %s165 = sphi 0, %s164
      %s179 = sphi 0, %s165
      %s183 = sphi 0, %s183
      %s185 = sphi 0, %s183
      %s186 = sphi 0, %s185
      %s200 = sphi 0, %s186
      %s204 = sphi 0, %s204
      %s206 = sphi 0, %s204
      %s207 = sphi 0, %s206
      %s221 = sphi 0, %s207
      %s225 = sphi 0, %s225
      %s227 = sphi 0, %s225
      %s228 = sphi 0, %s227
      %s242 = sphi 0, %s228
      %s246 = sphi 0, %s246
      %s248 = sphi 0, %s246
      %s249 = sphi 0, %s248
      %s263 = sphi 0, %s249
      %s267 = sphi 0, %s267
      %s269 = sphi 0, %s267
      %s270 = sphi 0, %s269
      %s284 = sphi 0, %s270
      %s288 = sphi 0, %s288
      %s290 = sphi 0, %s288
      %s291 = sphi 0, %s290
      %s305 = sphi 0, %s291
      %s309 = sphi 0, %s309
      %s311 = sphi 0, %s309
      %s312 = sphi 0, %s311
      %s326 = sphi 0, %s312
      %s332 = sphi 0, %s334
      %s335 = sphi 0, %s332
      %s336 = sphi 0, %s335
      %s352 = sphi 0, %s336
    $region4: #{tpu_custom_call.1} parent=1 // loop_header_branch
      %26 = sbr.rel (%p24) target = $region8
    $region5: #{tpu_custom_call.1} parent=1 // loop_body
      %s28 = ssub.s32 %s23, 1
      %s29 = ssub.s32 %s23, 2
      %s30 = sadd.s32 %s23, 1
      %s31 = ssub.s32 %s23, %s30
      %p32 = scmp.eq.s32.totalorder %s31, 0
      %s34 = sadd.s32 %s33, 1
      %s35 = scalar_select %p32, %s33, %s34
      %p38 = pneg %p32
      %p39 = scmp.eq.s32.totalorder %s23, 1
      %p40 = por %p38, %p39
      %p41 = scmp.ne.s32.totalorder %s33, %s36
      %p42 = scmp.eq.s32.totalorder %s23, 0
      %p43 = por %p41, %p42
      %p44 = scmp.ne.s32.totalorder %s33, %s36
      %p45 = scmp.eq.s32.totalorder %s28, 1
      %p46 = por %p44, %p45
      %p47 = scmp.ne.s32.totalorder %s36, %s37
      %p48 = scmp.eq.s32.totalorder %s28, 0
      %p49 = por %p47, %p48
      %p50 = scmp.ne.s32.totalorder %s36, %s37
      %p51 = scmp.eq.s32.totalorder %s29, 1
      %p52 = por %p50, %p51
      %p54 = scmp.ne.s32.totalorder %s37, %s53
      %p55 = scmp.eq.s32.totalorder %s29, 0
      %p56 = por %p54, %p55
      %s58 = sadd.s32 %s57, 1
      %p61 = scmp.eq.s32.totalorder %s23, 1
      %p62 = scmp.ne.s32.totalorder %s57, %s59
      %p63 = scmp.eq.s32.totalorder %s23, 0
      %p64 = por %p62, %p63
      %p65 = scmp.ne.s32.totalorder %s57, %s59
      %p66 = scmp.eq.s32.totalorder %s28, 1
      %p67 = por %p65, %p66
      %p68 = scmp.ne.s32.totalorder %s59, %s60
      %p69 = scmp.eq.s32.totalorder %s28, 0
      %p70 = por %p68, %p69
      %p71 = scmp.ne.s32.totalorder %s59, %s60
      %p72 = scmp.eq.s32.totalorder %s29, 1
      %p73 = por %p71, %p72
      %p75 = scmp.ne.s32.totalorder %s60, %s74
      %p76 = scmp.eq.s32.totalorder %s29, 0
      %p77 = por %p75, %p76
      %s79 = sadd.s32 %s78, 1
      %p82 = scmp.eq.s32.totalorder %s23, 1
      %p83 = scmp.ne.s32.totalorder %s78, %s80
      %p84 = scmp.eq.s32.totalorder %s23, 0
      %p85 = por %p83, %p84
      %p86 = scmp.ne.s32.totalorder %s78, %s80
      %p87 = scmp.eq.s32.totalorder %s28, 1
      %p88 = por %p86, %p87
      %p89 = scmp.ne.s32.totalorder %s80, %s81
      %p90 = scmp.eq.s32.totalorder %s28, 0
      %p91 = por %p89, %p90
      %p92 = scmp.ne.s32.totalorder %s80, %s81
      %p93 = scmp.eq.s32.totalorder %s29, 1
      %p94 = por %p92, %p93
      %p96 = scmp.ne.s32.totalorder %s81, %s95
      %p97 = scmp.eq.s32.totalorder %s29, 0
      %p98 = por %p96, %p97
      %s100 = sadd.s32 %s99, 1
      %p103 = scmp.eq.s32.totalorder %s23, 1
      %p104 = scmp.ne.s32.totalorder %s99, %s101
      %p105 = scmp.eq.s32.totalorder %s23, 0
      %p106 = por %p104, %p105
      %p107 = scmp.ne.s32.totalorder %s99, %s101
      %p108 = scmp.eq.s32.totalorder %s28, 1
      %p109 = por %p107, %p108
      %p110 = scmp.ne.s32.totalorder %s101, %s102
      %p111 = scmp.eq.s32.totalorder %s28, 0
      %p112 = por %p110, %p111
      %p113 = scmp.ne.s32.totalorder %s101, %s102
      %p114 = scmp.eq.s32.totalorder %s29, 1
      %p115 = por %p113, %p114
      %p117 = scmp.ne.s32.totalorder %s102, %s116
      %p118 = scmp.eq.s32.totalorder %s29, 0
      %p119 = por %p117, %p118
      %s121 = sadd.s32 %s120, 1
      %p124 = scmp.eq.s32.totalorder %s23, 1
      %p125 = scmp.ne.s32.totalorder %s120, %s122
      %p126 = scmp.eq.s32.totalorder %s23, 0
      %p127 = por %p125, %p126
      %p128 = scmp.ne.s32.totalorder %s120, %s122
      %p129 = scmp.eq.s32.totalorder %s28, 1
      %p130 = por %p128, %p129
      %p131 = scmp.ne.s32.totalorder %s122, %s123
      %p132 = scmp.eq.s32.totalorder %s28, 0
      %p133 = por %p131, %p132
      %p134 = scmp.ne.s32.totalorder %s122, %s123
      %p135 = scmp.eq.s32.totalorder %s29, 1
      %p136 = por %p134, %p135
      %p138 = scmp.ne.s32.totalorder %s123, %s137
      %p139 = scmp.eq.s32.totalorder %s29, 0
      %p140 = por %p138, %p139
      %s142 = sadd.s32 %s141, 1
      %p145 = scmp.eq.s32.totalorder %s23, 1
      %p146 = scmp.ne.s32.totalorder %s141, %s143
      %p147 = scmp.eq.s32.totalorder %s23, 0
      %p148 = por %p146, %p147
      %p149 = scmp.ne.s32.totalorder %s141, %s143
      %p150 = scmp.eq.s32.totalorder %s28, 1
      %p151 = por %p149, %p150
      %p152 = scmp.ne.s32.totalorder %s143, %s144
      %p153 = scmp.eq.s32.totalorder %s28, 0
      %p154 = por %p152, %p153
      %p155 = scmp.ne.s32.totalorder %s143, %s144
      %p156 = scmp.eq.s32.totalorder %s29, 1
      %p157 = por %p155, %p156
      %p159 = scmp.ne.s32.totalorder %s144, %s158
      %p160 = scmp.eq.s32.totalorder %s29, 0
      %p161 = por %p159, %p160
      %s163 = sadd.s32 %s162, 1
      %p166 = scmp.eq.s32.totalorder %s23, 1
      %p167 = scmp.ne.s32.totalorder %s162, %s164
      %p168 = scmp.eq.s32.totalorder %s23, 0
      %p169 = por %p167, %p168
      %p170 = scmp.ne.s32.totalorder %s162, %s164
      %p171 = scmp.eq.s32.totalorder %s28, 1
      %p172 = por %p170, %p171
      %p173 = scmp.ne.s32.totalorder %s164, %s165
      %p174 = scmp.eq.s32.totalorder %s28, 0
      %p175 = por %p173, %p174
      %p176 = scmp.ne.s32.totalorder %s164, %s165
      %p177 = scmp.eq.s32.totalorder %s29, 1
      %p178 = por %p176, %p177
      %p180 = scmp.ne.s32.totalorder %s165, %s179
      %p181 = scmp.eq.s32.totalorder %s29, 0
      %p182 = por %p180, %p181
      %s184 = sadd.s32 %s183, 1
      %p187 = scmp.eq.s32.totalorder %s23, 1
      %p188 = scmp.ne.s32.totalorder %s183, %s185
      %p189 = scmp.eq.s32.totalorder %s23, 0
      %p190 = por %p188, %p189
      %p191 = scmp.ne.s32.totalorder %s183, %s185
      %p192 = scmp.eq.s32.totalorder %s28, 1
      %p193 = por %p191, %p192
      %p194 = scmp.ne.s32.totalorder %s185, %s186
      %p195 = scmp.eq.s32.totalorder %s28, 0
      %p196 = por %p194, %p195
      %p197 = scmp.ne.s32.totalorder %s185, %s186
      %p198 = scmp.eq.s32.totalorder %s29, 1
      %p199 = por %p197, %p198
      %p201 = scmp.ne.s32.totalorder %s186, %s200
      %p202 = scmp.eq.s32.totalorder %s29, 0
      %p203 = por %p201, %p202
      %s205 = sadd.s32 %s204, 1
      %p208 = scmp.eq.s32.totalorder %s23, 1
      %p209 = scmp.ne.s32.totalorder %s204, %s206
      %p210 = scmp.eq.s32.totalorder %s23, 0
      %p211 = por %p209, %p210
      %p212 = scmp.ne.s32.totalorder %s204, %s206
      %p213 = scmp.eq.s32.totalorder %s28, 1
      %p214 = por %p212, %p213
      %p215 = scmp.ne.s32.totalorder %s206, %s207
      %p216 = scmp.eq.s32.totalorder %s28, 0
      %p217 = por %p215, %p216
      %p218 = scmp.ne.s32.totalorder %s206, %s207
      %p219 = scmp.eq.s32.totalorder %s29, 1
      %p220 = por %p218, %p219
      %p222 = scmp.ne.s32.totalorder %s207, %s221
      %p223 = scmp.eq.s32.totalorder %s29, 0
      %p224 = por %p222, %p223
      %s226 = sadd.s32 %s225, 1
      %p229 = scmp.eq.s32.totalorder %s23, 1
      %p230 = scmp.ne.s32.totalorder %s225, %s227
      %p231 = scmp.eq.s32.totalorder %s23, 0
      %p232 = por %p230, %p231
      %p233 = scmp.ne.s32.totalorder %s225, %s227
      %p234 = scmp.eq.s32.totalorder %s28, 1
      %p235 = por %p233, %p234
      %p236 = scmp.ne.s32.totalorder %s227, %s228
      %p237 = scmp.eq.s32.totalorder %s28, 0
      %p238 = por %p236, %p237
      %p239 = scmp.ne.s32.totalorder %s227, %s228
      %p240 = scmp.eq.s32.totalorder %s29, 1
      %p241 = por %p239, %p240
      %p243 = scmp.ne.s32.totalorder %s228, %s242
      %p244 = scmp.eq.s32.totalorder %s29, 0
      %p245 = por %p243, %p244
      %s247 = sadd.s32 %s246, 1
      %p250 = scmp.eq.s32.totalorder %s23, 1
      %p251 = scmp.ne.s32.totalorder %s246, %s248
      %p252 = scmp.eq.s32.totalorder %s23, 0
      %p253 = por %p251, %p252
      %p254 = scmp.ne.s32.totalorder %s246, %s248
      %p255 = scmp.eq.s32.totalorder %s28, 1
      %p256 = por %p254, %p255
      %p257 = scmp.ne.s32.totalorder %s248, %s249
      %p258 = scmp.eq.s32.totalorder %s28, 0
      %p259 = por %p257, %p258
      %p260 = scmp.ne.s32.totalorder %s248, %s249
      %p261 = scmp.eq.s32.totalorder %s29, 1
      %p262 = por %p260, %p261
      %p264 = scmp.ne.s32.totalorder %s249, %s263
      %p265 = scmp.eq.s32.totalorder %s29, 0
      %p266 = por %p264, %p265
      %s268 = sadd.s32 %s267, 1
      %p271 = scmp.eq.s32.totalorder %s23, 1
      %p272 = scmp.ne.s32.totalorder %s267, %s269
      %p273 = scmp.eq.s32.totalorder %s23, 0
      %p274 = por %p272, %p273
      %p275 = scmp.ne.s32.totalorder %s267, %s269
      %p276 = scmp.eq.s32.totalorder %s28, 1
      %p277 = por %p275, %p276
      %p278 = scmp.ne.s32.totalorder %s269, %s270
      %p279 = scmp.eq.s32.totalorder %s28, 0
      %p280 = por %p278, %p279
      %p281 = scmp.ne.s32.totalorder %s269, %s270
      %p282 = scmp.eq.s32.totalorder %s29, 1
      %p283 = por %p281, %p282
      %p285 = scmp.ne.s32.totalorder %s270, %s284
      %p286 = scmp.eq.s32.totalorder %s29, 0
      %p287 = por %p285, %p286
      %s289 = sadd.s32 %s288, 1
      %p292 = scmp.eq.s32.totalorder %s23, 1
      %p293 = scmp.ne.s32.totalorder %s288, %s290
      %p294 = scmp.eq.s32.totalorder %s23, 0
      %p295 = por %p293, %p294
      %p296 = scmp.ne.s32.totalorder %s288, %s290
      %p297 = scmp.eq.s32.totalorder %s28, 1
      %p298 = por %p296, %p297
      %p299 = scmp.ne.s32.totalorder %s290, %s291
      %p300 = scmp.eq.s32.totalorder %s28, 0
      %p301 = por %p299, %p300
      %p302 = scmp.ne.s32.totalorder %s290, %s291
      %p303 = scmp.eq.s32.totalorder %s29, 1
      %p304 = por %p302, %p303
      %p306 = scmp.ne.s32.totalorder %s291, %s305
      %p307 = scmp.eq.s32.totalorder %s29, 0
      %p308 = por %p306, %p307
      %s310 = sadd.s32 %s309, 1
      %p313 = scmp.eq.s32.totalorder %s23, 1
      %p314 = scmp.ne.s32.totalorder %s309, %s311
      %p315 = scmp.eq.s32.totalorder %s23, 0
      %p316 = por %p314, %p315
      %p317 = scmp.ne.s32.totalorder %s309, %s311
      %p318 = scmp.eq.s32.totalorder %s28, 1
      %p319 = por %p317, %p318
      %p320 = scmp.ne.s32.totalorder %s311, %s312
      %p321 = scmp.eq.s32.totalorder %s28, 0
      %p322 = por %p320, %p321
      %p323 = scmp.ne.s32.totalorder %s311, %s312
      %p324 = scmp.eq.s32.totalorder %s29, 1
      %p325 = por %p323, %p324
      %p327 = scmp.ne.s32.totalorder %s312, %s326
      %p328 = scmp.eq.s32.totalorder %s29, 0
      %p329 = por %p327, %p328
      %s330 = ssub.s32 %s23, %s30
      %p331 = scmp.eq.s32.totalorder %s330, 0
      %s333 = sadd.s32 %s332, 1
      %s334 = scalar_select %p331, %s332, %s333
      %p337 = pneg %p331
      %p338 = scmp.eq.s32.totalorder %s23, 1
      %p339 = por %p337, %p338
      %p340 = scmp.ne.s32.totalorder %s332, %s335
      %p341 = scmp.eq.s32.totalorder %s23, 0
      %p342 = por %p340, %p341
      %p343 = scmp.ne.s32.totalorder %s332, %s335
      %p344 = scmp.eq.s32.totalorder %s28, 1
      %p345 = por %p343, %p344
      %p346 = scmp.ne.s32.totalorder %s335, %s336
      %p347 = scmp.eq.s32.totalorder %s28, 0
      %p348 = por %p346, %p347
      %p349 = scmp.ne.s32.totalorder %s335, %s336
      %p350 = scmp.eq.s32.totalorder %s29, 1
      %p351 = por %p349, %p350
      %p353 = scmp.ne.s32.totalorder %s336, %s352
      %p354 = scmp.eq.s32.totalorder %s29, 0
      %p355 = por %p353, %p354
      %p356 = scmp.le.s32.totalorder 1, %s23
      %p357 = scmp.lt.s32.totalorder %s23, 3
      %p358 = pnand %p356, %p357
      %p359 = pneg %p358
      // Predicated region
      $region9: #{tpu_custom_call.1} parent=5 // pred_check
        _
      $region10: #{tpu_custom_call.1} parent=5 // pred_check_branch
        %361 = sbr.rel (%p358) target = $region12
      $region11: #{tpu_custom_call.1} parent=5 // pred_region
        %s362 = ssub.s32 %s23, 1
        // Predicated region
        $region13: #{tpu_custom_call.1} parent=11 // pred_check
          %p363 = pneg %p70
        $region14: #{tpu_custom_call.1} parent=11 // pred_check_branch
          %365 = sbr.rel (%p363) target = $region16
        $region15: #{tpu_custom_call.1} parent=11 // pred_region
          _
        $region16: #{tpu_custom_call.1} parent=11 // pred_fallthru
          _
        // Predicated region
        $region17: #{tpu_custom_call.1} parent=11 // pred_check
          %p366 = pneg %p91
        $region18: #{tpu_custom_call.1} parent=11 // pred_check_branch
          %368 = sbr.rel (%p366) target = $region20
        $region19: #{tpu_custom_call.1} parent=11 // pred_region
          _
        $region20: #{tpu_custom_call.1} parent=11 // pred_fallthru
          _
        // Predicated region
        $region21: #{tpu_custom_call.1} parent=11 // pred_check
          %p369 = pneg %p112
        $region22: #{tpu_custom_call.1} parent=11 // pred_check_branch
          %371 = sbr.rel (%p369) target = $region24
        $region23: #{tpu_custom_call.1} parent=11 // pred_region
          _
        $region24: #{tpu_custom_call.1} parent=11 // pred_fallthru
          _
        // Predicated region
        $region25: #{tpu_custom_call.1} parent=11 // pred_check
          %p372 = pneg %p133
        $region26: #{tpu_custom_call.1} parent=11 // pred_check_branch
          %374 = sbr.rel (%p372) target = $region28
        $region27: #{tpu_custom_call.1} parent=11 // pred_region
          _
        $region28: #{tpu_custom_call.1} parent=11 // pred_fallthru
          _
        // Predicated region
        $region29: #{tpu_custom_call.1} parent=11 // pred_check
          %p375 = pneg %p154
        $region30: #{tpu_custom_call.1} parent=11 // pred_check_branch
          %377 = sbr.rel (%p375) target = $region32
        $region31: #{tpu_custom_call.1} parent=11 // pred_region
          _
        $region32: #{tpu_custom_call.1} parent=11 // pred_fallthru
          _
        // Predicated region
        $region33: #{tpu_custom_call.1} parent=11 // pred_check
          %p378 = pneg %p175
        $region34: #{tpu_custom_call.1} parent=11 // pred_check_branch
          %380 = sbr.rel (%p378) target = $region36
        $region35: #{tpu_custom_call.1} parent=11 // pred_region
          _
        $region36: #{tpu_custom_call.1} parent=11 // pred_fallthru
          _
        // Predicated region
        $region37: #{tpu_custom_call.1} parent=11 // pred_check
          %p381 = pneg %p196
        $region38: #{tpu_custom_call.1} parent=11 // pred_check_branch
          %383 = sbr.rel (%p381) target = $region40
        $region39: #{tpu_custom_call.1} parent=11 // pred_region
          _
        $region40: #{tpu_custom_call.1} parent=11 // pred_fallthru
          _
        // Predicated region
        $region41: #{tpu_custom_call.1} parent=11 // pred_check
          %p384 = pneg %p217
        $region42: #{tpu_custom_call.1} parent=11 // pred_check_branch
          %386 = sbr.rel (%p384) target = $region44
        $region43: #{tpu_custom_call.1} parent=11 // pred_region
          _
        $region44: #{tpu_custom_call.1} parent=11 // pred_fallthru
          _
        // Predicated region
        $region45: #{tpu_custom_call.1} parent=11 // pred_check
          %p387 = pneg %p238
        $region46: #{tpu_custom_call.1} parent=11 // pred_check_branch
          %389 = sbr.rel (%p387) target = $region48
        $region47: #{tpu_custom_call.1} parent=11 // pred_region
          _
        $region48: #{tpu_custom_call.1} parent=11 // pred_fallthru
          _
        // Predicated region
        $region49: #{tpu_custom_call.1} parent=11 // pred_check
          %p390 = pneg %p259
        $region50: #{tpu_custom_call.1} parent=11 // pred_check_branch
          %392 = sbr.rel (%p390) target = $region52
        $region51: #{tpu_custom_call.1} parent=11 // pred_region
          _
        $region52: #{tpu_custom_call.1} parent=11 // pred_fallthru
          _
        // Predicated region
        $region53: #{tpu_custom_call.1} parent=11 // pred_check
          %p393 = pneg %p280
        $region54: #{tpu_custom_call.1} parent=11 // pred_check_branch
          %395 = sbr.rel (%p393) target = $region56
        $region55: #{tpu_custom_call.1} parent=11 // pred_region
          _
        $region56: #{tpu_custom_call.1} parent=11 // pred_fallthru
          _
        // Predicated region
        $region57: #{tpu_custom_call.1} parent=11 // pred_check
          %p396 = pneg %p301
        $region58: #{tpu_custom_call.1} parent=11 // pred_check_branch
          %398 = sbr.rel (%p396) target = $region60
        $region59: #{tpu_custom_call.1} parent=11 // pred_region
          _
        $region60: #{tpu_custom_call.1} parent=11 // pred_fallthru
          _
        // Predicated region
        $region61: #{tpu_custom_call.1} parent=11 // pred_check
          %p399 = pneg %p322
        $region62: #{tpu_custom_call.1} parent=11 // pred_check_branch
          %401 = sbr.rel (%p399) target = $region64
        $region63: #{tpu_custom_call.1} parent=11 // pred_region
          _
        $region64: #{tpu_custom_call.1} parent=11 // pred_fallthru
          _
      $region12: #{tpu_custom_call.1} parent=5 // pred_fallthru
        _
      %p402 = scmp.lt.s32.totalorder %s23, 2
      // Predicated region
      $region65: #{tpu_custom_call.1} parent=5 // pred_check
        %p403 = pneg %p402
      $region66: #{tpu_custom_call.1} parent=5 // pred_check_branch
        %405 = sbr.rel (%p403) target = $region68
      $region67: #{tpu_custom_call.1} parent=5 // pred_region
        // Predicated region
        $region69: #{tpu_custom_call.1} parent=67 // pred_check
          %p406 = pneg %p43
        $region70: #{tpu_custom_call.1} parent=67 // pred_check_branch
          %408 = sbr.rel (%p406) target = $region72
        $region71: #{tpu_custom_call.1} parent=67 // pred_region
          %p409 = scmp.lt.s32.totalorder %s23, 1
          %s410 = scalar_select %p409, %s23, 1
          %s411 = smul.addr %s410, 8
          %s412 = scalar_lea.vmem %s0, %s411
        $region72: #{tpu_custom_call.1} parent=67 // pred_fallthru
          _
      $region68: #{tpu_custom_call.1} parent=5 // pred_fallthru
        _
      %p413 = scmp.le.s32.totalorder 1, %s23
      %p414 = scmp.lt.s32.totalorder %s23, 3
      %p415 = pnand %p413, %p414
      %p416 = pneg %p415
      // Predicated region
      $region73: #{tpu_custom_call.1} parent=5 // pred_check
        _
      $region74: #{tpu_custom_call.1} parent=5 // pred_check_branch
        %418 = sbr.rel (%p415) target = $region76
      $region75: #{tpu_custom_call.1} parent=5 // pred_region
        %s419 = ssub.s32 %s23, 1
        %p420 = scmp.lt.s32.totalorder %s28, 1
        %s421 = scalar_select %p420, %s28, 1
        %s422 = smul.addr %s421, 8
        %s423 = scalar_lea.vmem %s0, %s422
        %p424 = pneg %p49
        %p425 = pneg %p46
        %p426 = pneg %p70
        %p427 = pneg %p67
        %p428 = pneg %p91
        %p429 = pneg %p88
        %p430 = pneg %p112
        %p431 = pneg %p109
        %p432 = pneg %p133
        %p433 = pneg %p130
        %p434 = pneg %p154
        %p435 = pneg %p151
        %p436 = pneg %p175
        %p437 = pneg %p172
        %p438 = pneg %p196
        %p439 = pneg %p193
        %p440 = pneg %p217
        %p441 = pneg %p214
        %p442 = pneg %p238
        %p443 = pneg %p235
        %p444 = pneg %p259
        %p445 = pneg %p256
        %p446 = pneg %p280
        %p447 = pneg %p277
        %p448 = pneg %p301
        %p449 = pneg %p298
        %p450 = pneg %p322
        %p451 = pneg %p319
        %p452 = pneg %p348
        %p453 = pneg %p345
        %s454 = sand.u32 %s335, 1
        %s455 = scalar_lea.sflag [#allocation4], %s454
        %s456 = sand.u32 %s335, 1
        %s457 = smul.addr %s456, 8
        %s458 = scalar_lea.vmem [#allocation3], %s457
        %p459 = scmp.lt.s32.totalorder %s28, 1
        %s460 = scalar_select %p459, %s28, 1
        %s461 = smul.addr %s460, 8
        %s462 = scalar_lea.vmem %s0, %s461
        %v464 = vld [vmem:[%s462] sm:$0xff]
        %vm465 = vcmask 261120
        %v466 = vsel %vm465, %v464, 0.0
        %467 = vadd.xlane.f32.xlu0 %v466
        %v468 = vpop.xlane.xlu0 %467
        %v469 = vrcp.pop 32.0
        %v470 = vmul.f32 32.0, %v469
        %v471 = vsub.f32 1.0, %v470
        %v472 = vmul.f32 %v469, %v471
        %v473 = vadd.f32 %v469, %v472
        %vm474 = vweird.f32 %v469
        %v475 = vsel %vm474, %v469, %v473
        %v476 = vmul.f32 %v468, %v475
        %v477 = vsub.f32 %v464, %v476
        %v478 = vmul.f32 %v477, %v477
        %v479 = vsel %vm465, %v478, 0.0
        %480 = vadd.xlane.f32.xlu0 %v479
        %v481 = vpop.xlane.xlu0 %480
        %v482 = vmul.f32 %v481, %v475
        %v483 = vadd.f32 %v482, 1e-05
        %v484 = vrsqrt.pop %v483
        %v485 = vmul.f32 %v484, %v483
        %v486 = vmul.f32 %v485, %v484
        %v487 = vmul.f32 0.5, %v486
        %v488 = vsub.f32 1.5, %v487
        %v489 = vmul.f32 %v484, %v488
        %vm490 = vweird.f32 %v483
        %vm491 = vweird.f32 %v484
        %vm492 = vmor %vm490, %vm491
        %v493 = vsel %vm492, %v484, %v489
        %v494 = vmul.f32 %v477, %v493
        %v495 = vld [vmem:[%s2] sm:$0x1]
        %v497 = vperm.slane %v495, 0
        %v499 = vmul.f32 %v494, %v497
        %v500 = vld [vmem:[%s3] sm:$0x1]
        %v502 = vperm.slane %v500, 0
        %v504 = vadd.f32 %v499, %v502
        %v505 = vpack.c.bf16 %v504, %v504
        %v506 = vld [vmem:[%s4] sm:$0xf]
        %v507 = vld [vmem:[%s4 + $0x4] sm:$0xf]
        %v508 = vld [vmem:[%s4 + $0x8] sm:$0xf]
        %v509 = vld [vmem:[%s4 + $0xc] sm:$0xf]
        %v510 = vld [vmem:[%s5] sm:$0x1]
        %v512 = vperm.slane %v510, 0
        %v518 = vunpack.c.l.b16 %v506
        %v519 = vunpack.c.l.b16 %v507
        %v520 = vunpack.c.l.b16 %v508
        %v521 = vunpack.c.l.b16 %v509
        %v522 = vpack.c.b16 %v519, %v518
        %v523 = vpack.c.b16 %v521, %v520
        %v527 = vsel %vm465, %v505, 0
        %529 = vmatpush.bf16.msra.mxu0 0
        %530 = vmatpush.bf16.msra.mxu0 0
        %531 = vmatpush.bf16.msra.mxu0 0
        %532 = vmatpush.bf16.msra.mxu0 0
        %533 = vmatpush.bf16.msra.mxu0 0
        %534 = vmatpush.bf16.msra.mxu0 0
        %535 = vmatpush.bf16.msra.mxu0 %v523
        %536 = vmatpush.bf16.msra.mxu0 %v522
        %537 = vmatmul.bf16.gmra.mxu0 %v527
        %v538 = vpop.f32.mrf.mxu0
        %v539 = vadd.f32 %v512, %v538
        %v540 = vpop.f32.mrf.mxu0
        %541 = vdwg.mxu0
        %v542 = vpack.c.bf16 %v539, %v539
        %v543 = vld [vmem:[%s1] sm:$0xff]
        %v545 = vunpack.c.l.b16 %v542
        %v546 = vpack.c.b16 %v545, %v545
        %547 = vrot.lane.b32.xlu0 %v546, 96
        %v548 = vpop.permute.xlu0 %547
        %vm549 = vcmask 64512
        %v551 = vsel %vm549, %v542, 0
        %v554 = vsel %vm549, %v548, 0
        %556 = vmatpush.bf16.xpose.msra.mxu0 0
        %557 = vmatpush.bf16.xpose.msra.mxu0 0
        %558 = vmatpush.bf16.xpose.msra.mxu0 0
        %559 = vmatpush.bf16.xpose.msra.mxu0 0
        %560 = vmatpush.bf16.xpose.msra.mxu0 0
        %561 = vmatpush.bf16.xpose.msra.mxu0 0
        %562 = vmatpush.bf16.xpose.msra.mxu0 0
        %563 = vmatpush.bf16.xpose.msra.mxu0 %v554
        %564 = vmatmul.bf16.gmra.mxu0 %v551
        %v565 = vpop.f32.mrf.mxu0
        %v566 = vadd.f32 %v543, %v565
        %v567 = vpop.f32.mrf.mxu0
        %568 = vdwg.mxu0
        %v569 = vsel %vm549, %v566, -inf
        %570 = vmax.xlane.f32.xlu0 %v569
        %v571 = vpop.xlane.xlu0 %570
        %v572 = vsub.f32 %v566, %v571
        %v573 = vmul.f32 %v572, 1.442695
        %v574 = vpow.pop %v573
        %v575 = vsel %vm549, %v574, 0.0
        %576 = vadd.xlane.f32.xlu0 %v575
        %v577 = vpop.xlane.xlu0 %576
        %v578 = vrcp.pop %v577
        %v579 = vmul.f32 %v574, %v578
        %v580 = vpack.c.bf16 %v579, %v579
        %581 = vrot.lane.b32.xlu0 %v546, 64
        %v582 = vpop.permute.xlu0 %581
        %v584 = vsel %vm549, %v580, 0
        %vm586 = vcmask 1043456
        %v588 = vsel %vm586, %v582, 0
        %590 = vmatpush.bf16.msra.mxu0 0
        %591 = vmatpush.bf16.msra.mxu0 0
        %592 = vmatpush.bf16.msra.mxu0 0
        %593 = vmatpush.bf16.msra.mxu0 0
        %594 = vmatpush.bf16.msra.mxu0 0
        %595 = vmatpush.bf16.msra.mxu0 0
        %596 = vmatpush.bf16.msra.mxu0 0
        %597 = vmatpush.bf16.msra.mxu0 %v588
        %598 = vmatmul.bf16.gmra.mxu0 %v584
        %v599 = vpop.f32.mrf.mxu0
        %v600 = vadd.f32 0.0, %v599
        %v601 = vpop.f32.mrf.mxu0
        %602 = vdwg.mxu0
        %v603 = vpack.c.bf16 %v600, %v600
        %vm604 = vcmask 60416
        %605 = vst.msk [vmem:[#allocation2] sm:$0xf] %vm604, %v603
        %606 = vrot.lane.b32.xlu0 %v546, 120
        %v607 = vpop.permute.xlu0 %606
        %608 = vrot.lane.b32.xlu0 %v546, 88
        %v609 = vpop.permute.xlu0 %608
        %v611 = vsel %vm549, %v607, 0
        %v614 = vsel %vm549, %v609, 0
        %616 = vmatpush.bf16.xpose.msra.mxu0 0
        %617 = vmatpush.bf16.xpose.msra.mxu0 0
        %618 = vmatpush.bf16.xpose.msra.mxu0 0
        %619 = vmatpush.bf16.xpose.msra.mxu0 0
        %620 = vmatpush.bf16.xpose.msra.mxu0 0
        %621 = vmatpush.bf16.xpose.msra.mxu0 0
        %622 = vmatpush.bf16.xpose.msra.mxu0 0
        %623 = vmatpush.bf16.xpose.msra.mxu0 %v614
        %624 = vmatmul.bf16.gmra.mxu0 %v611
        %v625 = vpop.f32.mrf.mxu0
        %v626 = vadd.f32 %v543, %v625
        %v627 = vpop.f32.mrf.mxu0
        %628 = vdwg.mxu0
        %v629 = vsel %vm549, %v626, -inf
        %630 = vmax.xlane.f32.xlu0 %v629
        %v631 = vpop.xlane.xlu0 %630
        %v632 = vsub.f32 %v626, %v631
        %v633 = vmul.f32 %v632, 1.442695
        %v634 = vpow.pop %v633
        %v635 = vsel %vm549, %v634, 0.0
        %636 = vadd.xlane.f32.xlu0 %v635
        %v637 = vpop.xlane.xlu0 %636
        %v638 = vrcp.pop %v637
        %v639 = vmul.f32 %v634, %v638
        %v640 = vpack.c.bf16 %v639, %v639
        %641 = vrot.lane.b32.xlu0 %v546, 56
        %v642 = vpop.permute.xlu0 %641
        %v644 = vsel %vm549, %v640, 0
        %v647 = vsel %vm586, %v642, 0
        %649 = vmatpush.bf16.msra.mxu0 0
        %650 = vmatpush.bf16.msra.mxu0 0
        %651 = vmatpush.bf16.msra.mxu0 0
        %652 = vmatpush.bf16.msra.mxu0 0
        %653 = vmatpush.bf16.msra.mxu0 0
        %654 = vmatpush.bf16.msra.mxu0 0
        %655 = vmatpush.bf16.msra.mxu0 0
        %656 = vmatpush.bf16.msra.mxu0 %v647
        %657 = vmatmul.bf16.gmra.mxu0 %v644
        %v658 = vpop.f32.mrf.mxu0
        %v659 = vadd.f32 0.0, %v658
        %v660 = vpop.f32.mrf.mxu0
        %661 = vdwg.mxu0
        %v662 = vpack.c.bf16 %v659, %v659
        %664 = vrot.lane.b32.xlu0 %v662, 8
        %v665 = vpop.permute.xlu0 %664
        %vm667 = vcmask 126016
        %668 = vst.msk [vmem:[#allocation2] sm:$0xf] %vm667, %v665
        %669 = vrot.lane.b32.xlu0 %v546, 112
        %v670 = vpop.permute.xlu0 %669
        %671 = vrot.lane.b32.xlu0 %v546, 80
        %v672 = vpop.permute.xlu0 %671
        %v674 = vsel %vm549, %v670, 0
        %v677 = vsel %vm549, %v672, 0
        %679 = vmatpush.bf16.xpose.msra.mxu0 0
        %680 = vmatpush.bf16.xpose.msra.mxu0 0
        %681 = vmatpush.bf16.xpose.msra.mxu0 0
        %682 = vmatpush.bf16.xpose.msra.mxu0 0
        %683 = vmatpush.bf16.xpose.msra.mxu0 0
        %684 = vmatpush.bf16.xpose.msra.mxu0 0
        %685 = vmatpush.bf16.xpose.msra.mxu0 0
        %686 = vmatpush.bf16.xpose.msra.mxu0 %v677
        %687 = vmatmul.bf16.gmra.mxu0 %v674
        %v688 = vpop.f32.mrf.mxu0
        %v689 = vadd.f32 %v543, %v688
        %v690 = vpop.f32.mrf.mxu0
        %691 = vdwg.mxu0
        %v692 = vsel %vm549, %v689, -inf
        %693 = vmax.xlane.f32.xlu0 %v692
        %v694 = vpop.xlane.xlu0 %693
        %v695 = vsub.f32 %v689, %v694
        %v696 = vmul.f32 %v695, 1.442695
        %v697 = vpow.pop %v696
        %v698 = vsel %vm549, %v697, 0.0
        %699 = vadd.xlane.f32.xlu0 %v698
        %v700 = vpop.xlane.xlu0 %699
        %v701 = vrcp.pop %v700
        %v702 = vmul.f32 %v697, %v701
        %v703 = vpack.c.bf16 %v702, %v702
        %704 = vrot.lane.b32.xlu0 %v546, 48
        %v705 = vpop.permute.xlu0 %704
        %v707 = vsel %vm549, %v703, 0
        %v710 = vsel %vm586, %v705, 0
        %712 = vmatpush.bf16.msra.mxu0 0
        %713 = vmatpush.bf16.msra.mxu0 0
        %714 = vmatpush.bf16.msra.mxu0 0
        %715 = vmatpush.bf16.msra.mxu0 0
        %716 = vmatpush.bf16.msra.mxu0 0
        %717 = vmatpush.bf16.msra.mxu0 0
        %718 = vmatpush.bf16.msra.mxu0 0
        %719 = vmatpush.bf16.msra.mxu0 %v710
        %720 = vmatmul.bf16.gmra.mxu0 %v707
        %v721 = vpop.f32.mrf.mxu0
        %v722 = vadd.f32 0.0, %v721
        %v723 = vpop.f32.mrf.mxu0
        %724 = vdwg.mxu0
        %v725 = vpack.c.bf16 %v722, %v722
        %727 = vrot.lane.b32.xlu0 %v725, 16
        %v728 = vpop.permute.xlu0 %727
        %vm730 = vcmask 191616
        %731 = vst.msk [vmem:[#allocation2] sm:$0xf] %vm730, %v728
        %732 = vrot.lane.b32.xlu0 %v546, 104
        %v733 = vpop.permute.xlu0 %732
        %734 = vrot.lane.b32.xlu0 %v546, 72
        %v735 = vpop.permute.xlu0 %734
        %v737 = vsel %vm549, %v733, 0
        %v740 = vsel %vm549, %v735, 0
        %742 = vmatpush.bf16.xpose.msra.mxu0 0
        %743 = vmatpush.bf16.xpose.msra.mxu0 0
        %744 = vmatpush.bf16.xpose.msra.mxu0 0
        %745 = vmatpush.bf16.xpose.msra.mxu0 0
        %746 = vmatpush.bf16.xpose.msra.mxu0 0
        %747 = vmatpush.bf16.xpose.msra.mxu0 0
        %748 = vmatpush.bf16.xpose.msra.mxu0 0
        %749 = vmatpush.bf16.xpose.msra.mxu0 %v740
        %750 = vmatmul.bf16.gmra.mxu0 %v737
        %v751 = vpop.f32.mrf.mxu0
        %v752 = vadd.f32 %v543, %v751
        %v753 = vpop.f32.mrf.mxu0
        %754 = vdwg.mxu0
        %v755 = vsel %vm549, %v752, -inf
        %756 = vmax.xlane.f32.xlu0 %v755
        %v757 = vpop.xlane.xlu0 %756
        %v758 = vsub.f32 %v752, %v757
        %v759 = vmul.f32 %v758, 1.442695
        %v760 = vpow.pop %v759
        %v761 = vsel %vm549, %v760, 0.0
        %762 = vadd.xlane.f32.xlu0 %v761
        %v763 = vpop.xlane.xlu0 %762
        %v764 = vrcp.pop %v763
        %v765 = vmul.f32 %v760, %v764
        %v766 = vpack.c.bf16 %v765, %v765
        %767 = vrot.lane.b32.xlu0 %v546, 40
        %v768 = vpop.permute.xlu0 %767
        %v770 = vsel %vm549, %v766, 0
        %v773 = vsel %vm586, %v768, 0
        %775 = vmatpush.bf16.msra.mxu0 0
        %776 = vmatpush.bf16.msra.mxu0 0
        %777 = vmatpush.bf16.msra.mxu0 0
        %778 = vmatpush.bf16.msra.mxu0 0
        %779 = vmatpush.bf16.msra.mxu0 0
        %780 = vmatpush.bf16.msra.mxu0 0
        %781 = vmatpush.bf16.msra.mxu0 0
        %782 = vmatpush.bf16.msra.mxu0 %v773
        %783 = vmatmul.bf16.gmra.mxu0 %v770
        %v784 = vpop.f32.mrf.mxu0
        %v785 = vadd.f32 0.0, %v784
        %v786 = vpop.f32.mrf.mxu0
        %787 = vdwg.mxu0
        %v788 = vpack.c.bf16 %v785, %v785
        %790 = vrot.lane.b32.xlu0 %v788, 24
        %v791 = vpop.permute.xlu0 %790
        %vm793 = vcmask 257216
        %794 = vst.msk [vmem:[#allocation2] sm:$0xf] %vm793, %v791
        %v795 = vld [vmem:[#allocation2] sm:$0xf]
        %v796 = vld [vmem:[%s6] sm:$0xf]
        %v797 = vld [vmem:[%s6 + $0x4] sm:$0xf]
        %v798 = vld [vmem:[%s6 + $0x8] sm:$0xf]
        %v799 = vld [vmem:[%s6 + $0xc] sm:$0xf]
        %v800 = vld [vmem:[%s7] sm:$0x1]
        %v802 = vperm.slane %v800, 0
        %v808 = vunpack.c.l.b16 %v796
        %v809 = vunpack.c.l.b16 %v797
        %v810 = vunpack.c.l.b16 %v798
        %v811 = vunpack.c.l.b16 %v799
        %v812 = vpack.c.b16 %v809, %v808
        %v813 = vpack.c.b16 %v811, %v810
        %v817 = vsel %vm465, %v795, 0
        %819 = vmatpush.bf16.msra.mxu0 0
        %820 = vmatpush.bf16.msra.mxu0 0
        %821 = vmatpush.bf16.msra.mxu0 0
        %822 = vmatpush.bf16.msra.mxu0 0
        %823 = vmatpush.bf16.msra.mxu0 0
        %824 = vmatpush.bf16.msra.mxu0 0
        %825 = vmatpush.bf16.msra.mxu0 %v813
        %826 = vmatpush.bf16.msra.mxu0 %v812
        %827 = vmatmul.bf16.gmra.mxu0 %v817
        %v828 = vpop.f32.mrf.mxu0
        %v829 = vadd.f32 %v802, %v828
        %v830 = vpop.f32.mrf.mxu0
        %831 = vdwg.mxu0
        %v832 = vadd.f32 %v829, %v464
        %v833 = vsel %vm465, %v832, 0.0
        %834 = vadd.xlane.f32.xlu0 %v833
        %v835 = vpop.xlane.xlu0 %834
        %v836 = vmul.f32 %v835, %v475
        %v837 = vsub.f32 %v832, %v836
        %v838 = vmul.f32 %v837, %v837
        %v839 = vsel %vm465, %v838, 0.0
        %840 = vadd.xlane.f32.xlu0 %v839
        %v841 = vpop.xlane.xlu0 %840
        %v842 = vmul.f32 %v841, %v475
        %v843 = vadd.f32 %v842, 1e-05
        %v844 = vrsqrt.pop %v843
        %v845 = vmul.f32 %v844, %v843
        %v846 = vmul.f32 %v845, %v844
        %v847 = vmul.f32 0.5, %v846
        %v848 = vsub.f32 1.5, %v847
        %v849 = vmul.f32 %v844, %v848
        %vm850 = vweird.f32 %v843
        %vm851 = vweird.f32 %v844
        %vm852 = vmor %vm850, %vm851
        %v853 = vsel %vm852, %v844, %v849
        %v854 = vmul.f32 %v837, %v853
        %v855 = vld [vmem:[%s8] sm:$0x1]
        %v857 = vperm.slane %v855, 0
        %v859 = vmul.f32 %v854, %v857
        %v860 = vld [vmem:[%s9] sm:$0x1]
        %v862 = vperm.slane %v860, 0
        %v864 = vadd.f32 %v859, %v862
        %v865 = vpack.c.bf16 %v864, %v864
        %v866 = vld [vmem:[%s10] sm:$0xf]
        %v867 = vld [vmem:[%s10 + $0x4] sm:$0xf]
        %v868 = vld [vmem:[%s10 + $0x8] sm:$0xf]
        %v869 = vld [vmem:[%s10 + $0xc] sm:$0xf]
        %v870 = vld [vmem:[%s11] sm:$0x1]
        %v872 = vperm.slane %v870, 0
        %v878 = vunpack.c.l.b16 %v866
        %v879 = vunpack.c.l.b16 %v867
        %v880 = vunpack.c.l.b16 %v868
        %v881 = vunpack.c.l.b16 %v869
        %v882 = vpack.c.b16 %v879, %v878
        %v883 = vpack.c.b16 %v881, %v880
        %v887 = vsel %vm465, %v865, 0
        %889 = vmatpush.bf16.msra.mxu0 0
        %890 = vmatpush.bf16.msra.mxu0 0
        %891 = vmatpush.bf16.msra.mxu0 0
        %892 = vmatpush.bf16.msra.mxu0 0
        %893 = vmatpush.bf16.msra.mxu0 0
        %894 = vmatpush.bf16.msra.mxu0 0
        %895 = vmatpush.bf16.msra.mxu0 %v883
        %896 = vmatpush.bf16.msra.mxu0 %v882
        %897 = vmatmul.bf16.gmra.mxu0 %v887
        %v898 = vpop.f32.mrf.mxu0
        %v899 = vadd.f32 %v872, %v898
        %v900 = vpop.f32.mrf.mxu0
        %901 = vdwg.mxu0
        %v902 = vmul.f32 %v899, 1.702
        %v903 = vxor.u32 %v902, 2147483648
        %v904 = vmul.f32 %v903, 1.442695
        %v905 = vpow.pop %v904
        %v906 = vadd.f32 %v905, 1.0
        %v907 = vrcp.pop %v906
        %v908 = vmul.f32 %v906, %v907
        %v909 = vsub.f32 1.0, %v908
        %v910 = vmul.f32 %v907, %v909
        %v911 = vadd.f32 %v907, %v910
        %vm912 = vweird.f32 %v906
        %vm913 = vweird.f32 %v907
        %vm914 = vmor %vm912, %vm913
        %v915 = vsel %vm914, %v907, %v911
        %v916 = vand.u32 2147483647, %v906
        %vm917 = vcmp.eq.f32.partialorder %v916, 8.507059e+37
        %v918 = vand.u32 %v906, 2147483648
        %v919 = vor.u32 1.1754944e-38, %v918
        %v920 = vsel %vm917, %v919, %v915
        %v921 = vmul.f32 1.0, %v920
        %v922 = vmul.f32 %v899, %v921
        %v923 = vpack.c.bf16 %v922, %v922
        %v924 = vld [vmem:[%s12] sm:$0xf]
        %v925 = vld [vmem:[%s12 + $0x4] sm:$0xf]
        %v926 = vld [vmem:[%s12 + $0x8] sm:$0xf]
        %v927 = vld [vmem:[%s12 + $0xc] sm:$0xf]
        %v928 = vld [vmem:[%s12 + $0x10] sm:$0xf]
        %v929 = vld [vmem:[%s12 + $0x14] sm:$0xf]
        %v930 = vld [vmem:[%s12 + $0x18] sm:$0xf]
        %v931 = vld [vmem:[%s12 + $0x1c] sm:$0xf]
        %v932 = vld [vmem:[%s12 + $0x20] sm:$0xf]
        %v933 = vld [vmem:[%s12 + $0x24] sm:$0xf]
        %v934 = vld [vmem:[%s12 + $0x28] sm:$0xf]
        %v935 = vld [vmem:[%s12 + $0x2c] sm:$0xf]
        %v936 = vld [vmem:[%s12 + $0x30] sm:$0xf]
        %v937 = vld [vmem:[%s12 + $0x34] sm:$0xf]
        %v938 = vld [vmem:[%s12 + $0x38] sm:$0xf]
        %v939 = vld [vmem:[%s12 + $0x3c] sm:$0xf]
        %v940 = vld [vmem:[%s13] sm:$0x1]
        %v942 = vperm.slane %v940, 0
        %v960 = vunpack.c.l.b16 %v924
        %v961 = vunpack.c.l.b16 %v925
        %v962 = vunpack.c.l.b16 %v926
        %v963 = vunpack.c.l.b16 %v927
        %v964 = vunpack.c.l.b16 %v928
        %v965 = vunpack.c.l.b16 %v929
        %v966 = vunpack.c.l.b16 %v930
        %v967 = vunpack.c.l.b16 %v931
        %v968 = vunpack.c.l.b16 %v932
        %v969 = vunpack.c.l.b16 %v933
        %v970 = vunpack.c.l.b16 %v934
        %v971 = vunpack.c.l.b16 %v935
        %v972 = vunpack.c.l.b16 %v936
        %v973 = vunpack.c.l.b16 %v937
        %v974 = vunpack.c.l.b16 %v938
        %v975 = vunpack.c.l.b16 %v939
        %v976 = vpack.c.b16 %v961, %v960
        %v977 = vpack.c.b16 %v963, %v962
        %v978 = vpack.c.b16 %v965, %v964
        %v979 = vpack.c.b16 %v967, %v966
        %v980 = vpack.c.b16 %v969, %v968
        %v981 = vpack.c.b16 %v971, %v970
        %v982 = vpack.c.b16 %v973, %v972
        %v983 = vpack.c.b16 %v975, %v974
        %992 = vmatpush.bf16.msra.mxu0 %v983
        %993 = vmatpush.bf16.msra.mxu0 %v982
        %994 = vmatpush.bf16.msra.mxu0 %v981
        %995 = vmatpush.bf16.msra.mxu0 %v980
        %996 = vmatpush.bf16.msra.mxu0 %v979
        %997 = vmatpush.bf16.msra.mxu0 %v978
        %998 = vmatpush.bf16.msra.mxu0 %v977
        %999 = vmatpush.bf16.msra.mxu0 %v976
        %1000 = vmatmul.bf16.gmra.mxu0 %v923
        %v1001 = vpop.f32.mrf.mxu0
        %v1002 = vadd.f32 %v942, %v1001
        %v1003 = vpop.f32.mrf.mxu0
        %1004 = vdwg.mxu0
        %v1005 = vadd.f32 %v1002, %v832
        %1006 = vst.msk [vmem:[%s458] sm:$0xff] %vm465, %v1005
        %s1007 = sand.u32 %s335, 1
        %s1008 = scalar_lea.sflag [#allocation4], %s1007
        %s1009 = sand.u32 %s335, 1
        %s1010 = smul.addr %s1009, 8
        %s1011 = scalar_lea.vmem [#allocation3], %s1010
        // Predicated region
        $region77: #{tpu_custom_call.1} parent=75 // pred_check
          %p1012 = pneg %p345
        $region78: #{tpu_custom_call.1} parent=75 // pred_check_branch
          %1014 = sbr.rel (%p1012) target = $region80
        $region79: #{tpu_custom_call.1} parent=75 // pred_region
          %1016 = vsyncadd %s1008, 0
          %s1017 = smul.addr %s28, 8
          %s1018 = scalar_lea.hbm %s14, %s1017
          %s1020 = sshll.u32 %s1011, 4
          %s1021 = int_to_ptr.vmem [resolvable:$true] %s1020
          %s1022 = sshll.u32 %s1018, 4
          %s1023 = int_to_ptr.hbm [resolvable:$true] %s1022
          %1025 = dma.vmem_to_hbm [thread:$0]  %s1021, 128, %s1023, %s1008
        $region80: #{tpu_custom_call.1} parent=75 // pred_fallthru
          _
      $region76: #{tpu_custom_call.1} parent=5 // pred_fallthru
        _
      %p1026 = scmp.le.s32.totalorder 2, %s23
      // Predicated region
      $region81: #{tpu_custom_call.1} parent=5 // pred_check
        %p1027 = pneg %p1026
      $region82: #{tpu_custom_call.1} parent=5 // pred_check_branch
        %1029 = sbr.rel (%p1027) target = $region84
      $region83: #{tpu_custom_call.1} parent=5 // pred_region
        %s1030 = ssub.s32 %s23, 2
        // Predicated region
        $region85: #{tpu_custom_call.1} parent=83 // pred_check
          %p1031 = pneg %p351
        $region86: #{tpu_custom_call.1} parent=83 // pred_check_branch
          %1033 = sbr.rel (%p1031) target = $region88
        $region87: #{tpu_custom_call.1} parent=83 // pred_region
          %s1034 = sand.u32 %s336, 1
          %s1035 = scalar_lea.sflag [#allocation4], %s1034
          %s1036 = sand.u32 %s336, 1
          %s1037 = smul.addr %s1036, 8
          %s1038 = scalar_lea.vmem [#allocation3], %s1037
          %1040 = dma.done %s1035, 128
        $region88: #{tpu_custom_call.1} parent=83 // pred_fallthru
          _
      $region84: #{tpu_custom_call.1} parent=5 // pred_fallthru
        _
    $region6: #{tpu_custom_call.1} parent=1 // loop_footer
      %s27 = sadd.s32 1, %s23
    $region7: #{tpu_custom_call.1} parent=1 // loop_footer_branch
      %22 = sbr.rel target = $region3
    $region8: #{tpu_custom_call.1} parent=1 // loop_exit
      _
    %1041 = vsyncpa [#allocation4], 1
    %s1042 = scalar_lea.sflag [#allocation4], 1
    %1043 = vsyncpa %s1042, 1

</llo_original>
